<compile_context>
chip_gen: v5e
topology: v5e:2x2
jax: 0.10.0
libtpu: 0.0.40
codegen_flags: <defaults>
</compile_context>

<pallas_src>
import jax
import jax.numpy as jnp
from jax.experimental import pallas as pl
from jax.experimental.pallas import tpu as pltpu

HIDDEN = 256
NUM_LAYERS = 3
MAX_VOCAB_TILE = 8192        # lane-dense FC tile width (sweep 4096-8192)


def _round_up(x, m):
    return (x + m - 1) // m * m


def _fc_tiling(vocab):
    """Return (V_pad, TV, n_tiles): lane-dense vocab padding/tiling (init-time)."""
    n_tiles = max(1, pl.cdiv(vocab, MAX_VOCAB_TILE))
    tv = _round_up(pl.cdiv(vocab, n_tiles), 128)
    return tv * n_tiles, tv, n_tiles


def _make_decoder_kernel(b_pad):
    """Build the kernel closed over the (static) padded batch size."""
    h = HIDDEN

    def kernel(tok_ref, emb_ref, h0_ref, w_ih_ref, w_hh_ref,
               b_rz_ref, b_in_ref, b_hn_ref, fc_w_ref, fc_b_ref,
               hidden_ref, pred_ref, x_scr, h_top_scr, gsems):
        """Grid axis 0 tiles the padded vocab.

        tok_ref    : (B,)  int32 SMEM   scalar-prefetched token ids
        emb_ref    : (V, 256) f32 HBM   embedding table (gathered via DMA)
        h0_ref     : (3, B, 256) f32    previous hidden state per layer
        w_ih_ref   : (3, 256, 768) bf16 W_ih^T per layer (gate order r|z|n)
        w_hh_ref   : (3, 256, 768) bf16 W_hh^T per layer
        b_rz_ref   : (3, 512) f32       b_ih+b_hh for the r,z gates
        b_in_ref   : (3, 256) f32       b_ih for the n gate
        b_hn_ref   : (3, 256) f32       b_hh for the n gate
        fc_w_ref   : (256, TV) bf16     fc.weight^T vocab tile
        fc_b_ref   : (1, TV)  f32
        hidden_ref : (3, B, 256) f32    new hidden state (resident output)
        pred_ref   : (B, TV)  bf16      logits vocab tile
        x_scr      : (B, 256) f32 VMEM  gathered embeddings
        h_top_scr  : (B, 256) bf16 VMEM top-layer hidden, reused per FC tile
        gsems      : (B,) DMA sems      embedding gather semaphores
        """
        j = pl.program_id(0)

        @pl.when(j == 0)
        def _run_gru():
            # In-kernel embedding row gather (token ids already in SMEM).
            copies = [
                pltpu.make_async_copy(
                    emb_ref.at[pl.ds(tok_ref[b], 1), :],
                    x_scr.at[pl.ds(b, 1), :],
                    gsems.at[b])
                for b in range(b_pad)
            ]
            for c in copies:
                c.start()
            for c in copies:
                c.wait()

            x = x_scr[...]                                 # (B, 256) f32
            for l in range(NUM_LAYERS):                    # 3 stacked GRU cells
                h_prev = h0_ref[l]                         # (B, 256) f32
                gi = jnp.dot(x.astype(jnp.bfloat16), w_ih_ref[l],
                             preferred_element_type=jnp.float32)
                gh = jnp.dot(h_prev.astype(jnp.bfloat16), w_hh_ref[l],
                             preferred_element_type=jnp.float32)
                rz = jax.nn.sigmoid(gi[:, :2 * h] + gh[:, :2 * h]
                                    + b_rz_ref[l:l + 1, :])
                r = rz[:, :h]
                z = rz[:, h:]
                n = jnp.tanh(gi[:, 2 * h:] + b_in_ref[l:l + 1, :]
                             + r * (gh[:, 2 * h:] + b_hn_ref[l:l + 1, :]))
                h_new = (1.0 - z) * n + z * h_prev
                hidden_ref[l] = h_new
                x = h_new                                  # input to next layer
            h_top_scr[...] = x.astype(jnp.bfloat16)        # cast once for FC tiles

        # Output projection on this vocab tile (every grid step): bf16 MXU, f32 acc.
        logits = jnp.dot(h_top_scr[...], fc_w_ref[...],
                         preferred_element_type=jnp.float32) + fc_b_ref[...]
        pred_ref[...] = logits.astype(pred_ref.dtype)

    return kernel


def decoder_pallas(decoder_input, hidden, encoder_output, params):
    """Mirrors Decoder.forward. `encoder_output` is unused (as in the module).

    decoder_input : (B,) int32 token ids
    hidden        : (3, B, 256) float32
    returns (decoder_output (1,B,256) f32, hidden (3,B,256) f32, predictions (B,V) bf16)
    """
    del encoder_output                      # not used by the PyTorch forward either
    h = HIDDEN
    b = hidden.shape[1]
    v = params["vocab_size"]
    v_pad = params["fc_w_t_pad"].shape[1]
    _, tv, n_vtiles = _fc_tiling(v)
    assert tv * n_vtiles == v_pad

    # Hardware-friendly batch padding: multiple of 8 sublanes.
    b_pad = _round_up(max(b, 8), 8)

    # PyTorch plumbing: view(1,-1).transpose(0,1) -> (B,1); seq_len is 1, so the
    # kernel consumes the single time step.  Dropout = eval-mode identity.
    tokens = decoder_input.reshape(1, -1).T.reshape(-1).astype(jnp.int32)
    tokens_p = jnp.pad(tokens, (0, b_pad - b))                       # (B_pad,)
    hidden_p = jnp.pad(hidden, ((0, 0), (0, b_pad - b), (0, 0)))     # tiny copy

    # Advisory cost estimate so XLA schedules surrounding decode-loop ops well.
    flops = 2 * b_pad * h * (3 * h) * 2 * NUM_LAYERS + 2 * b_pad * h * v_pad
    transcendentals = NUM_LAYERS * b_pad * 3 * h
    bytes_accessed = (
        (2 * NUM_LAYERS * h * 3 * h + h * v_pad) * 2      # bf16 weights
        + (NUM_LAYERS * 4 * h + v_pad) * 4                # f32 biases
        + b_pad * h * 4                                   # embedding rows
        + 2 * NUM_LAYERS * b_pad * h * 4                  # hidden in/out
        + b_pad * v_pad * 2)                              # bf16 logits

    grid_spec = pltpu.PrefetchScalarGridSpec(
        num_scalar_prefetch=1,                            # token ids -> SMEM
        grid=(n_vtiles,),
        in_specs=[
            pl.BlockSpec(memory_space=pl.ANY),                               # embedding (HBM)
            pl.BlockSpec((NUM_LAYERS, b_pad, h), lambda j, tok: (0, 0, 0)),  # h0 (resident)
            pl.BlockSpec((NUM_LAYERS, h, 3 * h), lambda j, tok: (0, 0, 0)),  # W_ih^T (resident)
            pl.BlockSpec((NUM_LAYERS, h, 3 * h), lambda j, tok: (0, 0, 0)),  # W_hh^T (resident)
            pl.BlockSpec((NUM_LAYERS, 2 * h), lambda j, tok: (0, 0)),        # b_rz
            pl.BlockSpec((NUM_LAYERS, h), lambda j, tok: (0, 0)),            # b_in
            pl.BlockSpec((NUM_LAYERS, h), lambda j, tok: (0, 0)),            # b_hn
            pl.BlockSpec((h, tv), lambda j, tok: (0, j)),                    # fc W^T tile
            pl.BlockSpec((1, tv), lambda j, tok: (0, j)),                    # fc b tile
        ],
        out_specs=(
            pl.BlockSpec((NUM_LAYERS, b_pad, h), lambda j, tok: (0, 0, 0)),  # hidden (resident)
            pl.BlockSpec((b_pad, tv), lambda j, tok: (0, j)),                # logits tile
        ),
        scratch_shapes=[
            pltpu.VMEM((b_pad, h), jnp.float32),       # gathered embeddings
            pltpu.VMEM((b_pad, h), jnp.bfloat16),      # top-layer hidden (bf16)
            pltpu.SemaphoreType.DMA((b_pad,)),         # gather semaphores
        ],
    )

    out_shapes = (
        jax.ShapeDtypeStruct((NUM_LAYERS, b_pad, h), jnp.float32),   # hidden
        jax.ShapeDtypeStruct((b_pad, v_pad), jnp.bfloat16),          # logits (padded)
    )

    hidden_out_p, pred_p = pl.pallas_call(
        _make_decoder_kernel(b_pad),
        out_shape=out_shapes,
        grid_spec=grid_spec,
        compiler_params=pltpu.CompilerParams(
            dimension_semantics=("arbitrary",),
            vmem_limit_bytes=32 * 1024 * 1024),
        cost_estimate=pl.CostEstimate(
            flops=flops, transcendentals=transcendentals,
            bytes_accessed=bytes_accessed),
    )(tokens_p, params["embedding"], hidden_p,
      params["w_ih_t"], params["w_hh_t"],
      params["b_rz"], params["b_in"], params["b_hn"],
      params["fc_w_t_pad"], params["fc_b_pad"])

    hidden_out = hidden_out_p[:, :b, :]                              # (3, B, 256)
    decoder_output = hidden_out_p[NUM_LAYERS - 1:NUM_LAYERS, :b, :]  # (1, B, 256)
    predictions = pred_p[:b, :v]                                     # (B, V) bf16
    return decoder_output, hidden_out, predictions


def init_params(key, input_size):
    """Deterministic init matching the PyTorch parameter shapes.

    GRU / FC weights stored in bf16; FC weight/bias padded to the lane-dense
    vocab tiling ONCE here (not per decode step); r/z gate biases pre-summed.
    """
    ks = jax.random.split(key, 8)
    h = HIDDEN
    bound = 1.0 / jnp.sqrt(jnp.float32(h))
    embedding = jax.random.normal(ks[0], (input_size, h), jnp.float32)
    # GRU weights, gate order (r, z, n); stored transposed for x @ W, in bf16.
    w_ih_t = jax.random.uniform(ks[1], (NUM_LAYERS, h, 3 * h), jnp.float32,
                                -bound, bound).astype(jnp.bfloat16)
    w_hh_t = jax.random.uniform(ks[2], (NUM_LAYERS, h, 3 * h), jnp.float32,
                                -bound, bound).astype(jnp.bfloat16)
    b_ih = jax.random.uniform(ks[3], (NUM_LAYERS, 3 * h), jnp.float32, -bound, bound)
    b_hh = jax.random.uniform(ks[4], (NUM_LAYERS, 3 * h), jnp.float32, -bound, bound)
    fc_w_t = jax.random.uniform(ks[5], (h, input_size), jnp.float32,
                                -bound, bound).astype(jnp.bfloat16)
    fc_b = jax.random.uniform(ks[6], (1, input_size), jnp.float32, -bound, bound)

    v_pad, _, _ = _fc_tiling(input_size)
    fc_w_t_pad = jnp.pad(fc_w_t, ((0, 0), (0, v_pad - input_size)))
    fc_b_pad = jnp.pad(fc_b, ((0, 0), (0, v_pad - input_size)))

    # Pre-summed r/z bias; separate input/hidden biases for the n gate.
    b_rz = b_ih[:, :2 * h] + b_hh[:, :2 * h]
    b_in = b_ih[:, 2 * h:]
    b_hn = b_hh[:, 2 * h:]

    return dict(embedding=embedding, w_ih_t=w_ih_t, w_hh_t=w_hh_t,
                b_ih=b_ih, b_hh=b_hh, b_rz=b_rz, b_in=b_in, b_hn=b_hn,
                fc_w_t=fc_w_t, fc_b=fc_b,
                fc_w_t_pad=fc_w_t_pad, fc_b_pad=fc_b_pad,
                vocab_size=input_size)


def decoder_reference(decoder_input, hidden, params):
    """Pure-JAX reference replicating torch.nn.GRU semantics (bf16 weights,
    f32 accumulation — same numerics as the kernel; logits kept in f32)."""
    h = HIDDEN
    tokens = decoder_input.reshape(1, -1).T.reshape(-1)
    x = params["embedding"][tokens]
    new_hidden = []
    for l in range(NUM_LAYERS):
        h_prev = hidden[l]
        gi = jnp.dot(x.astype(jnp.bfloat16), params["w_ih_t"][l],
                     preferred_element_type=jnp.float32) + params["b_ih"][l]
        gh = jnp.dot(h_prev.astype(jnp.bfloat16), params["w_hh_t"][l],
                     preferred_element_type=jnp.float32) + params["b_hh"][l]
        r = jax.nn.sigmoid(gi[:, :h] + gh[:, :h])
        z = jax.nn.sigmoid(gi[:, h:2 * h] + gh[:, h:2 * h])
        n = jnp.tanh(gi[:, 2 * h:] + r * gh[:, 2 * h:])
        h_new = (1.0 - z) * n + z * h_prev
        new_hidden.append(h_new)
        x = h_new
    dec_out = x[None]
    pred = jnp.dot(x.astype(jnp.bfloat16), params["fc_w_t"],
                   preferred_element_type=jnp.float32) + params["fc_b"]
    return dec_out, jnp.stack(new_hidden), pred


if __name__ == "__main__":
    key = jax.random.PRNGKey(0)
    input_size = 32   # vocab size
    batch = 2

    k_tok, k_hid, k_enc, k_par = jax.random.split(key, 4)
    decoder_input = jax.random.randint(k_tok, (batch,), 0, input_size, jnp.int32)
    hidden = jax.random.normal(k_hid, (NUM_LAYERS, batch, HIDDEN), jnp.float32)
    encoder_output = jax.random.normal(k_enc, (8, batch, HIDDEN), jnp.float32)  # unused
    params = init_params(k_par, input_size)

    dec_out, hid_out, pred = decoder_pallas(decoder_input, hidden,
                                            encoder_output, params)
    jax.block_until_ready((dec_out, hid_out, pred))

    ref_out, ref_hid, ref_pred = decoder_reference(decoder_input, hidden, params)
    assert dec_out.shape == (1, batch, HIDDEN)
    assert hid_out.shape == (NUM_LAYERS, batch, HIDDEN)
    assert pred.shape == (batch, input_size)
    assert jnp.allclose(dec_out, ref_out, atol=2e-3, rtol=2e-3)
    assert jnp.allclose(hid_out, ref_hid, atol=2e-3, rtol=2e-3)
    # Kernel emits bf16 logits (review item): compare in f32 with bf16 tolerance.
    assert jnp.allclose(pred.astype(jnp.float32), ref_pred, atol=1e-2, rtol=1e-2)

    print("KERNEL_OK")
</pallas_src>

<mosaic_0001>
module attributes {stable_mosaic.version = 11 : i64} {
  func.func @kernel(%arg0: i32, %arg1: memref<8xi32, #tpu.memory_space<smem>>, %arg2: memref<32x256xf32, #tpu.memory_space<any>>, %arg3: memref<3x8x256xf32, #tpu.memory_space<vmem>>, %arg4: memref<3x256x768xbf16, #tpu.memory_space<vmem>>, %arg5: memref<3x256x768xbf16, #tpu.memory_space<vmem>>, %arg6: memref<3x512xf32, #tpu.memory_space<vmem>>, %arg7: memref<3x256xf32, #tpu.memory_space<vmem>>, %arg8: memref<3x256xf32, #tpu.memory_space<vmem>>, %arg9: memref<256x128xbf16, #tpu.memory_space<vmem>>, %arg10: memref<1x128xf32, #tpu.memory_space<vmem>>, %arg11: memref<3x8x256xf32, #tpu.memory_space<vmem>>, %arg12: memref<8x128xbf16, #tpu.memory_space<vmem>>, %arg13: memref<8x256xf32, #tpu.memory_space<vmem>>, %arg14: memref<8x256xbf16, #tpu.memory_space<vmem>>, %arg15: memref<8x!tpu.dma_semaphore, #tpu.memory_space<semaphore_mem>>) attributes {dimension_semantics = [#tpu.dimension_semantics<arbitrary>], iteration_bounds = array<i64: 1>, scalar_prefetch = 1 : i64, scratch_operands = 3 : i64, tpu.core_type = #tpu.core_type<tc>, window_params = [{}, {pipeline_mode = #tpu.pipeline_mode<synchronous>, transform_indices = @transform_1, window_bounds = array<i64: 3, 8, 256>}, {pipeline_mode = #tpu.pipeline_mode<synchronous>, transform_indices = @transform_2, window_bounds = array<i64: 3, 256, 768>}, {pipeline_mode = #tpu.pipeline_mode<synchronous>, transform_indices = @transform_3, window_bounds = array<i64: 3, 256, 768>}, {pipeline_mode = #tpu.pipeline_mode<synchronous>, transform_indices = @transform_4, window_bounds = array<i64: 3, 512>}, {pipeline_mode = #tpu.pipeline_mode<synchronous>, transform_indices = @transform_5, window_bounds = array<i64: 3, 256>}, {pipeline_mode = #tpu.pipeline_mode<synchronous>, transform_indices = @transform_6, window_bounds = array<i64: 3, 256>}, {transform_indices = @transform_7, window_bounds = array<i64: 256, 128>}, {transform_indices = @transform_8, window_bounds = array<i64: 1, 128>}, {pipeline_mode = #tpu.pipeline_mode<synchronous>, transform_indices = @transform_9, window_bounds = array<i64: 3, 8, 256>}, {transform_indices = @transform_10, window_bounds = array<i64: 8, 128>}]} {
    %c0_i32 = arith.constant 0 : i32
    %0 = arith.cmpi eq, %arg0, %c0_i32 : i32
    %1 = arith.extui %0 : i1 to i32
    %c0_i32_0 = arith.constant 0 : i32
    %2 = arith.cmpi ne, %1, %c0_i32_0 : i32
    scf.if %2 {
      %c0_8 = arith.constant 0 : index
      %11 = memref.load %arg1[%c0_8] : memref<8xi32, #tpu.memory_space<smem>>
      %c1 = arith.constant 1 : index
      %12 = memref.load %arg1[%c1] : memref<8xi32, #tpu.memory_space<smem>>
      %c2 = arith.constant 2 : index
      %13 = memref.load %arg1[%c2] : memref<8xi32, #tpu.memory_space<smem>>
      %c3 = arith.constant 3 : index
      %14 = memref.load %arg1[%c3] : memref<8xi32, #tpu.memory_space<smem>>
      %c4 = arith.constant 4 : index
      %15 = memref.load %arg1[%c4] : memref<8xi32, #tpu.memory_space<smem>>
      %c5 = arith.constant 5 : index
      %16 = memref.load %arg1[%c5] : memref<8xi32, #tpu.memory_space<smem>>
      %c6 = arith.constant 6 : index
      %17 = memref.load %arg1[%c6] : memref<8xi32, #tpu.memory_space<smem>>
      %c7 = arith.constant 7 : index
      %18 = memref.load %arg1[%c7] : memref<8xi32, #tpu.memory_space<smem>>
      %c0_i32_9 = arith.constant 0 : i32
      %c0_i32_10 = arith.constant 0 : i32
      %19 = tpu.memref_slice %arg2[%11, %c0_i32_10] : memref<32x256xf32, #tpu.memory_space<any>> -> memref<1x256xf32, #tpu.memory_space<any>>
      %c0_i32_11 = arith.constant 0 : i32
      %c0_i32_12 = arith.constant 0 : i32
      %20 = tpu.memref_slice %arg13[%c0_i32_11, %c0_i32_12] : memref<8x256xf32, #tpu.memory_space<vmem>> -> memref<1x256xf32, #tpu.memory_space<vmem>>
      %21 = tpu.memref_slice %arg15[%c0_i32_9] : memref<8x!tpu.dma_semaphore, #tpu.memory_space<semaphore_mem>> -> memref<1x!tpu.dma_semaphore, #tpu.memory_space<semaphore_mem>>
      %22 = tpu.memref_squeeze %21 : memref<1x!tpu.dma_semaphore, #tpu.memory_space<semaphore_mem>> -> memref<!tpu.dma_semaphore, #tpu.memory_space<semaphore_mem>>
      tpu.enqueue_dma source(%19 : memref<1x256xf32, #tpu.memory_space<any>>) target(%20 : memref<1x256xf32, #tpu.memory_space<vmem>>) target_semaphore(%22 : memref<!tpu.dma_semaphore, #tpu.memory_space<semaphore_mem>>)
      %c1_i32 = arith.constant 1 : i32
      %c0_i32_13 = arith.constant 0 : i32
      %23 = tpu.memref_slice %arg2[%12, %c0_i32_13] : memref<32x256xf32, #tpu.memory_space<any>> -> memref<1x256xf32, #tpu.memory_space<any>>
      %c1_i32_14 = arith.constant 1 : i32
      %c0_i32_15 = arith.constant 0 : i32
      %24 = tpu.memref_slice %arg13[%c1_i32_14, %c0_i32_15] : memref<8x256xf32, #tpu.memory_space<vmem>> -> memref<1x256xf32, #tpu.memory_space<vmem>>
      %25 = tpu.memref_slice %arg15[%c1_i32] : memref<8x!tpu.dma_semaphore, #tpu.memory_space<semaphore_mem>> -> memref<1x!tpu.dma_semaphore, #tpu.memory_space<semaphore_mem>>
      %26 = tpu.memref_squeeze %25 : memref<1x!tpu.dma_semaphore, #tpu.memory_space<semaphore_mem>> -> memref<!tpu.dma_semaphore, #tpu.memory_space<semaphore_mem>>
      tpu.enqueue_dma source(%23 : memref<1x256xf32, #tpu.memory_space<any>>) target(%24 : memref<1x256xf32, #tpu.memory_space<vmem>>) target_semaphore(%26 : memref<!tpu.dma_semaphore, #tpu.memory_space<semaphore_mem>>)
      %c2_i32 = arith.constant 2 : i32
      %c0_i32_16 = arith.constant 0 : i32
      %27 = tpu.memref_slice %arg2[%13, %c0_i32_16] : memref<32x256xf32, #tpu.memory_space<any>> -> memref<1x256xf32, #tpu.memory_space<any>>
      %c2_i32_17 = arith.constant 2 : i32
      %c0_i32_18 = arith.constant 0 : i32
      %28 = tpu.memref_slice %arg13[%c2_i32_17, %c0_i32_18] : memref<8x256xf32, #tpu.memory_space<vmem>> -> memref<1x256xf32, #tpu.memory_space<vmem>>
      %29 = tpu.memref_slice %arg15[%c2_i32] : memref<8x!tpu.dma_semaphore, #tpu.memory_space<semaphore_mem>> -> memref<1x!tpu.dma_semaphore, #tpu.memory_space<semaphore_mem>>
      %30 = tpu.memref_squeeze %29 : memref<1x!tpu.dma_semaphore, #tpu.memory_space<semaphore_mem>> -> memref<!tpu.dma_semaphore, #tpu.memory_space<semaphore_mem>>
      tpu.enqueue_dma source(%27 : memref<1x256xf32, #tpu.memory_space<any>>) target(%28 : memref<1x256xf32, #tpu.memory_space<vmem>>) target_semaphore(%30 : memref<!tpu.dma_semaphore, #tpu.memory_space<semaphore_mem>>)
      %c3_i32 = arith.constant 3 : i32
      %c0_i32_19 = arith.constant 0 : i32
      %31 = tpu.memref_slice %arg2[%14, %c0_i32_19] : memref<32x256xf32, #tpu.memory_space<any>> -> memref<1x256xf32, #tpu.memory_space<any>>
      %c3_i32_20 = arith.constant 3 : i32
      %c0_i32_21 = arith.constant 0 : i32
      %32 = tpu.memref_slice %arg13[%c3_i32_20, %c0_i32_21] : memref<8x256xf32, #tpu.memory_space<vmem>> -> memref<1x256xf32, #tpu.memory_space<vmem>>
      %33 = tpu.memref_slice %arg15[%c3_i32] : memref<8x!tpu.dma_semaphore, #tpu.memory_space<semaphore_mem>> -> memref<1x!tpu.dma_semaphore, #tpu.memory_space<semaphore_mem>>
      %34 = tpu.memref_squeeze %33 : memref<1x!tpu.dma_semaphore, #tpu.memory_space<semaphore_mem>> -> memref<!tpu.dma_semaphore, #tpu.memory_space<semaphore_mem>>
      tpu.enqueue_dma source(%31 : memref<1x256xf32, #tpu.memory_space<any>>) target(%32 : memref<1x256xf32, #tpu.memory_space<vmem>>) target_semaphore(%34 : memref<!tpu.dma_semaphore, #tpu.memory_space<semaphore_mem>>)
      %c4_i32 = arith.constant 4 : i32
      %c0_i32_22 = arith.constant 0 : i32
      %35 = tpu.memref_slice %arg2[%15, %c0_i32_22] : memref<32x256xf32, #tpu.memory_space<any>> -> memref<1x256xf32, #tpu.memory_space<any>>
      %c4_i32_23 = arith.constant 4 : i32
      %c0_i32_24 = arith.constant 0 : i32
      %36 = tpu.memref_slice %arg13[%c4_i32_23, %c0_i32_24] : memref<8x256xf32, #tpu.memory_space<vmem>> -> memref<1x256xf32, #tpu.memory_space<vmem>>
      %37 = tpu.memref_slice %arg15[%c4_i32] : memref<8x!tpu.dma_semaphore, #tpu.memory_space<semaphore_mem>> -> memref<1x!tpu.dma_semaphore, #tpu.memory_space<semaphore_mem>>
      %38 = tpu.memref_squeeze %37 : memref<1x!tpu.dma_semaphore, #tpu.memory_space<semaphore_mem>> -> memref<!tpu.dma_semaphore, #tpu.memory_space<semaphore_mem>>
      tpu.enqueue_dma source(%35 : memref<1x256xf32, #tpu.memory_space<any>>) target(%36 : memref<1x256xf32, #tpu.memory_space<vmem>>) target_semaphore(%38 : memref<!tpu.dma_semaphore, #tpu.memory_space<semaphore_mem>>)
      %c5_i32 = arith.constant 5 : i32
      %c0_i32_25 = arith.constant 0 : i32
      %39 = tpu.memref_slice %arg2[%16, %c0_i32_25] : memref<32x256xf32, #tpu.memory_space<any>> -> memref<1x256xf32, #tpu.memory_space<any>>
      %c5_i32_26 = arith.constant 5 : i32
      %c0_i32_27 = arith.constant 0 : i32
      %40 = tpu.memref_slice %arg13[%c5_i32_26, %c0_i32_27] : memref<8x256xf32, #tpu.memory_space<vmem>> -> memref<1x256xf32, #tpu.memory_space<vmem>>
      %41 = tpu.memref_slice %arg15[%c5_i32] : memref<8x!tpu.dma_semaphore, #tpu.memory_space<semaphore_mem>> -> memref<1x!tpu.dma_semaphore, #tpu.memory_space<semaphore_mem>>
      %42 = tpu.memref_squeeze %41 : memref<1x!tpu.dma_semaphore, #tpu.memory_space<semaphore_mem>> -> memref<!tpu.dma_semaphore, #tpu.memory_space<semaphore_mem>>
      tpu.enqueue_dma source(%39 : memref<1x256xf32, #tpu.memory_space<any>>) target(%40 : memref<1x256xf32, #tpu.memory_space<vmem>>) target_semaphore(%42 : memref<!tpu.dma_semaphore, #tpu.memory_space<semaphore_mem>>)
      %c6_i32 = arith.constant 6 : i32
      %c0_i32_28 = arith.constant 0 : i32
      %43 = tpu.memref_slice %arg2[%17, %c0_i32_28] : memref<32x256xf32, #tpu.memory_space<any>> -> memref<1x256xf32, #tpu.memory_space<any>>
      %c6_i32_29 = arith.constant 6 : i32
      %c0_i32_30 = arith.constant 0 : i32
      %44 = tpu.memref_slice %arg13[%c6_i32_29, %c0_i32_30] : memref<8x256xf32, #tpu.memory_space<vmem>> -> memref<1x256xf32, #tpu.memory_space<vmem>>
      %45 = tpu.memref_slice %arg15[%c6_i32] : memref<8x!tpu.dma_semaphore, #tpu.memory_space<semaphore_mem>> -> memref<1x!tpu.dma_semaphore, #tpu.memory_space<semaphore_mem>>
      %46 = tpu.memref_squeeze %45 : memref<1x!tpu.dma_semaphore, #tpu.memory_space<semaphore_mem>> -> memref<!tpu.dma_semaphore, #tpu.memory_space<semaphore_mem>>
      tpu.enqueue_dma source(%43 : memref<1x256xf32, #tpu.memory_space<any>>) target(%44 : memref<1x256xf32, #tpu.memory_space<vmem>>) target_semaphore(%46 : memref<!tpu.dma_semaphore, #tpu.memory_space<semaphore_mem>>)
      %c7_i32 = arith.constant 7 : i32
      %c0_i32_31 = arith.constant 0 : i32
      %47 = tpu.memref_slice %arg2[%18, %c0_i32_31] : memref<32x256xf32, #tpu.memory_space<any>> -> memref<1x256xf32, #tpu.memory_space<any>>
      %c7_i32_32 = arith.constant 7 : i32
      %c0_i32_33 = arith.constant 0 : i32
      %48 = tpu.memref_slice %arg13[%c7_i32_32, %c0_i32_33] : memref<8x256xf32, #tpu.memory_space<vmem>> -> memref<1x256xf32, #tpu.memory_space<vmem>>
      %49 = tpu.memref_slice %arg15[%c7_i32] : memref<8x!tpu.dma_semaphore, #tpu.memory_space<semaphore_mem>> -> memref<1x!tpu.dma_semaphore, #tpu.memory_space<semaphore_mem>>
      %50 = tpu.memref_squeeze %49 : memref<1x!tpu.dma_semaphore, #tpu.memory_space<semaphore_mem>> -> memref<!tpu.dma_semaphore, #tpu.memory_space<semaphore_mem>>
      tpu.enqueue_dma source(%47 : memref<1x256xf32, #tpu.memory_space<any>>) target(%48 : memref<1x256xf32, #tpu.memory_space<vmem>>) target_semaphore(%50 : memref<!tpu.dma_semaphore, #tpu.memory_space<semaphore_mem>>)
      %c0_i32_34 = arith.constant 0 : i32
      %c0_i32_35 = arith.constant 0 : i32
      %51 = tpu.memref_slice %arg2[%11, %c0_i32_35] : memref<32x256xf32, #tpu.memory_space<any>> -> memref<1x256xf32, #tpu.memory_space<any>>
      %c0_i32_36 = arith.constant 0 : i32
      %c0_i32_37 = arith.constant 0 : i32
      %52 = tpu.memref_slice %arg13[%c0_i32_36, %c0_i32_37] : memref<8x256xf32, #tpu.memory_space<vmem>> -> memref<1x256xf32, #tpu.memory_space<vmem>>
      %53 = tpu.memref_slice %arg15[%c0_i32_34] : memref<8x!tpu.dma_semaphore, #tpu.memory_space<semaphore_mem>> -> memref<1x!tpu.dma_semaphore, #tpu.memory_space<semaphore_mem>>
      %54 = tpu.memref_squeeze %53 : memref<1x!tpu.dma_semaphore, #tpu.memory_space<semaphore_mem>> -> memref<!tpu.dma_semaphore, #tpu.memory_space<semaphore_mem>>
      tpu.wait_dma2 semaphore(%54 : memref<!tpu.dma_semaphore, #tpu.memory_space<semaphore_mem>>) src(%51 : memref<1x256xf32, #tpu.memory_space<any>>) dst(%52 : memref<1x256xf32, #tpu.memory_space<vmem>>)
      %c1_i32_38 = arith.constant 1 : i32
      %c0_i32_39 = arith.constant 0 : i32
      %55 = tpu.memref_slice %arg2[%12, %c0_i32_39] : memref<32x256xf32, #tpu.memory_space<any>> -> memref<1x256xf32, #tpu.memory_space<any>>
      %c1_i32_40 = arith.constant 1 : i32
      %c0_i32_41 = arith.constant 0 : i32
      %56 = tpu.memref_slice %arg13[%c1_i32_40, %c0_i32_41] : memref<8x256xf32, #tpu.memory_space<vmem>> -> memref<1x256xf32, #tpu.memory_space<vmem>>
      %57 = tpu.memref_slice %arg15[%c1_i32_38] : memref<8x!tpu.dma_semaphore, #tpu.memory_space<semaphore_mem>> -> memref<1x!tpu.dma_semaphore, #tpu.memory_space<semaphore_mem>>
      %58 = tpu.memref_squeeze %57 : memref<1x!tpu.dma_semaphore, #tpu.memory_space<semaphore_mem>> -> memref<!tpu.dma_semaphore, #tpu.memory_space<semaphore_mem>>
      tpu.wait_dma2 semaphore(%58 : memref<!tpu.dma_semaphore, #tpu.memory_space<semaphore_mem>>) src(%55 : memref<1x256xf32, #tpu.memory_space<any>>) dst(%56 : memref<1x256xf32, #tpu.memory_space<vmem>>)
      %c2_i32_42 = arith.constant 2 : i32
      %c0_i32_43 = arith.constant 0 : i32
      %59 = tpu.memref_slice %arg2[%13, %c0_i32_43] : memref<32x256xf32, #tpu.memory_space<any>> -> memref<1x256xf32, #tpu.memory_space<any>>
      %c2_i32_44 = arith.constant 2 : i32
      %c0_i32_45 = arith.constant 0 : i32
      %60 = tpu.memref_slice %arg13[%c2_i32_44, %c0_i32_45] : memref<8x256xf32, #tpu.memory_space<vmem>> -> memref<1x256xf32, #tpu.memory_space<vmem>>
      %61 = tpu.memref_slice %arg15[%c2_i32_42] : memref<8x!tpu.dma_semaphore, #tpu.memory_space<semaphore_mem>> -> memref<1x!tpu.dma_semaphore, #tpu.memory_space<semaphore_mem>>
      %62 = tpu.memref_squeeze %61 : memref<1x!tpu.dma_semaphore, #tpu.memory_space<semaphore_mem>> -> memref<!tpu.dma_semaphore, #tpu.memory_space<semaphore_mem>>
      tpu.wait_dma2 semaphore(%62 : memref<!tpu.dma_semaphore, #tpu.memory_space<semaphore_mem>>) src(%59 : memref<1x256xf32, #tpu.memory_space<any>>) dst(%60 : memref<1x256xf32, #tpu.memory_space<vmem>>)
      %c3_i32_46 = arith.constant 3 : i32
      %c0_i32_47 = arith.constant 0 : i32
      %63 = tpu.memref_slice %arg2[%14, %c0_i32_47] : memref<32x256xf32, #tpu.memory_space<any>> -> memref<1x256xf32, #tpu.memory_space<any>>
      %c3_i32_48 = arith.constant 3 : i32
      %c0_i32_49 = arith.constant 0 : i32
      %64 = tpu.memref_slice %arg13[%c3_i32_48, %c0_i32_49] : memref<8x256xf32, #tpu.memory_space<vmem>> -> memref<1x256xf32, #tpu.memory_space<vmem>>
      %65 = tpu.memref_slice %arg15[%c3_i32_46] : memref<8x!tpu.dma_semaphore, #tpu.memory_space<semaphore_mem>> -> memref<1x!tpu.dma_semaphore, #tpu.memory_space<semaphore_mem>>
      %66 = tpu.memref_squeeze %65 : memref<1x!tpu.dma_semaphore, #tpu.memory_space<semaphore_mem>> -> memref<!tpu.dma_semaphore, #tpu.memory_space<semaphore_mem>>
      tpu.wait_dma2 semaphore(%66 : memref<!tpu.dma_semaphore, #tpu.memory_space<semaphore_mem>>) src(%63 : memref<1x256xf32, #tpu.memory_space<any>>) dst(%64 : memref<1x256xf32, #tpu.memory_space<vmem>>)
      %c4_i32_50 = arith.constant 4 : i32
      %c0_i32_51 = arith.constant 0 : i32
      %67 = tpu.memref_slice %arg2[%15, %c0_i32_51] : memref<32x256xf32, #tpu.memory_space<any>> -> memref<1x256xf32, #tpu.memory_space<any>>
      %c4_i32_52 = arith.constant 4 : i32
      %c0_i32_53 = arith.constant 0 : i32
      %68 = tpu.memref_slice %arg13[%c4_i32_52, %c0_i32_53] : memref<8x256xf32, #tpu.memory_space<vmem>> -> memref<1x256xf32, #tpu.memory_space<vmem>>
      %69 = tpu.memref_slice %arg15[%c4_i32_50] : memref<8x!tpu.dma_semaphore, #tpu.memory_space<semaphore_mem>> -> memref<1x!tpu.dma_semaphore, #tpu.memory_space<semaphore_mem>>
      %70 = tpu.memref_squeeze %69 : memref<1x!tpu.dma_semaphore, #tpu.memory_space<semaphore_mem>> -> memref<!tpu.dma_semaphore, #tpu.memory_space<semaphore_mem>>
      tpu.wait_dma2 semaphore(%70 : memref<!tpu.dma_semaphore, #tpu.memory_space<semaphore_mem>>) src(%67 : memref<1x256xf32, #tpu.memory_space<any>>) dst(%68 : memref<1x256xf32, #tpu.memory_space<vmem>>)
      %c5_i32_54 = arith.constant 5 : i32
      %c0_i32_55 = arith.constant 0 : i32
      %71 = tpu.memref_slice %arg2[%16, %c0_i32_55] : memref<32x256xf32, #tpu.memory_space<any>> -> memref<1x256xf32, #tpu.memory_space<any>>
      %c5_i32_56 = arith.constant 5 : i32
      %c0_i32_57 = arith.constant 0 : i32
      %72 = tpu.memref_slice %arg13[%c5_i32_56, %c0_i32_57] : memref<8x256xf32, #tpu.memory_space<vmem>> -> memref<1x256xf32, #tpu.memory_space<vmem>>
      %73 = tpu.memref_slice %arg15[%c5_i32_54] : memref<8x!tpu.dma_semaphore, #tpu.memory_space<semaphore_mem>> -> memref<1x!tpu.dma_semaphore, #tpu.memory_space<semaphore_mem>>
      %74 = tpu.memref_squeeze %73 : memref<1x!tpu.dma_semaphore, #tpu.memory_space<semaphore_mem>> -> memref<!tpu.dma_semaphore, #tpu.memory_space<semaphore_mem>>
      tpu.wait_dma2 semaphore(%74 : memref<!tpu.dma_semaphore, #tpu.memory_space<semaphore_mem>>) src(%71 : memref<1x256xf32, #tpu.memory_space<any>>) dst(%72 : memref<1x256xf32, #tpu.memory_space<vmem>>)
      %c6_i32_58 = arith.constant 6 : i32
      %c0_i32_59 = arith.constant 0 : i32
      %75 = tpu.memref_slice %arg2[%17, %c0_i32_59] : memref<32x256xf32, #tpu.memory_space<any>> -> memref<1x256xf32, #tpu.memory_space<any>>
      %c6_i32_60 = arith.constant 6 : i32
      %c0_i32_61 = arith.constant 0 : i32
      %76 = tpu.memref_slice %arg13[%c6_i32_60, %c0_i32_61] : memref<8x256xf32, #tpu.memory_space<vmem>> -> memref<1x256xf32, #tpu.memory_space<vmem>>
      %77 = tpu.memref_slice %arg15[%c6_i32_58] : memref<8x!tpu.dma_semaphore, #tpu.memory_space<semaphore_mem>> -> memref<1x!tpu.dma_semaphore, #tpu.memory_space<semaphore_mem>>
      %78 = tpu.memref_squeeze %77 : memref<1x!tpu.dma_semaphore, #tpu.memory_space<semaphore_mem>> -> memref<!tpu.dma_semaphore, #tpu.memory_space<semaphore_mem>>
      tpu.wait_dma2 semaphore(%78 : memref<!tpu.dma_semaphore, #tpu.memory_space<semaphore_mem>>) src(%75 : memref<1x256xf32, #tpu.memory_space<any>>) dst(%76 : memref<1x256xf32, #tpu.memory_space<vmem>>)
      %c7_i32_62 = arith.constant 7 : i32
      %c0_i32_63 = arith.constant 0 : i32
      %79 = tpu.memref_slice %arg2[%18, %c0_i32_63] : memref<32x256xf32, #tpu.memory_space<any>> -> memref<1x256xf32, #tpu.memory_space<any>>
      %c7_i32_64 = arith.constant 7 : i32
      %c0_i32_65 = arith.constant 0 : i32
      %80 = tpu.memref_slice %arg13[%c7_i32_64, %c0_i32_65] : memref<8x256xf32, #tpu.memory_space<vmem>> -> memref<1x256xf32, #tpu.memory_space<vmem>>
      %81 = tpu.memref_slice %arg15[%c7_i32_62] : memref<8x!tpu.dma_semaphore, #tpu.memory_space<semaphore_mem>> -> memref<1x!tpu.dma_semaphore, #tpu.memory_space<semaphore_mem>>
      %82 = tpu.memref_squeeze %81 : memref<1x!tpu.dma_semaphore, #tpu.memory_space<semaphore_mem>> -> memref<!tpu.dma_semaphore, #tpu.memory_space<semaphore_mem>>
      tpu.wait_dma2 semaphore(%82 : memref<!tpu.dma_semaphore, #tpu.memory_space<semaphore_mem>>) src(%79 : memref<1x256xf32, #tpu.memory_space<any>>) dst(%80 : memref<1x256xf32, #tpu.memory_space<vmem>>)
      %c0_66 = arith.constant 0 : index
      %c0_67 = arith.constant 0 : index
      %83 = vector.load %arg13[%c0_66, %c0_67] : memref<8x256xf32, #tpu.memory_space<vmem>>, vector<8x256xf32>
      %c0_68 = arith.constant 0 : index
      %c0_69 = arith.constant 0 : index
      %c0_70 = arith.constant 0 : index
      %84 = vector.load %arg3[%c0_68, %c0_69, %c0_70] : memref<3x8x256xf32, #tpu.memory_space<vmem>>, vector<1x8x256xf32>
      %85 = vector.shape_cast %84 : vector<1x8x256xf32> to vector<8x256xf32>
      %86 = arith.truncf %83 : vector<8x256xf32> to vector<8x256xbf16>
      %c0_71 = arith.constant 0 : index
      %c0_72 = arith.constant 0 : index
      %c0_73 = arith.constant 0 : index
      %87 = vector.load %arg4[%c0_71, %c0_72, %c0_73] : memref<3x256x768xbf16, #tpu.memory_space<vmem>>, vector<1x256x768xbf16>
      %88 = vector.shape_cast %87 : vector<1x256x768xbf16> to vector<256x768xbf16>
      %cst_74 = arith.constant dense<0.000000e+00> : vector<8x768xf32>
      %89 = tpu.matmul %86, %88, %cst_74 {dimension_numbers = #tpu.dot_dimension_numbers<[1], [0], [0], [1], [0, 0, 1, 1], [], []>} : vector<8x256xbf16>, vector<256x768xbf16>, vector<8x768xf32> -> vector<8x768xf32>
      %90 = arith.truncf %85 : vector<8x256xf32> to vector<8x256xbf16>
      %c0_75 = arith.constant 0 : index
      %c0_76 = arith.constant 0 : index
      %c0_77 = arith.constant 0 : index
      %91 = vector.load %arg5[%c0_75, %c0_76, %c0_77] : memref<3x256x768xbf16, #tpu.memory_space<vmem>>, vector<1x256x768xbf16>
      %92 = vector.shape_cast %91 : vector<1x256x768xbf16> to vector<256x768xbf16>
      %cst_78 = arith.constant dense<0.000000e+00> : vector<8x768xf32>
      %93 = tpu.matmul %90, %92, %cst_78 {dimension_numbers = #tpu.dot_dimension_numbers<[1], [0], [0], [1], [0, 0, 1, 1], [], []>} : vector<8x256xbf16>, vector<256x768xbf16>, vector<8x768xf32> -> vector<8x768xf32>
      %94 = vector.extract_strided_slice %89 {offsets = [0, 0], sizes = [8, 512], strides = [1, 1]} : vector<8x768xf32> to vector<8x512xf32>
      %95 = vector.extract_strided_slice %93 {offsets = [0, 0], sizes = [8, 512], strides = [1, 1]} : vector<8x768xf32> to vector<8x512xf32>
      %96 = arith.addf %94, %95 : vector<8x512xf32>
      %c0_79 = arith.constant 0 : index
      %c0_80 = arith.constant 0 : index
      %97 = vector.load %arg6[%c0_79, %c0_80] : memref<3x512xf32, #tpu.memory_space<vmem>>, vector<1x512xf32>
      %98 = vector.broadcast %97 : vector<1x512xf32> to vector<8x512xf32>
      %99 = arith.addf %96, %98 : vector<8x512xf32>
      %100 = arith.negf %99 : vector<8x512xf32>
      %101 = math.exp %100 : vector<8x512xf32>
      %cst_81 = arith.constant 1.000000e+00 : f32
      %102 = vector.broadcast %cst_81 : f32 to vector<8x512xf32>
      %103 = arith.addf %102, %101 : vector<8x512xf32>
      %104 = arith.divf %102, %103 : vector<8x512xf32>
      %105 = vector.extract_strided_slice %104 {offsets = [0, 0], sizes = [8, 256], strides = [1, 1]} : vector<8x512xf32> to vector<8x256xf32>
      %106 = vector.extract_strided_slice %104 {offsets = [0, 256], sizes = [8, 256], strides = [1, 1]} : vector<8x512xf32> to vector<8x256xf32>
      %107 = vector.extract_strided_slice %89 {offsets = [0, 512], sizes = [8, 256], strides = [1, 1]} : vector<8x768xf32> to vector<8x256xf32>
      %c0_82 = arith.constant 0 : index
      %c0_83 = arith.constant 0 : index
      %108 = vector.load %arg7[%c0_82, %c0_83] : memref<3x256xf32, #tpu.memory_space<vmem>>, vector<1x256xf32>
      %109 = vector.broadcast %108 : vector<1x256xf32> to vector<8x256xf32>
      %110 = arith.addf %107, %109 : vector<8x256xf32>
      %111 = vector.extract_strided_slice %93 {offsets = [0, 512], sizes = [8, 256], strides = [1, 1]} : vector<8x768xf32> to vector<8x256xf32>
      %c0_84 = arith.constant 0 : index
      %c0_85 = arith.constant 0 : index
      %112 = vector.load %arg8[%c0_84, %c0_85] : memref<3x256xf32, #tpu.memory_space<vmem>>, vector<1x256xf32>
      %113 = vector.broadcast %112 : vector<1x256xf32> to vector<8x256xf32>
      %114 = arith.addf %111, %113 : vector<8x256xf32>
      %115 = arith.mulf %105, %114 : vector<8x256xf32>
      %116 = arith.addf %110, %115 : vector<8x256xf32>
      %117 = math.tanh %116 : vector<8x256xf32>
      %cst_86 = arith.constant 1.000000e+00 : f32
      %118 = vector.broadcast %cst_86 : f32 to vector<8x256xf32>
      %119 = arith.subf %118, %106 : vector<8x256xf32>
      %120 = arith.mulf %119, %117 : vector<8x256xf32>
      %121 = arith.mulf %106, %85 : vector<8x256xf32>
      %122 = arith.addf %120, %121 : vector<8x256xf32>
      %c0_87 = arith.constant 0 : index
      %c0_88 = arith.constant 0 : index
      %c0_89 = arith.constant 0 : index
      %123 = vector.load %arg11[%c0_87, %c0_88, %c0_89] : memref<3x8x256xf32, #tpu.memory_space<vmem>>, vector<1x8x256xf32>
      %124 = vector.shape_cast %123 : vector<1x8x256xf32> to vector<8x256xf32>
      %125 = vector.shape_cast %122 : vector<8x256xf32> to vector<1x8x256xf32>
      tpu.vector_store %arg11[%c0_87, %c0_88, %c0_89], %125 {strides = array<i32>} : memref<3x8x256xf32, #tpu.memory_space<vmem>>, vector<1x8x256xf32>,
      %c1_90 = arith.constant 1 : index
      %c0_91 = arith.constant 0 : index
      %c0_92 = arith.constant 0 : index
      %126 = vector.load %arg3[%c1_90, %c0_91, %c0_92] : memref<3x8x256xf32, #tpu.memory_space<vmem>>, vector<1x8x256xf32>
      %127 = vector.shape_cast %126 : vector<1x8x256xf32> to vector<8x256xf32>
      %128 = arith.truncf %122 : vector<8x256xf32> to vector<8x256xbf16>
      %c1_93 = arith.constant 1 : index
      %c0_94 = arith.constant 0 : index
      %c0_95 = arith.constant 0 : index
      %129 = vector.load %arg4[%c1_93, %c0_94, %c0_95] : memref<3x256x768xbf16, #tpu.memory_space<vmem>>, vector<1x256x768xbf16>
      %130 = vector.shape_cast %129 : vector<1x256x768xbf16> to vector<256x768xbf16>
      %cst_96 = arith.constant dense<0.000000e+00> : vector<8x768xf32>
      %131 = tpu.matmul %128, %130, %cst_96 {dimension_numbers = #tpu.dot_dimension_numbers<[1], [0], [0], [1], [0, 0, 1, 1], [], []>} : vector<8x256xbf16>, vector<256x768xbf16>, vector<8x768xf32> -> vector<8x768xf32>
      %132 = arith.truncf %127 : vector<8x256xf32> to vector<8x256xbf16>
      %c1_97 = arith.constant 1 : index
      %c0_98 = arith.constant 0 : index
      %c0_99 = arith.constant 0 : index
      %133 = vector.load %arg5[%c1_97, %c0_98, %c0_99] : memref<3x256x768xbf16, #tpu.memory_space<vmem>>, vector<1x256x768xbf16>
      %134 = vector.shape_cast %133 : vector<1x256x768xbf16> to vector<256x768xbf16>
      %cst_100 = arith.constant dense<0.000000e+00> : vector<8x768xf32>
      %135 = tpu.matmul %132, %134, %cst_100 {dimension_numbers = #tpu.dot_dimension_numbers<[1], [0], [0], [1], [0, 0, 1, 1], [], []>} : vector<8x256xbf16>, vector<256x768xbf16>, vector<8x768xf32> -> vector<8x768xf32>
      %136 = vector.extract_strided_slice %131 {offsets = [0, 0], sizes = [8, 512], strides = [1, 1]} : vector<8x768xf32> to vector<8x512xf32>
      %137 = vector.extract_strided_slice %135 {offsets = [0, 0], sizes = [8, 512], strides = [1, 1]} : vector<8x768xf32> to vector<8x512xf32>
      %138 = arith.addf %136, %137 : vector<8x512xf32>
      %c1_101 = arith.constant 1 : index
      %c0_102 = arith.constant 0 : index
      %139 = vector.load %arg6[%c1_101, %c0_102] : memref<3x512xf32, #tpu.memory_space<vmem>>, vector<1x512xf32>
      %140 = vector.broadcast %139 : vector<1x512xf32> to vector<8x512xf32>
      %141 = arith.addf %138, %140 : vector<8x512xf32>
      %142 = arith.negf %141 : vector<8x512xf32>
      %143 = math.exp %142 : vector<8x512xf32>
      %cst_103 = arith.constant 1.000000e+00 : f32
      %144 = vector.broadcast %cst_103 : f32 to vector<8x512xf32>
      %145 = arith.addf %144, %143 : vector<8x512xf32>
      %146 = arith.divf %144, %145 : vector<8x512xf32>
      %147 = vector.extract_strided_slice %146 {offsets = [0, 0], sizes = [8, 256], strides = [1, 1]} : vector<8x512xf32> to vector<8x256xf32>
      %148 = vector.extract_strided_slice %146 {offsets = [0, 256], sizes = [8, 256], strides = [1, 1]} : vector<8x512xf32> to vector<8x256xf32>
      %149 = vector.extract_strided_slice %131 {offsets = [0, 512], sizes = [8, 256], strides = [1, 1]} : vector<8x768xf32> to vector<8x256xf32>
      %c1_104 = arith.constant 1 : index
      %c0_105 = arith.constant 0 : index
      %150 = vector.load %arg7[%c1_104, %c0_105] : memref<3x256xf32, #tpu.memory_space<vmem>>, vector<1x256xf32>
      %151 = vector.broadcast %150 : vector<1x256xf32> to vector<8x256xf32>
      %152 = arith.addf %149, %151 : vector<8x256xf32>
      %153 = vector.extract_strided_slice %135 {offsets = [0, 512], sizes = [8, 256], strides = [1, 1]} : vector<8x768xf32> to vector<8x256xf32>
      %c1_106 = arith.constant 1 : index
      %c0_107 = arith.constant 0 : index
      %154 = vector.load %arg8[%c1_106, %c0_107] : memref<3x256xf32, #tpu.memory_space<vmem>>, vector<1x256xf32>
      %155 = vector.broadcast %154 : vector<1x256xf32> to vector<8x256xf32>
      %156 = arith.addf %153, %155 : vector<8x256xf32>
      %157 = arith.mulf %147, %156 : vector<8x256xf32>
      %158 = arith.addf %152, %157 : vector<8x256xf32>
      %159 = math.tanh %158 : vector<8x256xf32>
      %cst_108 = arith.constant 1.000000e+00 : f32
      %160 = vector.broadcast %cst_108 : f32 to vector<8x256xf32>
      %161 = arith.subf %160, %148 : vector<8x256xf32>
      %162 = arith.mulf %161, %159 : vector<8x256xf32>
      %163 = arith.mulf %148, %127 : vector<8x256xf32>
      %164 = arith.addf %162, %163 : vector<8x256xf32>
      %c1_109 = arith.constant 1 : index
      %c0_110 = arith.constant 0 : index
      %c0_111 = arith.constant 0 : index
      %165 = vector.load %arg11[%c1_109, %c0_110, %c0_111] : memref<3x8x256xf32, #tpu.memory_space<vmem>>, vector<1x8x256xf32>
      %166 = vector.shape_cast %165 : vector<1x8x256xf32> to vector<8x256xf32>
      %167 = vector.shape_cast %164 : vector<8x256xf32> to vector<1x8x256xf32>
      tpu.vector_store %arg11[%c1_109, %c0_110, %c0_111], %167 {strides = array<i32>} : memref<3x8x256xf32, #tpu.memory_space<vmem>>, vector<1x8x256xf32>,
      %c2_112 = arith.constant 2 : index
      %c0_113 = arith.constant 0 : index
      %c0_114 = arith.constant 0 : index
      %168 = vector.load %arg3[%c2_112, %c0_113, %c0_114] : memref<3x8x256xf32, #tpu.memory_space<vmem>>, vector<1x8x256xf32>
      %169 = vector.shape_cast %168 : vector<1x8x256xf32> to vector<8x256xf32>
      %170 = arith.truncf %164 : vector<8x256xf32> to vector<8x256xbf16>
      %c2_115 = arith.constant 2 : index
      %c0_116 = arith.constant 0 : index
      %c0_117 = arith.constant 0 : index
      %171 = vector.load %arg4[%c2_115, %c0_116, %c0_117] : memref<3x256x768xbf16, #tpu.memory_space<vmem>>, vector<1x256x768xbf16>
      %172 = vector.shape_cast %171 : vector<1x256x768xbf16> to vector<256x768xbf16>
      %cst_118 = arith.constant dense<0.000000e+00> : vector<8x768xf32>
      %173 = tpu.matmul %170, %172, %cst_118 {dimension_numbers = #tpu.dot_dimension_numbers<[1], [0], [0], [1], [0, 0, 1, 1], [], []>} : vector<8x256xbf16>, vector<256x768xbf16>, vector<8x768xf32> -> vector<8x768xf32>
      %174 = arith.truncf %169 : vector<8x256xf32> to vector<8x256xbf16>
      %c2_119 = arith.constant 2 : index
      %c0_120 = arith.constant 0 : index
      %c0_121 = arith.constant 0 : index
      %175 = vector.load %arg5[%c2_119, %c0_120, %c0_121] : memref<3x256x768xbf16, #tpu.memory_space<vmem>>, vector<1x256x768xbf16>
      %176 = vector.shape_cast %175 : vector<1x256x768xbf16> to vector<256x768xbf16>
      %cst_122 = arith.constant dense<0.000000e+00> : vector<8x768xf32>
      %177 = tpu.matmul %174, %176, %cst_122 {dimension_numbers = #tpu.dot_dimension_numbers<[1], [0], [0], [1], [0, 0, 1, 1], [], []>} : vector<8x256xbf16>, vector<256x768xbf16>, vector<8x768xf32> -> vector<8x768xf32>
      %178 = vector.extract_strided_slice %173 {offsets = [0, 0], sizes = [8, 512], strides = [1, 1]} : vector<8x768xf32> to vector<8x512xf32>
      %179 = vector.extract_strided_slice %177 {offsets = [0, 0], sizes = [8, 512], strides = [1, 1]} : vector<8x768xf32> to vector<8x512xf32>
      %180 = arith.addf %178, %179 : vector<8x512xf32>
      %c2_123 = arith.constant 2 : index
      %c0_124 = arith.constant 0 : index
      %181 = vector.load %arg6[%c2_123, %c0_124] : memref<3x512xf32, #tpu.memory_space<vmem>>, vector<1x512xf32>
      %182 = vector.broadcast %181 : vector<1x512xf32> to vector<8x512xf32>
      %183 = arith.addf %180, %182 : vector<8x512xf32>
      %184 = arith.negf %183 : vector<8x512xf32>
      %185 = math.exp %184 : vector<8x512xf32>
      %cst_125 = arith.constant 1.000000e+00 : f32
      %186 = vector.broadcast %cst_125 : f32 to vector<8x512xf32>
      %187 = arith.addf %186, %185 : vector<8x512xf32>
      %188 = arith.divf %186, %187 : vector<8x512xf32>
      %189 = vector.extract_strided_slice %188 {offsets = [0, 0], sizes = [8, 256], strides = [1, 1]} : vector<8x512xf32> to vector<8x256xf32>
      %190 = vector.extract_strided_slice %188 {offsets = [0, 256], sizes = [8, 256], strides = [1, 1]} : vector<8x512xf32> to vector<8x256xf32>
      %191 = vector.extract_strided_slice %173 {offsets = [0, 512], sizes = [8, 256], strides = [1, 1]} : vector<8x768xf32> to vector<8x256xf32>
      %c2_126 = arith.constant 2 : index
      %c0_127 = arith.constant 0 : index
      %192 = vector.load %arg7[%c2_126, %c0_127] : memref<3x256xf32, #tpu.memory_space<vmem>>, vector<1x256xf32>
      %193 = vector.broadcast %192 : vector<1x256xf32> to vector<8x256xf32>
      %194 = arith.addf %191, %193 : vector<8x256xf32>
      %195 = vector.extract_strided_slice %177 {offsets = [0, 512], sizes = [8, 256], strides = [1, 1]} : vector<8x768xf32> to vector<8x256xf32>
      %c2_128 = arith.constant 2 : index
      %c0_129 = arith.constant 0 : index
      %196 = vector.load %arg8[%c2_128, %c0_129] : memref<3x256xf32, #tpu.memory_space<vmem>>, vector<1x256xf32>
      %197 = vector.broadcast %196 : vector<1x256xf32> to vector<8x256xf32>
      %198 = arith.addf %195, %197 : vector<8x256xf32>
      %199 = arith.mulf %189, %198 : vector<8x256xf32>
      %200 = arith.addf %194, %199 : vector<8x256xf32>
      %201 = math.tanh %200 : vector<8x256xf32>
      %cst_130 = arith.constant 1.000000e+00 : f32
      %202 = vector.broadcast %cst_130 : f32 to vector<8x256xf32>
      %203 = arith.subf %202, %190 : vector<8x256xf32>
      %204 = arith.mulf %203, %201 : vector<8x256xf32>
      %205 = arith.mulf %190, %169 : vector<8x256xf32>
      %206 = arith.addf %204, %205 : vector<8x256xf32>
      %c2_131 = arith.constant 2 : index
      %c0_132 = arith.constant 0 : index
      %c0_133 = arith.constant 0 : index
      %207 = vector.load %arg11[%c2_131, %c0_132, %c0_133] : memref<3x8x256xf32, #tpu.memory_space<vmem>>, vector<1x8x256xf32>
      %208 = vector.shape_cast %207 : vector<1x8x256xf32> to vector<8x256xf32>
      %209 = vector.shape_cast %206 : vector<8x256xf32> to vector<1x8x256xf32>
      tpu.vector_store %arg11[%c2_131, %c0_132, %c0_133], %209 {strides = array<i32>} : memref<3x8x256xf32, #tpu.memory_space<vmem>>, vector<1x8x256xf32>,
      %210 = arith.truncf %206 : vector<8x256xf32> to vector<8x256xbf16>
      %c0_134 = arith.constant 0 : index
      %c0_135 = arith.constant 0 : index
      %211 = vector.load %arg14[%c0_134, %c0_135] : memref<8x256xbf16, #tpu.memory_space<vmem>>, vector<8x256xbf16>
      tpu.vector_store %arg14[%c0_134, %c0_135], %210 {strides = array<i32>} : memref<8x256xbf16, #tpu.memory_space<vmem>>, vector<8x256xbf16>,
    } else {
    }
    %c0 = arith.constant 0 : index
    %c0_1 = arith.constant 0 : index
    %3 = vector.load %arg14[%c0, %c0_1] : memref<8x256xbf16, #tpu.memory_space<vmem>>, vector<8x256xbf16>
    %c0_2 = arith.constant 0 : index
    %c0_3 = arith.constant 0 : index
    %4 = vector.load %arg9[%c0_2, %c0_3] : memref<256x128xbf16, #tpu.memory_space<vmem>>, vector<256x128xbf16>
    %cst = arith.constant dense<0.000000e+00> : vector<8x128xf32>
    %5 = tpu.matmul %3, %4, %cst {dimension_numbers = #tpu.dot_dimension_numbers<[1], [0], [0], [1], [0, 0, 1, 1], [], []>} : vector<8x256xbf16>, vector<256x128xbf16>, vector<8x128xf32> -> vector<8x128xf32>
    %c0_4 = arith.constant 0 : index
    %c0_5 = arith.constant 0 : index
    %6 = vector.load %arg10[%c0_4, %c0_5] : memref<1x128xf32, #tpu.memory_space<vmem>>, vector<1x128xf32>
    %7 = vector.broadcast %6 : vector<1x128xf32> to vector<8x128xf32>
    %8 = arith.addf %5, %7 : vector<8x128xf32>
    %9 = arith.truncf %8 : vector<8x128xf32> to vector<8x128xbf16>
    %c0_6 = arith.constant 0 : index
    %c0_7 = arith.constant 0 : index
    %10 = vector.load %arg12[%c0_6, %c0_7] : memref<8x128xbf16, #tpu.memory_space<vmem>>, vector<8x128xbf16>
    tpu.vector_store %arg12[%c0_6, %c0_7], %9 {strides = array<i32>} : memref<8x128xbf16, #tpu.memory_space<vmem>>, vector<8x128xbf16>,
    return
  }
  func.func @transform_1(%arg0: i32, %arg1: memref<8xi32, #tpu.memory_space<smem>>) -> (i32, i32, i32) {
    %c0_i32 = arith.constant 0 : i32
    %c0_i32_0 = arith.constant 0 : i32
    %c0_i32_1 = arith.constant 0 : i32
    %c0_i32_2 = arith.constant 0 : i32
    return %c0_i32, %c0_i32_0, %c0_i32_1 : i32, i32, i32
  }
  func.func @transform_2(%arg0: i32, %arg1: memref<8xi32, #tpu.memory_space<smem>>) -> (i32, i32, i32) {
    %c0_i32 = arith.constant 0 : i32
    %c0_i32_0 = arith.constant 0 : i32
    %c0_i32_1 = arith.constant 0 : i32
    %c0_i32_2 = arith.constant 0 : i32
    return %c0_i32, %c0_i32_0, %c0_i32_1 : i32, i32, i32
  }
  func.func @transform_3(%arg0: i32, %arg1: memref<8xi32, #tpu.memory_space<smem>>) -> (i32, i32, i32) {
    %c0_i32 = arith.constant 0 : i32
    %c0_i32_0 = arith.constant 0 : i32
    %c0_i32_1 = arith.constant 0 : i32
    %c0_i32_2 = arith.constant 0 : i32
    return %c0_i32, %c0_i32_0, %c0_i32_1 : i32, i32, i32
  }
  func.func @transform_4(%arg0: i32, %arg1: memref<8xi32, #tpu.memory_space<smem>>) -> (i32, i32) {
    %c0_i32 = arith.constant 0 : i32
    %c0_i32_0 = arith.constant 0 : i32
    %c0_i32_1 = arith.constant 0 : i32
    return %c0_i32, %c0_i32_0 : i32, i32
  }
  func.func @transform_5(%arg0: i32, %arg1: memref<8xi32, #tpu.memory_space<smem>>) -> (i32, i32) {
    %c0_i32 = arith.constant 0 : i32
    %c0_i32_0 = arith.constant 0 : i32
    %c0_i32_1 = arith.constant 0 : i32
    return %c0_i32, %c0_i32_0 : i32, i32
  }
  func.func @transform_6(%arg0: i32, %arg1: memref<8xi32, #tpu.memory_space<smem>>) -> (i32, i32) {
    %c0_i32 = arith.constant 0 : i32
    %c0_i32_0 = arith.constant 0 : i32
    %c0_i32_1 = arith.constant 0 : i32
    return %c0_i32, %c0_i32_0 : i32, i32
  }
  func.func @transform_7(%arg0: i32, %arg1: memref<8xi32, #tpu.memory_space<smem>>) -> (i32, i32) {
    %c0_i32 = arith.constant 0 : i32
    %c0_i32_0 = arith.constant 0 : i32
    return %c0_i32, %arg0 : i32, i32
  }
  func.func @transform_8(%arg0: i32, %arg1: memref<8xi32, #tpu.memory_space<smem>>) -> (i32, i32) {
    %c0_i32 = arith.constant 0 : i32
    %c0_i32_0 = arith.constant 0 : i32
    return %c0_i32, %arg0 : i32, i32
  }
  func.func @transform_9(%arg0: i32, %arg1: memref<8xi32, #tpu.memory_space<smem>>) -> (i32, i32, i32) {
    %c0_i32 = arith.constant 0 : i32
    %c0_i32_0 = arith.constant 0 : i32
    %c0_i32_1 = arith.constant 0 : i32
    %c0_i32_2 = arith.constant 0 : i32
    return %c0_i32, %c0_i32_0, %c0_i32_1 : i32, i32, i32
  }
  func.func @transform_10(%arg0: i32, %arg1: memref<8xi32, #tpu.memory_space<smem>>) -> (i32, i32) {
    %c0_i32 = arith.constant 0 : i32
    %c0_i32_0 = arith.constant 0 : i32
    return %c0_i32, %arg0 : i32, i32
  }
}

</mosaic_0001>

<llo_original>
// kernel: tpu_custom_call.1
$region0: #{tpu_custom_call.1}
  #allocation0 [shape = 'u32[]', space=smem, size = 0x4, offset = 0x4, fixed_abs, tag = 'smem constant byte address 0x4 - core index']
  #allocation1 [shape = 'u32[72,128]{1,0:T(1,128)}', space=vmem, size = 0x9000, scoped, tag = 'internal scratch']
  #allocation2 [shape = 'f32[8,256]{1,0:T(8,128)}', space=vmem, size = 0x2000, scoped, tag = 'scratch operand']
  #allocation3 [shape = 'bf16[8,256]{1,0:T(8,128)(2,1)}', space=vmem, size = 0x1000, scoped, tag = 'scratch operand']
  #allocation4 [shape = 's32[8]{0}', space=sflag, size = 0x20, scoped, tag = 'scratch operand']
  #allocation5 [shape = 's32[1]{0}', space=sflag, size = 0x4, scoped, tag = 'scoped memory for tpu_custom_call.1']
  #allocation6 [shape = 'u8[512]{0}', space=smem, size = 0x200, scoped, tag = 'prefetched SMEM operand 0']
  #allocation24 [shape = 's32[]', space=sflag, size = 0x4, offset = 0, fixed_abs, tag = 'sflag constant byte address 0x0 - dummy sync flag']
  #allocation25 [shape = 's32[]', space=sflag, size = 0x4, offset = 0, fixed_abs, tag = 'sflag constant byte address 0x0 - dummy sync flag']
  #allocation26 [shape = 's32[]', space=sflag, size = 0x4, offset = 0, fixed_abs, tag = 'sflag constant byte address 0x0 - dummy sync flag']
  #allocation27 [shape = 's32[]', space=sflag, size = 0x4, offset = 0, fixed_abs, tag = 'sflag constant byte address 0x0 - dummy sync flag']
  #allocation28 [shape = 's32[]', space=sflag, size = 0x4, offset = 0, fixed_abs, tag = 'sflag constant byte address 0x0 - dummy sync flag']
  #allocation29 [shape = 's32[]', space=sflag, size = 0x4, offset = 0, fixed_abs, tag = 'sflag constant byte address 0x0 - dummy sync flag']
  #allocation30 [shape = 's32[]', space=sflag, size = 0x4, offset = 0, fixed_abs, tag = 'sflag constant byte address 0x0 - dummy sync flag']
  #allocation31 [shape = 's32[]', space=sflag, size = 0x4, offset = 0, fixed_abs, tag = 'sflag constant byte address 0x0 - dummy sync flag']
  %s0 = inlined_call_operand.hbm [shape: s32[8], index: 0, kind: input, shape index: {}]
  %s1 = inlined_call_operand.hbm [shape: f32[32,256], index: 1, kind: input, shape index: {}]
  %s2 = inlined_call_operand.hbm [shape: f32[3,8,256], index: 2, kind: input, shape index: {}]
  %s3 = inlined_call_operand.hbm [shape: bf16[3,256,768], index: 3, kind: input, shape index: {}]
  %s4 = inlined_call_operand.hbm [shape: bf16[3,256,768], index: 4, kind: input, shape index: {}]
  %s5 = inlined_call_operand.hbm [shape: f32[3,512], index: 5, kind: input, shape index: {}]
  %s6 = inlined_call_operand.hbm [shape: f32[3,256], index: 6, kind: input, shape index: {}]
  %s7 = inlined_call_operand.hbm [shape: f32[3,256], index: 7, kind: input, shape index: {}]
  %s8 = inlined_call_operand.hbm [shape: bf16[256,128], index: 8, kind: input, shape index: {}]
  %s9 = inlined_call_operand.hbm [shape: f32[1,128], index: 9, kind: input, shape index: {}]
  %s10 = inlined_call_operand.hbm [shape: f32[3,8,256], index: 10, kind: output, shape index: {0}]
  %s11 = inlined_call_operand.hbm [shape: bf16[8,128], index: 11, kind: output, shape index: {1}]
  %12 = xla_tuple %s10, %s11
  %s13 = sld [smem:[#allocation0]]
  $region86: #{tpu_custom_call.1} parent=0
    _
  %s15 = ssub.s32 1, %s13
  %s16 = scalar_select 0, %s15, %s13
  %s18 = sshll.u32 %s0, 4
  %s19 = int_to_ptr.hbm [resolvable:$true] %s18
  %21 = dma.hbm_to_smem %s19, 16, [#allocation6], [#allocation5]
  %23 = dma.done [#allocation5], 16
  %24 = sfence
  $region1: #{tpu_custom_call.1} parent=0
    #allocation7 [shape = 'u8[24576]{0}', space=vmem, size = 0x6000, scoped, tag = 'input window, operand 2, single buffered']
    #allocation8 [shape = 's32[1]{0}', space=sflag, size = 0x4, scoped, tag = 'scoped memory for tpu_custom_call.1']
    #allocation9 [shape = 's32[1]{0}', space=sflag, size = 0x4, scoped, tag = 'scoped memory for tpu_custom_call.1']
    #allocation10 [shape = 'u8[1179648]{0}', space=vmem, size = 0x120000, scoped, tag = 'input window, operand 3, single buffered']
    #allocation11 [shape = 's32[1]{0}', space=sflag, size = 0x4, scoped, tag = 'scoped memory for tpu_custom_call.1']
    #allocation12 [shape = 'u8[1179648]{0}', space=vmem, size = 0x120000, scoped, tag = 'input window, operand 4, single buffered']
    #allocation13 [shape = 'u8[8192]{0}', space=vmem, size = 0x2000, scoped, tag = 'input window, operand 5, single buffered']
    #allocation14 [shape = 's32[1]{0}', space=sflag, size = 0x4, scoped, tag = 'scoped memory for tpu_custom_call.1']
    #allocation15 [shape = 'u8[4096]{0}', space=vmem, size = 0x1000, scoped, tag = 'input window, operand 6, single buffered']
    #allocation16 [shape = 'u8[4096]{0}', space=vmem, size = 0x1000, scoped, tag = 'input window, operand 7, single buffered']
    #allocation17 [shape = 's32[1]{0}', space=sflag, size = 0x4, scoped, tag = 'scoped memory for tpu_custom_call.1']
    #allocation18 [shape = 'u8[65536]{0}', space=vmem, size = 0x10000, scoped, tag = 'input window, operand 8, single buffered']
    #allocation19 [shape = 'u8[512]{0}', space=vmem, size = 0x400, scoped, tag = 'input window, operand 9, single buffered']
    #allocation20 [shape = 's32[1]{0}', space=sflag, size = 0x4, scoped, tag = 'scoped memory for tpu_custom_call.1']
    #allocation21 [shape = 'u8[24576]{0}', space=vmem, size = 0x6000, scoped, tag = 'output window, operand 0, single buffered']
    #allocation22 [shape = 'u8[2048]{0}', space=vmem, size = 0x800, scoped, tag = 'output window, operand 1, single buffered']
    #allocation23 [shape = 's32[1]{0}', space=sflag, size = 0x4, scoped, tag = 'scoped memory for tpu_custom_call.1']
    %25 = vsyncpa [#allocation8], 0
    %26 = vsyncpa [#allocation11], 0
    %27 = vsyncpa [#allocation14], 0
    %28 = vsyncpa [#allocation17], 0
    %29 = vsyncpa [#allocation20], 0
    %30 = vsyncpa [#allocation9], 0
    %31 = vsyncpa [#allocation23], 0
    // Predicated region
    $region2: #{tpu_custom_call.1} parent=1 // pred_check
      _
    $region3: #{tpu_custom_call.1} parent=1 // pred_check_branch
      %33 = sbr.rel (0) target = $region5
    $region4: #{tpu_custom_call.1} parent=1 // pred_region
      %35 = vsyncadd [#allocation8], 0
      %s36 = sshll.u32 %s2, 4
      %s37 = int_to_ptr.hbm [resolvable:$true] %s36
      %s38 = sshll.u32 [#allocation7], 4
      %s39 = int_to_ptr.vmem [resolvable:$true] %s38
      %44 = dma.hbm_to_vmem [thread:$0]  %s37, 768, %s39, [#allocation8], 256, 256, 16
    $region5: #{tpu_custom_call.1} parent=1 // pred_fallthru
      _
    // Predicated region
    $region6: #{tpu_custom_call.1} parent=1 // pred_check
      _
    $region7: #{tpu_custom_call.1} parent=1 // pred_check_branch
      %46 = sbr.rel (0) target = $region9
    $region8: #{tpu_custom_call.1} parent=1 // pred_region
      %48 = vsyncadd [#allocation11], 0
      %s49 = sshll.u32 %s3, 4
      %s50 = int_to_ptr.hbm [resolvable:$true] %s49
      %s51 = sshll.u32 [#allocation10], 4
      %s52 = int_to_ptr.vmem [resolvable:$true] %s51
      %57 = dma.hbm_to_vmem [thread:$0]  %s50, 36864, %s52, [#allocation11], 384, 384, 24
    $region9: #{tpu_custom_call.1} parent=1 // pred_fallthru
      _
    // Predicated region
    $region10: #{tpu_custom_call.1} parent=1 // pred_check
      _
    $region11: #{tpu_custom_call.1} parent=1 // pred_check_branch
      %59 = sbr.rel (0) target = $region13
    $region12: #{tpu_custom_call.1} parent=1 // pred_region
      %61 = vsyncadd [#allocation11], 0
      %s62 = sshll.u32 %s4, 4
      %s63 = int_to_ptr.hbm [resolvable:$true] %s62
      %s64 = sshll.u32 [#allocation12], 4
      %s65 = int_to_ptr.vmem [resolvable:$true] %s64
      %70 = dma.hbm_to_vmem [thread:$0]  %s63, 36864, %s65, [#allocation11], 384, 384, 24
    $region13: #{tpu_custom_call.1} parent=1 // pred_fallthru
      _
    // Predicated region
    $region14: #{tpu_custom_call.1} parent=1 // pred_check
      _
    $region15: #{tpu_custom_call.1} parent=1 // pred_check_branch
      %72 = sbr.rel (0) target = $region17
    $region16: #{tpu_custom_call.1} parent=1 // pred_region
      %74 = vsyncadd [#allocation14], 0
      %s76 = sshll.u32 %s5, 4
      %s77 = int_to_ptr.hbm [resolvable:$true] %s76
      %s78 = sshll.u32 [#allocation13], 4
      %s79 = int_to_ptr.vmem [resolvable:$true] %s78
      %81 = dma.hbm_to_vmem [thread:$0]  %s77, 256, %s79, [#allocation14]
    $region17: #{tpu_custom_call.1} parent=1 // pred_fallthru
      _
    // Predicated region
    $region18: #{tpu_custom_call.1} parent=1 // pred_check
      _
    $region19: #{tpu_custom_call.1} parent=1 // pred_check_branch
      %83 = sbr.rel (0) target = $region21
    $region20: #{tpu_custom_call.1} parent=1 // pred_region
      %85 = vsyncadd [#allocation14], 0
      %s87 = sshll.u32 %s6, 4
      %s88 = int_to_ptr.hbm [resolvable:$true] %s87
      %s89 = sshll.u32 [#allocation15], 4
      %s90 = int_to_ptr.vmem [resolvable:$true] %s89
      %92 = dma.hbm_to_vmem [thread:$0]  %s88, 128, %s90, [#allocation14]
    $region21: #{tpu_custom_call.1} parent=1 // pred_fallthru
      _
    // Predicated region
    $region22: #{tpu_custom_call.1} parent=1 // pred_check
      _
    $region23: #{tpu_custom_call.1} parent=1 // pred_check_branch
      %94 = sbr.rel (0) target = $region25
    $region24: #{tpu_custom_call.1} parent=1 // pred_region
      %96 = vsyncadd [#allocation17], 0
      %s98 = sshll.u32 %s7, 4
      %s99 = int_to_ptr.hbm [resolvable:$true] %s98
      %s100 = sshll.u32 [#allocation16], 4
      %s101 = int_to_ptr.vmem [resolvable:$true] %s100
      %103 = dma.hbm_to_vmem [thread:$0]  %s99, 128, %s101, [#allocation17]
    $region25: #{tpu_custom_call.1} parent=1 // pred_fallthru
      _
    // Predicated region
    $region26: #{tpu_custom_call.1} parent=1 // pred_check
      _
    $region27: #{tpu_custom_call.1} parent=1 // pred_check_branch
      %105 = sbr.rel (0) target = $region29
    $region28: #{tpu_custom_call.1} parent=1 // pred_region
      %107 = vsyncadd [#allocation17], 0
      %s108 = sshll.u32 %s8, 4
      %s109 = int_to_ptr.hbm [resolvable:$true] %s108
      %s110 = sshll.u32 [#allocation18], 4
      %s111 = int_to_ptr.vmem [resolvable:$true] %s110
      %116 = dma.hbm_to_vmem [thread:$0]  %s109, 2048, %s111, [#allocation17], 64, 64, 4
    $region29: #{tpu_custom_call.1} parent=1 // pred_fallthru
      _
    // Predicated region
    $region30: #{tpu_custom_call.1} parent=1 // pred_check
      _
    $region31: #{tpu_custom_call.1} parent=1 // pred_check_branch
      %118 = sbr.rel (0) target = $region33
    $region32: #{tpu_custom_call.1} parent=1 // pred_region
      %120 = vsyncadd [#allocation20], 0
      %s122 = sshll.u32 %s9, 4
      %s123 = int_to_ptr.hbm [resolvable:$true] %s122
      %s124 = sshll.u32 [#allocation19], 4
      %s125 = int_to_ptr.vmem [resolvable:$true] %s124
      %127 = dma.hbm_to_vmem [thread:$0]  %s123, 16, %s125, [#allocation20]
    $region33: #{tpu_custom_call.1} parent=1 // pred_fallthru
      _
    // Predicated region
    $region34: #{tpu_custom_call.1} parent=1 // pred_check
      _
    $region35: #{tpu_custom_call.1} parent=1 // pred_check_branch
      %129 = sbr.rel (0) target = $region37
    $region36: #{tpu_custom_call.1} parent=1 // pred_region
      %131 = dma.done [#allocation8], 768
    $region37: #{tpu_custom_call.1} parent=1 // pred_fallthru
      _
    // Predicated region
    $region38: #{tpu_custom_call.1} parent=1 // pred_check
      _
    $region39: #{tpu_custom_call.1} parent=1 // pred_check_branch
      %133 = sbr.rel (0) target = $region41
    $region40: #{tpu_custom_call.1} parent=1 // pred_region
      %135 = dma.done [#allocation11], 36864
    $region41: #{tpu_custom_call.1} parent=1 // pred_fallthru
      _
    // Predicated region
    $region42: #{tpu_custom_call.1} parent=1 // pred_check
      _
    $region43: #{tpu_custom_call.1} parent=1 // pred_check_branch
      %137 = sbr.rel (0) target = $region45
    $region44: #{tpu_custom_call.1} parent=1 // pred_region
      %139 = dma.done [#allocation11], 36864
    $region45: #{tpu_custom_call.1} parent=1 // pred_fallthru
      _
    // Predicated region
    $region46: #{tpu_custom_call.1} parent=1 // pred_check
      _
    $region47: #{tpu_custom_call.1} parent=1 // pred_check_branch
      %141 = sbr.rel (0) target = $region49
    $region48: #{tpu_custom_call.1} parent=1 // pred_region
      %143 = dma.done [#allocation14], 256
    $region49: #{tpu_custom_call.1} parent=1 // pred_fallthru
      _
    // Predicated region
    $region50: #{tpu_custom_call.1} parent=1 // pred_check
      _
    $region51: #{tpu_custom_call.1} parent=1 // pred_check_branch
      %145 = sbr.rel (0) target = $region53
    $region52: #{tpu_custom_call.1} parent=1 // pred_region
      %147 = dma.done [#allocation14], 128
    $region53: #{tpu_custom_call.1} parent=1 // pred_fallthru
      _
    // Predicated region
    $region54: #{tpu_custom_call.1} parent=1 // pred_check
      _
    $region55: #{tpu_custom_call.1} parent=1 // pred_check_branch
      %149 = sbr.rel (0) target = $region57
    $region56: #{tpu_custom_call.1} parent=1 // pred_region
      %151 = dma.done [#allocation17], 128
    $region57: #{tpu_custom_call.1} parent=1 // pred_fallthru
      _
    // Predicated region
    $region58: #{tpu_custom_call.1} parent=1 // pred_check
      _
    $region59: #{tpu_custom_call.1} parent=1 // pred_check_branch
      %153 = sbr.rel (0) target = $region61
    $region60: #{tpu_custom_call.1} parent=1 // pred_region
      %155 = dma.done [#allocation17], 2048
    $region61: #{tpu_custom_call.1} parent=1 // pred_fallthru
      _
    // Predicated region
    $region62: #{tpu_custom_call.1} parent=1 // pred_check
      _
    $region63: #{tpu_custom_call.1} parent=1 // pred_check_branch
      %157 = sbr.rel (0) target = $region65
    $region64: #{tpu_custom_call.1} parent=1 // pred_region
      %159 = dma.done [#allocation20], 16
    $region65: #{tpu_custom_call.1} parent=1 // pred_fallthru
      _
    %p160 = scmp.eq.s32.totalorder 0, 0
    // Predicated region
    $region66: #{tpu_custom_call.1} parent=1 // pred_check
      %p161 = pneg %p160
    $region67: #{tpu_custom_call.1} parent=1 // pred_check_branch
      %163 = sbr.rel (%p161) target = $region69
    $region68: #{tpu_custom_call.1} parent=1 // pred_region
      %s164 = sld [smem:[#allocation6]]
      %s165 = sld [smem:[#allocation6 + $0x1]]
      %s166 = sld [smem:[#allocation6 + $0x2]]
      %s167 = sld [smem:[#allocation6 + $0x3]]
      %s168 = sld [smem:[#allocation6 + $0x4]]
      %s169 = sld [smem:[#allocation6 + $0x5]]
      %s170 = sld [smem:[#allocation6 + $0x6]]
      %s171 = sld [smem:[#allocation6 + $0x7]]
      %s172 = sshrl.u32 %s164, 3
      %s173 = sand.u32 %s164, 7
      %s174 = smul.u32 %s172, 16
      %s175 = sadd.s32 %s173, %s174
      %s176 = scalar_lea.hbm %s1, %s175
      %s177 = sshll.u32 %s176, 4
      %s178 = int_to_ptr.hbm [resolvable:$true] %s177
      %s179 = sshll.u32 [#allocation2], 4
      %s180 = int_to_ptr.vmem [resolvable:$true] %s179
      %184 = dma.hbm_to_vmem [thread:$0]  %s178, 32, %s180, [#allocation4], 128, 128, 1
      %s185 = sshrl.u32 %s165, 3
      %s186 = sand.u32 %s165, 7
      %s187 = smul.u32 %s185, 16
      %s188 = sadd.s32 %s186, %s187
      %s189 = scalar_lea.hbm %s1, %s188
      %s190 = scalar_lea.vmem [#allocation2], 1
      %s191 = scalar_lea.sflag [#allocation4], 1
      %s192 = sshll.u32 %s189, 4
      %s193 = int_to_ptr.hbm [resolvable:$true] %s192
      %s194 = sshll.u32 %s190, 4
      %s195 = int_to_ptr.vmem [resolvable:$true] %s194
      %199 = dma.hbm_to_vmem [thread:$0]  %s193, 32, %s195, %s191, 128, 128, 1
      %s200 = sshrl.u32 %s166, 3
      %s201 = sand.u32 %s166, 7
      %s202 = smul.u32 %s200, 16
      %s203 = sadd.s32 %s201, %s202
      %s204 = scalar_lea.hbm %s1, %s203
      %s205 = scalar_lea.vmem [#allocation2], 2
      %s206 = scalar_lea.sflag [#allocation4], 2
      %s207 = sshll.u32 %s204, 4
      %s208 = int_to_ptr.hbm [resolvable:$true] %s207
      %s209 = sshll.u32 %s205, 4
      %s210 = int_to_ptr.vmem [resolvable:$true] %s209
      %214 = dma.hbm_to_vmem [thread:$0]  %s208, 32, %s210, %s206, 128, 128, 1
      %s215 = sshrl.u32 %s167, 3
      %s216 = sand.u32 %s167, 7
      %s217 = smul.u32 %s215, 16
      %s218 = sadd.s32 %s216, %s217
      %s219 = scalar_lea.hbm %s1, %s218
      %s220 = scalar_lea.vmem [#allocation2], 3
      %s221 = scalar_lea.sflag [#allocation4], 3
      %s222 = sshll.u32 %s219, 4
      %s223 = int_to_ptr.hbm [resolvable:$true] %s222
      %s224 = sshll.u32 %s220, 4
      %s225 = int_to_ptr.vmem [resolvable:$true] %s224
      %229 = dma.hbm_to_vmem [thread:$0]  %s223, 32, %s225, %s221, 128, 128, 1
      %s230 = sshrl.u32 %s168, 3
      %s231 = sand.u32 %s168, 7
      %s232 = smul.u32 %s230, 16
      %s233 = sadd.s32 %s231, %s232
      %s234 = scalar_lea.hbm %s1, %s233
      %s235 = scalar_lea.vmem [#allocation2], 4
      %s236 = scalar_lea.sflag [#allocation4], 4
      %s237 = sshll.u32 %s234, 4
      %s238 = int_to_ptr.hbm [resolvable:$true] %s237
      %s239 = sshll.u32 %s235, 4
      %s240 = int_to_ptr.vmem [resolvable:$true] %s239
      %244 = dma.hbm_to_vmem [thread:$0]  %s238, 32, %s240, %s236, 128, 128, 1
      %s245 = sshrl.u32 %s169, 3
      %s246 = sand.u32 %s169, 7
      %s247 = smul.u32 %s245, 16
      %s248 = sadd.s32 %s246, %s247
      %s249 = scalar_lea.hbm %s1, %s248
      %s250 = scalar_lea.vmem [#allocation2], 5
      %s251 = scalar_lea.sflag [#allocation4], 5
      %s252 = sshll.u32 %s249, 4
      %s253 = int_to_ptr.hbm [resolvable:$true] %s252
      %s254 = sshll.u32 %s250, 4
      %s255 = int_to_ptr.vmem [resolvable:$true] %s254
      %259 = dma.hbm_to_vmem [thread:$0]  %s253, 32, %s255, %s251, 128, 128, 1
      %s260 = sshrl.u32 %s170, 3
      %s261 = sand.u32 %s170, 7
      %s262 = smul.u32 %s260, 16
      %s263 = sadd.s32 %s261, %s262
      %s264 = scalar_lea.hbm %s1, %s263
      %s265 = scalar_lea.vmem [#allocation2], 6
      %s266 = scalar_lea.sflag [#allocation4], 6
      %s267 = sshll.u32 %s264, 4
      %s268 = int_to_ptr.hbm [resolvable:$true] %s267
      %s269 = sshll.u32 %s265, 4
      %s270 = int_to_ptr.vmem [resolvable:$true] %s269
      %274 = dma.hbm_to_vmem [thread:$0]  %s268, 32, %s270, %s266, 128, 128, 1
      %s275 = sshrl.u32 %s171, 3
      %s276 = sand.u32 %s171, 7
      %s277 = smul.u32 %s275, 16
      %s278 = sadd.s32 %s276, %s277
      %s279 = scalar_lea.hbm %s1, %s278
      %s280 = scalar_lea.vmem [#allocation2], 7
      %s281 = scalar_lea.sflag [#allocation4], 7
      %s282 = sshll.u32 %s279, 4
      %s283 = int_to_ptr.hbm [resolvable:$true] %s282
      %s284 = sshll.u32 %s280, 4
      %s285 = int_to_ptr.vmem [resolvable:$true] %s284
      %289 = dma.hbm_to_vmem [thread:$0]  %s283, 32, %s285, %s281, 128, 128, 1
      %s290 = smul.u32 1, 2
      %s291 = sshll.u32 %s290, 4
      %292 = dma.done [#allocation4], %s291
      %s293 = sshll.u32 %s290, 4
      %294 = dma.done %s191, %s293
      %s295 = sshll.u32 %s290, 4
      %296 = dma.done %s206, %s295
      %s297 = sshll.u32 %s290, 4
      %298 = dma.done %s221, %s297
      %s299 = sshll.u32 %s290, 4
      %300 = dma.done %s236, %s299
      %s301 = sshll.u32 %s290, 4
      %302 = dma.done %s251, %s301
      %s303 = sshll.u32 %s290, 4
      %304 = dma.done %s266, %s303
      %s305 = sshll.u32 %s290, 4
      %306 = dma.done %s281, %s305
      %v307 = vld [vmem:[#allocation2] sm:$0xff]
      %v308 = vld [vmem:[#allocation2 + $0x8] sm:$0xff]
      %v309 = vld [vmem:[#allocation7] sm:$0xff]
      %v310 = vld [vmem:[#allocation7 + $0x8] sm:$0xff]
      %v311 = vpack.c.bf16 %v307, %v307
      %v312 = vpack.c.bf16 %v308, %v308
      %v313 = vld [vmem:[#allocation10] sm:$0xff]
      %v314 = vld [vmem:[#allocation10 + $0x8] sm:$0xff]
      %v315 = vld [vmem:[#allocation10 + $0x10] sm:$0xff]
      %v316 = vld [vmem:[#allocation10 + $0x18] sm:$0xff]
      %v317 = vld [vmem:[#allocation10 + $0x20] sm:$0xff]
      %v318 = vld [vmem:[#allocation10 + $0x28] sm:$0xff]
      %v319 = vld [vmem:[#allocation10 + $0x30] sm:$0xff]
      %v320 = vld [vmem:[#allocation10 + $0x38] sm:$0xff]
      %v321 = vld [vmem:[#allocation10 + $0x40] sm:$0xff]
      %v322 = vld [vmem:[#allocation10 + $0x48] sm:$0xff]
      %v323 = vld [vmem:[#allocation10 + $0x50] sm:$0xff]
      %v324 = vld [vmem:[#allocation10 + $0x58] sm:$0xff]
      %v325 = vld [vmem:[#allocation10 + $0x60] sm:$0xff]
      %v326 = vld [vmem:[#allocation10 + $0x68] sm:$0xff]
      %v327 = vld [vmem:[#allocation10 + $0x70] sm:$0xff]
      %v328 = vld [vmem:[#allocation10 + $0x78] sm:$0xff]
      %v329 = vld [vmem:[#allocation10 + $0x80] sm:$0xff]
      %v330 = vld [vmem:[#allocation10 + $0x88] sm:$0xff]
      %v331 = vld [vmem:[#allocation10 + $0x90] sm:$0xff]
      %v332 = vld [vmem:[#allocation10 + $0x98] sm:$0xff]
      %v333 = vld [vmem:[#allocation10 + $0xa0] sm:$0xff]
      %v334 = vld [vmem:[#allocation10 + $0xa8] sm:$0xff]
      %v335 = vld [vmem:[#allocation10 + $0xb0] sm:$0xff]
      %v336 = vld [vmem:[#allocation10 + $0xb8] sm:$0xff]
      %v337 = vld [vmem:[#allocation10 + $0xc0] sm:$0xff]
      %v338 = vld [vmem:[#allocation10 + $0xc8] sm:$0xff]
      %v339 = vld [vmem:[#allocation10 + $0xd0] sm:$0xff]
      %v340 = vld [vmem:[#allocation10 + $0xd8] sm:$0xff]
      %v341 = vld [vmem:[#allocation10 + $0xe0] sm:$0xff]
      %v342 = vld [vmem:[#allocation10 + $0xe8] sm:$0xff]
      %v343 = vld [vmem:[#allocation10 + $0xf0] sm:$0xff]
      %v344 = vld [vmem:[#allocation10 + $0xf8] sm:$0xff]
      %v345 = vld [vmem:[#allocation10 + $0x100] sm:$0xff]
      %v346 = vld [vmem:[#allocation10 + $0x108] sm:$0xff]
      %v347 = vld [vmem:[#allocation10 + $0x110] sm:$0xff]
      %v348 = vld [vmem:[#allocation10 + $0x118] sm:$0xff]
      %v349 = vld [vmem:[#allocation10 + $0x120] sm:$0xff]
      %v350 = vld [vmem:[#allocation10 + $0x128] sm:$0xff]
      %v351 = vld [vmem:[#allocation10 + $0x130] sm:$0xff]
      %v352 = vld [vmem:[#allocation10 + $0x138] sm:$0xff]
      %v353 = vld [vmem:[#allocation10 + $0x140] sm:$0xff]
      %v354 = vld [vmem:[#allocation10 + $0x148] sm:$0xff]
      %v355 = vld [vmem:[#allocation10 + $0x150] sm:$0xff]
      %v356 = vld [vmem:[#allocation10 + $0x158] sm:$0xff]
      %v357 = vld [vmem:[#allocation10 + $0x160] sm:$0xff]
      %v358 = vld [vmem:[#allocation10 + $0x168] sm:$0xff]
      %v359 = vld [vmem:[#allocation10 + $0x170] sm:$0xff]
      %v360 = vld [vmem:[#allocation10 + $0x178] sm:$0xff]
      %v361 = vld [vmem:[#allocation10 + $0x180] sm:$0xff]
      %v362 = vld [vmem:[#allocation10 + $0x188] sm:$0xff]
      %v363 = vld [vmem:[#allocation10 + $0x190] sm:$0xff]
      %v364 = vld [vmem:[#allocation10 + $0x198] sm:$0xff]
      %v365 = vld [vmem:[#allocation10 + $0x1a0] sm:$0xff]
      %v366 = vld [vmem:[#allocation10 + $0x1a8] sm:$0xff]
      %v367 = vld [vmem:[#allocation10 + $0x1b0] sm:$0xff]
      %v368 = vld [vmem:[#allocation10 + $0x1b8] sm:$0xff]
      %v369 = vld [vmem:[#allocation10 + $0x1c0] sm:$0xff]
      %v370 = vld [vmem:[#allocation10 + $0x1c8] sm:$0xff]
      %v371 = vld [vmem:[#allocation10 + $0x1d0] sm:$0xff]
      %v372 = vld [vmem:[#allocation10 + $0x1d8] sm:$0xff]
      %v373 = vld [vmem:[#allocation10 + $0x1e0] sm:$0xff]
      %v374 = vld [vmem:[#allocation10 + $0x1e8] sm:$0xff]
      %v375 = vld [vmem:[#allocation10 + $0x1f0] sm:$0xff]
      %v376 = vld [vmem:[#allocation10 + $0x1f8] sm:$0xff]
      %v377 = vld [vmem:[#allocation10 + $0x200] sm:$0xff]
      %v378 = vld [vmem:[#allocation10 + $0x208] sm:$0xff]
      %v379 = vld [vmem:[#allocation10 + $0x210] sm:$0xff]
      %v380 = vld [vmem:[#allocation10 + $0x218] sm:$0xff]
      %v381 = vld [vmem:[#allocation10 + $0x220] sm:$0xff]
      %v382 = vld [vmem:[#allocation10 + $0x228] sm:$0xff]
      %v383 = vld [vmem:[#allocation10 + $0x230] sm:$0xff]
      %v384 = vld [vmem:[#allocation10 + $0x238] sm:$0xff]
      %v385 = vld [vmem:[#allocation10 + $0x240] sm:$0xff]
      %v386 = vld [vmem:[#allocation10 + $0x248] sm:$0xff]
      %v387 = vld [vmem:[#allocation10 + $0x250] sm:$0xff]
      %v388 = vld [vmem:[#allocation10 + $0x258] sm:$0xff]
      %v389 = vld [vmem:[#allocation10 + $0x260] sm:$0xff]
      %v390 = vld [vmem:[#allocation10 + $0x268] sm:$0xff]
      %v391 = vld [vmem:[#allocation10 + $0x270] sm:$0xff]
      %v392 = vld [vmem:[#allocation10 + $0x278] sm:$0xff]
      %v393 = vld [vmem:[#allocation10 + $0x280] sm:$0xff]
      %v394 = vld [vmem:[#allocation10 + $0x288] sm:$0xff]
      %v395 = vld [vmem:[#allocation10 + $0x290] sm:$0xff]
      %v396 = vld [vmem:[#allocation10 + $0x298] sm:$0xff]
      %v397 = vld [vmem:[#allocation10 + $0x2a0] sm:$0xff]
      %v398 = vld [vmem:[#allocation10 + $0x2a8] sm:$0xff]
      %v399 = vld [vmem:[#allocation10 + $0x2b0] sm:$0xff]
      %v400 = vld [vmem:[#allocation10 + $0x2b8] sm:$0xff]
      %v401 = vld [vmem:[#allocation10 + $0x2c0] sm:$0xff]
      %v402 = vld [vmem:[#allocation10 + $0x2c8] sm:$0xff]
      %v403 = vld [vmem:[#allocation10 + $0x2d0] sm:$0xff]
      %v404 = vld [vmem:[#allocation10 + $0x2d8] sm:$0xff]
      %v405 = vld [vmem:[#allocation10 + $0x2e0] sm:$0xff]
      %v406 = vld [vmem:[#allocation10 + $0x2e8] sm:$0xff]
      %v407 = vld [vmem:[#allocation10 + $0x2f0] sm:$0xff]
      %v408 = vld [vmem:[#allocation10 + $0x2f8] sm:$0xff]
      %v505 = vunpack.c.l.b16 %v313
      %v506 = vunpack.c.h.b16 %v313
      %v507 = vunpack.c.l.b16 %v314
      %v508 = vunpack.c.h.b16 %v314
      %v509 = vunpack.c.l.b16 %v315
      %v510 = vunpack.c.h.b16 %v315
      %v511 = vunpack.c.l.b16 %v316
      %v512 = vunpack.c.h.b16 %v316
      %v513 = vunpack.c.l.b16 %v317
      %v514 = vunpack.c.h.b16 %v317
      %v515 = vunpack.c.l.b16 %v318
      %v516 = vunpack.c.h.b16 %v318
      %v517 = vunpack.c.l.b16 %v319
      %v518 = vunpack.c.h.b16 %v319
      %v519 = vunpack.c.l.b16 %v320
      %v520 = vunpack.c.h.b16 %v320
      %v521 = vunpack.c.l.b16 %v321
      %v522 = vunpack.c.h.b16 %v321
      %v523 = vunpack.c.l.b16 %v322
      %v524 = vunpack.c.h.b16 %v322
      %v525 = vunpack.c.l.b16 %v323
      %v526 = vunpack.c.h.b16 %v323
      %v527 = vunpack.c.l.b16 %v324
      %v528 = vunpack.c.h.b16 %v324
      %v529 = vunpack.c.l.b16 %v325
      %v530 = vunpack.c.h.b16 %v325
      %v531 = vunpack.c.l.b16 %v326
      %v532 = vunpack.c.h.b16 %v326
      %v533 = vunpack.c.l.b16 %v327
      %v534 = vunpack.c.h.b16 %v327
      %v535 = vunpack.c.l.b16 %v328
      %v536 = vunpack.c.h.b16 %v328
      %v537 = vunpack.c.l.b16 %v329
      %v538 = vunpack.c.h.b16 %v329
      %v539 = vunpack.c.l.b16 %v330
      %v540 = vunpack.c.h.b16 %v330
      %v541 = vunpack.c.l.b16 %v331
      %v542 = vunpack.c.h.b16 %v331
      %v543 = vunpack.c.l.b16 %v332
      %v544 = vunpack.c.h.b16 %v332
      %v545 = vunpack.c.l.b16 %v333
      %v546 = vunpack.c.h.b16 %v333
      %v547 = vunpack.c.l.b16 %v334
      %v548 = vunpack.c.h.b16 %v334
      %v549 = vunpack.c.l.b16 %v335
      %v550 = vunpack.c.h.b16 %v335
      %v551 = vunpack.c.l.b16 %v336
      %v552 = vunpack.c.h.b16 %v336
      %v553 = vunpack.c.l.b16 %v337
      %v554 = vunpack.c.h.b16 %v337
      %v555 = vunpack.c.l.b16 %v338
      %v556 = vunpack.c.h.b16 %v338
      %v557 = vunpack.c.l.b16 %v339
      %v558 = vunpack.c.h.b16 %v339
      %v559 = vunpack.c.l.b16 %v340
      %v560 = vunpack.c.h.b16 %v340
      %v561 = vunpack.c.l.b16 %v341
      %v562 = vunpack.c.h.b16 %v341
      %v563 = vunpack.c.l.b16 %v342
      %v564 = vunpack.c.h.b16 %v342
      %v565 = vunpack.c.l.b16 %v343
      %v566 = vunpack.c.h.b16 %v343
      %v567 = vunpack.c.l.b16 %v344
      %v568 = vunpack.c.h.b16 %v344
      %v569 = vunpack.c.l.b16 %v345
      %v570 = vunpack.c.h.b16 %v345
      %v571 = vunpack.c.l.b16 %v346
      %v572 = vunpack.c.h.b16 %v346
      %v573 = vunpack.c.l.b16 %v347
      %v574 = vunpack.c.h.b16 %v347
      %v575 = vunpack.c.l.b16 %v348
      %v576 = vunpack.c.h.b16 %v348
      %v577 = vunpack.c.l.b16 %v349
      %v578 = vunpack.c.h.b16 %v349
      %v579 = vunpack.c.l.b16 %v350
      %v580 = vunpack.c.h.b16 %v350
      %v581 = vunpack.c.l.b16 %v351
      %v582 = vunpack.c.h.b16 %v351
      %v583 = vunpack.c.l.b16 %v352
      %v584 = vunpack.c.h.b16 %v352
      %v585 = vunpack.c.l.b16 %v353
      %v586 = vunpack.c.h.b16 %v353
      %v587 = vunpack.c.l.b16 %v354
      %v588 = vunpack.c.h.b16 %v354
      %v589 = vunpack.c.l.b16 %v355
      %v590 = vunpack.c.h.b16 %v355
      %v591 = vunpack.c.l.b16 %v356
      %v592 = vunpack.c.h.b16 %v356
      %v593 = vunpack.c.l.b16 %v357
      %v594 = vunpack.c.h.b16 %v357
      %v595 = vunpack.c.l.b16 %v358
      %v596 = vunpack.c.h.b16 %v358
      %v597 = vunpack.c.l.b16 %v359
      %v598 = vunpack.c.h.b16 %v359
      %v599 = vunpack.c.l.b16 %v360
      %v600 = vunpack.c.h.b16 %v360
      %v601 = vunpack.c.l.b16 %v361
      %v602 = vunpack.c.h.b16 %v361
      %v603 = vunpack.c.l.b16 %v362
      %v604 = vunpack.c.h.b16 %v362
      %v605 = vunpack.c.l.b16 %v363
      %v606 = vunpack.c.h.b16 %v363
      %v607 = vunpack.c.l.b16 %v364
      %v608 = vunpack.c.h.b16 %v364
      %v609 = vunpack.c.l.b16 %v365
      %v610 = vunpack.c.h.b16 %v365
      %v611 = vunpack.c.l.b16 %v366
      %v612 = vunpack.c.h.b16 %v366
      %v613 = vunpack.c.l.b16 %v367
      %v614 = vunpack.c.h.b16 %v367
      %v615 = vunpack.c.l.b16 %v368
      %v616 = vunpack.c.h.b16 %v368
      %v617 = vunpack.c.l.b16 %v369
      %v618 = vunpack.c.h.b16 %v369
      %v619 = vunpack.c.l.b16 %v370
      %v620 = vunpack.c.h.b16 %v370
      %v621 = vunpack.c.l.b16 %v371
      %v622 = vunpack.c.h.b16 %v371
      %v623 = vunpack.c.l.b16 %v372
      %v624 = vunpack.c.h.b16 %v372
      %v625 = vunpack.c.l.b16 %v373
      %v626 = vunpack.c.h.b16 %v373
      %v627 = vunpack.c.l.b16 %v374
      %v628 = vunpack.c.h.b16 %v374
      %v629 = vunpack.c.l.b16 %v375
      %v630 = vunpack.c.h.b16 %v375
      %v631 = vunpack.c.l.b16 %v376
      %v632 = vunpack.c.h.b16 %v376
      %v633 = vunpack.c.l.b16 %v377
      %v634 = vunpack.c.h.b16 %v377
      %v635 = vunpack.c.l.b16 %v378
      %v636 = vunpack.c.h.b16 %v378
      %v637 = vunpack.c.l.b16 %v379
      %v638 = vunpack.c.h.b16 %v379
      %v639 = vunpack.c.l.b16 %v380
      %v640 = vunpack.c.h.b16 %v380
      %v641 = vunpack.c.l.b16 %v381
      %v642 = vunpack.c.h.b16 %v381
      %v643 = vunpack.c.l.b16 %v382
      %v644 = vunpack.c.h.b16 %v382
      %v645 = vunpack.c.l.b16 %v383
      %v646 = vunpack.c.h.b16 %v383
      %v647 = vunpack.c.l.b16 %v384
      %v648 = vunpack.c.h.b16 %v384
      %v649 = vunpack.c.l.b16 %v385
      %v650 = vunpack.c.h.b16 %v385
      %v651 = vunpack.c.l.b16 %v386
      %v652 = vunpack.c.h.b16 %v386
      %v653 = vunpack.c.l.b16 %v387
      %v654 = vunpack.c.h.b16 %v387
      %v655 = vunpack.c.l.b16 %v388
      %v656 = vunpack.c.h.b16 %v388
      %v657 = vunpack.c.l.b16 %v389
      %v658 = vunpack.c.h.b16 %v389
      %v659 = vunpack.c.l.b16 %v390
      %v660 = vunpack.c.h.b16 %v390
      %v661 = vunpack.c.l.b16 %v391
      %v662 = vunpack.c.h.b16 %v391
      %v663 = vunpack.c.l.b16 %v392
      %v664 = vunpack.c.h.b16 %v392
      %v665 = vunpack.c.l.b16 %v393
      %v666 = vunpack.c.h.b16 %v393
      %v667 = vunpack.c.l.b16 %v394
      %v668 = vunpack.c.h.b16 %v394
      %v669 = vunpack.c.l.b16 %v395
      %v670 = vunpack.c.h.b16 %v395
      %v671 = vunpack.c.l.b16 %v396
      %v672 = vunpack.c.h.b16 %v396
      %v673 = vunpack.c.l.b16 %v397
      %v674 = vunpack.c.h.b16 %v397
      %v675 = vunpack.c.l.b16 %v398
      %v676 = vunpack.c.h.b16 %v398
      %v677 = vunpack.c.l.b16 %v399
      %v678 = vunpack.c.h.b16 %v399
      %v679 = vunpack.c.l.b16 %v400
      %v680 = vunpack.c.h.b16 %v400
      %v681 = vunpack.c.l.b16 %v401
      %v682 = vunpack.c.h.b16 %v401
      %v683 = vunpack.c.l.b16 %v402
      %v684 = vunpack.c.h.b16 %v402
      %v685 = vunpack.c.l.b16 %v403
      %v686 = vunpack.c.h.b16 %v403
      %v687 = vunpack.c.l.b16 %v404
      %v688 = vunpack.c.h.b16 %v404
      %v689 = vunpack.c.l.b16 %v405
      %v690 = vunpack.c.h.b16 %v405
      %v691 = vunpack.c.l.b16 %v406
      %v692 = vunpack.c.h.b16 %v406
      %v693 = vunpack.c.l.b16 %v407
      %v694 = vunpack.c.h.b16 %v407
      %v695 = vunpack.c.l.b16 %v408
      %v696 = vunpack.c.h.b16 %v408
      %v697 = vpack.c.b16 %v511, %v505
      %v698 = vpack.c.b16 %v512, %v506
      %v699 = vpack.c.b16 %v513, %v507
      %v700 = vpack.c.b16 %v514, %v508
      %v701 = vpack.c.b16 %v515, %v509
      %v702 = vpack.c.b16 %v516, %v510
      %v703 = vpack.c.b16 %v523, %v517
      %v704 = vpack.c.b16 %v524, %v518
      %v705 = vpack.c.b16 %v525, %v519
      %v706 = vpack.c.b16 %v526, %v520
      %v707 = vpack.c.b16 %v527, %v521
      %v708 = vpack.c.b16 %v528, %v522
      %v709 = vpack.c.b16 %v535, %v529
      %v710 = vpack.c.b16 %v536, %v530
      %v711 = vpack.c.b16 %v537, %v531
      %v712 = vpack.c.b16 %v538, %v532
      %v713 = vpack.c.b16 %v539, %v533
      %v714 = vpack.c.b16 %v540, %v534
      %v715 = vpack.c.b16 %v547, %v541
      %v716 = vpack.c.b16 %v548, %v542
      %v717 = vpack.c.b16 %v549, %v543
      %v718 = vpack.c.b16 %v550, %v544
      %v719 = vpack.c.b16 %v551, %v545
      %v720 = vpack.c.b16 %v552, %v546
      %v721 = vpack.c.b16 %v559, %v553
      %v722 = vpack.c.b16 %v560, %v554
      %v723 = vpack.c.b16 %v561, %v555
      %v724 = vpack.c.b16 %v562, %v556
      %v725 = vpack.c.b16 %v563, %v557
      %v726 = vpack.c.b16 %v564, %v558
      %v727 = vpack.c.b16 %v571, %v565
      %v728 = vpack.c.b16 %v572, %v566
      %v729 = vpack.c.b16 %v573, %v567
      %v730 = vpack.c.b16 %v574, %v568
      %v731 = vpack.c.b16 %v575, %v569
      %v732 = vpack.c.b16 %v576, %v570
      %v733 = vpack.c.b16 %v583, %v577
      %v734 = vpack.c.b16 %v584, %v578
      %v735 = vpack.c.b16 %v585, %v579
      %v736 = vpack.c.b16 %v586, %v580
      %v737 = vpack.c.b16 %v587, %v581
      %v738 = vpack.c.b16 %v588, %v582
      %v739 = vpack.c.b16 %v595, %v589
      %v740 = vpack.c.b16 %v596, %v590
      %v741 = vpack.c.b16 %v597, %v591
      %v742 = vpack.c.b16 %v598, %v592
      %v743 = vpack.c.b16 %v599, %v593
      %v744 = vpack.c.b16 %v600, %v594
      %v745 = vpack.c.b16 %v607, %v601
      %v746 = vpack.c.b16 %v608, %v602
      %v747 = vpack.c.b16 %v609, %v603
      %v748 = vpack.c.b16 %v610, %v604
      %v749 = vpack.c.b16 %v611, %v605
      %v750 = vpack.c.b16 %v612, %v606
      %v751 = vpack.c.b16 %v619, %v613
      %v752 = vpack.c.b16 %v620, %v614
      %v753 = vpack.c.b16 %v621, %v615
      %v754 = vpack.c.b16 %v622, %v616
      %v755 = vpack.c.b16 %v623, %v617
      %v756 = vpack.c.b16 %v624, %v618
      %v757 = vpack.c.b16 %v631, %v625
      %v758 = vpack.c.b16 %v632, %v626
      %v759 = vpack.c.b16 %v633, %v627
      %v760 = vpack.c.b16 %v634, %v628
      %v761 = vpack.c.b16 %v635, %v629
      %v762 = vpack.c.b16 %v636, %v630
      %v763 = vpack.c.b16 %v643, %v637
      %v764 = vpack.c.b16 %v644, %v638
      %v765 = vpack.c.b16 %v645, %v639
      %v766 = vpack.c.b16 %v646, %v640
      %v767 = vpack.c.b16 %v647, %v641
      %v768 = vpack.c.b16 %v648, %v642
      %v769 = vpack.c.b16 %v655, %v649
      %v770 = vpack.c.b16 %v656, %v650
      %v771 = vpack.c.b16 %v657, %v651
      %v772 = vpack.c.b16 %v658, %v652
      %v773 = vpack.c.b16 %v659, %v653
      %v774 = vpack.c.b16 %v660, %v654
      %v775 = vpack.c.b16 %v667, %v661
      %v776 = vpack.c.b16 %v668, %v662
      %v777 = vpack.c.b16 %v669, %v663
      %v778 = vpack.c.b16 %v670, %v664
      %v779 = vpack.c.b16 %v671, %v665
      %v780 = vpack.c.b16 %v672, %v666
      %v781 = vpack.c.b16 %v679, %v673
      %v782 = vpack.c.b16 %v680, %v674
      %v783 = vpack.c.b16 %v681, %v675
      %v784 = vpack.c.b16 %v682, %v676
      %v785 = vpack.c.b16 %v683, %v677
      %v786 = vpack.c.b16 %v684, %v678
      %v787 = vpack.c.b16 %v691, %v685
      %v788 = vpack.c.b16 %v692, %v686
      %v789 = vpack.c.b16 %v693, %v687
      %v790 = vpack.c.b16 %v694, %v688
      %v791 = vpack.c.b16 %v695, %v689
      %v792 = vpack.c.b16 %v696, %v690
      %889 = vmatpush.bf16.msra.mxu0 %v739
      %890 = vmatpush.bf16.msra.mxu0 %v733
      %891 = vmatpush.bf16.msra.mxu0 %v727
      %892 = vmatpush.bf16.msra.mxu0 %v721
      %893 = vmatpush.bf16.msra.mxu0 %v715
      %894 = vmatpush.bf16.msra.mxu0 %v709
      %895 = vmatpush.bf16.msra.mxu0 %v703
      %896 = vmatpush.bf16.msra.mxu0 %v697
      %897 = vmatmul.bf16.gmra.mxu0 %v311
      %v898 = vpop.f32.mrf.mxu0
      %v899 = vadd.f32 0.0, %v898
      %v900 = vpop.f32.mrf.mxu0
      %901 = vdwg.mxu0
      %902 = vmatpush.bf16.msra.mxu0 %v787
      %903 = vmatpush.bf16.msra.mxu0 %v781
      %904 = vmatpush.bf16.msra.mxu0 %v775
      %905 = vmatpush.bf16.msra.mxu0 %v769
      %906 = vmatpush.bf16.msra.mxu0 %v763
      %907 = vmatpush.bf16.msra.mxu0 %v757
      %908 = vmatpush.bf16.msra.mxu0 %v751
      %909 = vmatpush.bf16.msra.mxu0 %v745
      %910 = vmatmul.bf16.gmra.mxu0 %v312
      %v911 = vpop.f32.mrf.mxu0
      %v912 = vadd.f32 %v899, %v911
      %v913 = vpop.f32.mrf.mxu0
      %914 = vdwg.mxu0
      %915 = vmatpush.bf16.msra.mxu0 %v740
      %916 = vmatpush.bf16.msra.mxu0 %v734
      %917 = vmatpush.bf16.msra.mxu0 %v728
      %918 = vmatpush.bf16.msra.mxu0 %v722
      %919 = vmatpush.bf16.msra.mxu0 %v716
      %920 = vmatpush.bf16.msra.mxu0 %v710
      %921 = vmatpush.bf16.msra.mxu0 %v704
      %922 = vmatpush.bf16.msra.mxu0 %v698
      %923 = vmatmul.bf16.gmra.mxu0 %v311
      %v924 = vpop.f32.mrf.mxu0
      %v925 = vadd.f32 0.0, %v924
      %v926 = vpop.f32.mrf.mxu0
      %927 = vdwg.mxu0
      %928 = vmatpush.bf16.msra.mxu0 %v788
      %929 = vmatpush.bf16.msra.mxu0 %v782
      %930 = vmatpush.bf16.msra.mxu0 %v776
      %931 = vmatpush.bf16.msra.mxu0 %v770
      %932 = vmatpush.bf16.msra.mxu0 %v764
      %933 = vmatpush.bf16.msra.mxu0 %v758
      %934 = vmatpush.bf16.msra.mxu0 %v752
      %935 = vmatpush.bf16.msra.mxu0 %v746
      %936 = vmatmul.bf16.gmra.mxu0 %v312
      %v937 = vpop.f32.mrf.mxu0
      %v938 = vadd.f32 %v925, %v937
      %v939 = vpop.f32.mrf.mxu0
      %940 = vdwg.mxu0
      %941 = vmatpush.bf16.msra.mxu0 %v741
      %942 = vmatpush.bf16.msra.mxu0 %v735
      %943 = vmatpush.bf16.msra.mxu0 %v729
      %944 = vmatpush.bf16.msra.mxu0 %v723
      %945 = vmatpush.bf16.msra.mxu0 %v717
      %946 = vmatpush.bf16.msra.mxu0 %v711
      %947 = vmatpush.bf16.msra.mxu0 %v705
      %948 = vmatpush.bf16.msra.mxu0 %v699
      %949 = vmatmul.bf16.gmra.mxu0 %v311
      %v950 = vpop.f32.mrf.mxu0
      %v951 = vadd.f32 0.0, %v950
      %v952 = vpop.f32.mrf.mxu0
      %953 = vdwg.mxu0
      %954 = vmatpush.bf16.msra.mxu0 %v789
      %955 = vmatpush.bf16.msra.mxu0 %v783
      %956 = vmatpush.bf16.msra.mxu0 %v777
      %957 = vmatpush.bf16.msra.mxu0 %v771
      %958 = vmatpush.bf16.msra.mxu0 %v765
      %959 = vmatpush.bf16.msra.mxu0 %v759
      %960 = vmatpush.bf16.msra.mxu0 %v753
      %961 = vmatpush.bf16.msra.mxu0 %v747
      %962 = vmatmul.bf16.gmra.mxu0 %v312
      %v963 = vpop.f32.mrf.mxu0
      %v964 = vadd.f32 %v951, %v963
      %v965 = vpop.f32.mrf.mxu0
      %966 = vdwg.mxu0
      %967 = vmatpush.bf16.msra.mxu0 %v742
      %968 = vmatpush.bf16.msra.mxu0 %v736
      %969 = vmatpush.bf16.msra.mxu0 %v730
      %970 = vmatpush.bf16.msra.mxu0 %v724
      %971 = vmatpush.bf16.msra.mxu0 %v718
      %972 = vmatpush.bf16.msra.mxu0 %v712
      %973 = vmatpush.bf16.msra.mxu0 %v706
      %974 = vmatpush.bf16.msra.mxu0 %v700
      %975 = vmatmul.bf16.gmra.mxu0 %v311
      %v976 = vpop.f32.mrf.mxu0
      %v977 = vadd.f32 0.0, %v976
      %v978 = vpop.f32.mrf.mxu0
      %979 = vdwg.mxu0
      %980 = vmatpush.bf16.msra.mxu0 %v790
      %981 = vmatpush.bf16.msra.mxu0 %v784
      %982 = vmatpush.bf16.msra.mxu0 %v778
      %983 = vmatpush.bf16.msra.mxu0 %v772
      %984 = vmatpush.bf16.msra.mxu0 %v766
      %985 = vmatpush.bf16.msra.mxu0 %v760
      %986 = vmatpush.bf16.msra.mxu0 %v754
      %987 = vmatpush.bf16.msra.mxu0 %v748
      %988 = vmatmul.bf16.gmra.mxu0 %v312
      %v989 = vpop.f32.mrf.mxu0
      %v990 = vadd.f32 %v977, %v989
      %v991 = vpop.f32.mrf.mxu0
      %992 = vdwg.mxu0
      %993 = vmatpush.bf16.msra.mxu0 %v743
      %994 = vmatpush.bf16.msra.mxu0 %v737
      %995 = vmatpush.bf16.msra.mxu0 %v731
      %996 = vmatpush.bf16.msra.mxu0 %v725
      %997 = vmatpush.bf16.msra.mxu0 %v719
      %998 = vmatpush.bf16.msra.mxu0 %v713
      %999 = vmatpush.bf16.msra.mxu0 %v707
      %1000 = vmatpush.bf16.msra.mxu0 %v701
      %1001 = vmatmul.bf16.gmra.mxu0 %v311
      %v1002 = vpop.f32.mrf.mxu0
      %v1003 = vadd.f32 0.0, %v1002
      %v1004 = vpop.f32.mrf.mxu0
      %1005 = vdwg.mxu0
      %1006 = vmatpush.bf16.msra.mxu0 %v791
      %1007 = vmatpush.bf16.msra.mxu0 %v785
      %1008 = vmatpush.bf16.msra.mxu0 %v779
      %1009 = vmatpush.bf16.msra.mxu0 %v773
      %1010 = vmatpush.bf16.msra.mxu0 %v767
      %1011 = vmatpush.bf16.msra.mxu0 %v761
      %1012 = vmatpush.bf16.msra.mxu0 %v755
      %1013 = vmatpush.bf16.msra.mxu0 %v749
      %1014 = vmatmul.bf16.gmra.mxu0 %v312
      %v1015 = vpop.f32.mrf.mxu0
      %v1016 = vadd.f32 %v1003, %v1015
      %v1017 = vpop.f32.mrf.mxu0
      %1018 = vdwg.mxu0
      %1019 = vmatpush.bf16.msra.mxu0 %v744
      %1020 = vmatpush.bf16.msra.mxu0 %v738
      %1021 = vmatpush.bf16.msra.mxu0 %v732
      %1022 = vmatpush.bf16.msra.mxu0 %v726
      %1023 = vmatpush.bf16.msra.mxu0 %v720
      %1024 = vmatpush.bf16.msra.mxu0 %v714
      %1025 = vmatpush.bf16.msra.mxu0 %v708
      %1026 = vmatpush.bf16.msra.mxu0 %v702
      %1027 = vmatmul.bf16.gmra.mxu0 %v311
      %v1028 = vpop.f32.mrf.mxu0
      %v1029 = vadd.f32 0.0, %v1028
      %v1030 = vpop.f32.mrf.mxu0
      %1031 = vdwg.mxu0
      %1032 = vmatpush.bf16.msra.mxu0 %v792
      %1033 = vmatpush.bf16.msra.mxu0 %v786
      %1034 = vmatpush.bf16.msra.mxu0 %v780
      %1035 = vmatpush.bf16.msra.mxu0 %v774
      %1036 = vmatpush.bf16.msra.mxu0 %v768
      %1037 = vmatpush.bf16.msra.mxu0 %v762
      %1038 = vmatpush.bf16.msra.mxu0 %v756
      %1039 = vmatpush.bf16.msra.mxu0 %v750
      %1040 = vmatmul.bf16.gmra.mxu0 %v312
      %v1041 = vpop.f32.mrf.mxu0
      %v1042 = vadd.f32 %v1029, %v1041
      %v1043 = vpop.f32.mrf.mxu0
      %1044 = vdwg.mxu0
      %v1045 = vpack.c.bf16 %v309, %v309
      %v1046 = vpack.c.bf16 %v310, %v310
      %v1047 = vld [vmem:[#allocation12] sm:$0xff]
      %v1048 = vld [vmem:[#allocation12 + $0x8] sm:$0xff]
      %v1049 = vld [vmem:[#allocation12 + $0x10] sm:$0xff]
      %v1050 = vld [vmem:[#allocation12 + $0x18] sm:$0xff]
      %v1051 = vld [vmem:[#allocation12 + $0x20] sm:$0xff]
      %v1052 = vld [vmem:[#allocation12 + $0x28] sm:$0xff]
      %v1053 = vld [vmem:[#allocation12 + $0x30] sm:$0xff]
      %v1054 = vld [vmem:[#allocation12 + $0x38] sm:$0xff]
      %v1055 = vld [vmem:[#allocation12 + $0x40] sm:$0xff]
      %v1056 = vld [vmem:[#allocation12 + $0x48] sm:$0xff]
      %v1057 = vld [vmem:[#allocation12 + $0x50] sm:$0xff]
      %v1058 = vld [vmem:[#allocation12 + $0x58] sm:$0xff]
      %v1059 = vld [vmem:[#allocation12 + $0x60] sm:$0xff]
      %v1060 = vld [vmem:[#allocation12 + $0x68] sm:$0xff]
      %v1061 = vld [vmem:[#allocation12 + $0x70] sm:$0xff]
      %v1062 = vld [vmem:[#allocation12 + $0x78] sm:$0xff]
      %v1063 = vld [vmem:[#allocation12 + $0x80] sm:$0xff]
      %v1064 = vld [vmem:[#allocation12 + $0x88] sm:$0xff]
      %v1065 = vld [vmem:[#allocation12 + $0x90] sm:$0xff]
      %v1066 = vld [vmem:[#allocation12 + $0x98] sm:$0xff]
      %v1067 = vld [vmem:[#allocation12 + $0xa0] sm:$0xff]
      %v1068 = vld [vmem:[#allocation12 + $0xa8] sm:$0xff]
      %v1069 = vld [vmem:[#allocation12 + $0xb0] sm:$0xff]
      %v1070 = vld [vmem:[#allocation12 + $0xb8] sm:$0xff]
      %v1071 = vld [vmem:[#allocation12 + $0xc0] sm:$0xff]
      %v1072 = vld [vmem:[#allocation12 + $0xc8] sm:$0xff]
      %v1073 = vld [vmem:[#allocation12 + $0xd0] sm:$0xff]
      %v1074 = vld [vmem:[#allocation12 + $0xd8] sm:$0xff]
      %v1075 = vld [vmem:[#allocation12 + $0xe0] sm:$0xff]
      %v1076 = vld [vmem:[#allocation12 + $0xe8] sm:$0xff]
      %v1077 = vld [vmem:[#allocation12 + $0xf0] sm:$0xff]
      %v1078 = vld [vmem:[#allocation12 + $0xf8] sm:$0xff]
      %v1079 = vld [vmem:[#allocation12 + $0x100] sm:$0xff]
      %v1080 = vld [vmem:[#allocation12 + $0x108] sm:$0xff]
      %v1081 = vld [vmem:[#allocation12 + $0x110] sm:$0xff]
      %v1082 = vld [vmem:[#allocation12 + $0x118] sm:$0xff]
      %v1083 = vld [vmem:[#allocation12 + $0x120] sm:$0xff]
      %v1084 = vld [vmem:[#allocation12 + $0x128] sm:$0xff]
      %v1085 = vld [vmem:[#allocation12 + $0x130] sm:$0xff]
      %v1086 = vld [vmem:[#allocation12 + $0x138] sm:$0xff]
      %v1087 = vld [vmem:[#allocation12 + $0x140] sm:$0xff]
      %v1088 = vld [vmem:[#allocation12 + $0x148] sm:$0xff]
      %v1089 = vld [vmem:[#allocation12 + $0x150] sm:$0xff]
      %v1090 = vld [vmem:[#allocation12 + $0x158] sm:$0xff]
      %v1091 = vld [vmem:[#allocation12 + $0x160] sm:$0xff]
      %v1092 = vld [vmem:[#allocation12 + $0x168] sm:$0xff]
      %v1093 = vld [vmem:[#allocation12 + $0x170] sm:$0xff]
      %v1094 = vld [vmem:[#allocation12 + $0x178] sm:$0xff]
      %v1095 = vld [vmem:[#allocation12 + $0x180] sm:$0xff]
      %v1096 = vld [vmem:[#allocation12 + $0x188] sm:$0xff]
      %v1097 = vld [vmem:[#allocation12 + $0x190] sm:$0xff]
      %v1098 = vld [vmem:[#allocation12 + $0x198] sm:$0xff]
      %v1099 = vld [vmem:[#allocation12 + $0x1a0] sm:$0xff]
      %v1100 = vld [vmem:[#allocation12 + $0x1a8] sm:$0xff]
      %v1101 = vld [vmem:[#allocation12 + $0x1b0] sm:$0xff]
      %v1102 = vld [vmem:[#allocation12 + $0x1b8] sm:$0xff]
      %v1103 = vld [vmem:[#allocation12 + $0x1c0] sm:$0xff]
      %v1104 = vld [vmem:[#allocation12 + $0x1c8] sm:$0xff]
      %v1105 = vld [vmem:[#allocation12 + $0x1d0] sm:$0xff]
      %v1106 = vld [vmem:[#allocation12 + $0x1d8] sm:$0xff]
      %v1107 = vld [vmem:[#allocation12 + $0x1e0] sm:$0xff]
      %v1108 = vld [vmem:[#allocation12 + $0x1e8] sm:$0xff]
      %v1109 = vld [vmem:[#allocation12 + $0x1f0] sm:$0xff]
      %v1110 = vld [vmem:[#allocation12 + $0x1f8] sm:$0xff]
      %v1111 = vld [vmem:[#allocation12 + $0x200] sm:$0xff]
      %v1112 = vld [vmem:[#allocation12 + $0x208] sm:$0xff]
      %v1113 = vld [vmem:[#allocation12 + $0x210] sm:$0xff]
      %v1114 = vld [vmem:[#allocation12 + $0x218] sm:$0xff]
      %v1115 = vld [vmem:[#allocation12 + $0x220] sm:$0xff]
      %v1116 = vld [vmem:[#allocation12 + $0x228] sm:$0xff]
      %v1117 = vld [vmem:[#allocation12 + $0x230] sm:$0xff]
      %v1118 = vld [vmem:[#allocation12 + $0x238] sm:$0xff]
      %v1119 = vld [vmem:[#allocation12 + $0x240] sm:$0xff]
      %v1120 = vld [vmem:[#allocation12 + $0x248] sm:$0xff]
      %v1121 = vld [vmem:[#allocation12 + $0x250] sm:$0xff]
      %v1122 = vld [vmem:[#allocation12 + $0x258] sm:$0xff]
      %v1123 = vld [vmem:[#allocation12 + $0x260] sm:$0xff]
      %v1124 = vld [vmem:[#allocation12 + $0x268] sm:$0xff]
      %v1125 = vld [vmem:[#allocation12 + $0x270] sm:$0xff]
      %v1126 = vld [vmem:[#allocation12 + $0x278] sm:$0xff]
      %v1127 = vld [vmem:[#allocation12 + $0x280] sm:$0xff]
      %v1128 = vld [vmem:[#allocation12 + $0x288] sm:$0xff]
      %v1129 = vld [vmem:[#allocation12 + $0x290] sm:$0xff]
      %v1130 = vld [vmem:[#allocation12 + $0x298] sm:$0xff]
      %v1131 = vld [vmem:[#allocation12 + $0x2a0] sm:$0xff]
      %v1132 = vld [vmem:[#allocation12 + $0x2a8] sm:$0xff]
      %v1133 = vld [vmem:[#allocation12 + $0x2b0] sm:$0xff]
      %v1134 = vld [vmem:[#allocation12 + $0x2b8] sm:$0xff]
      %v1135 = vld [vmem:[#allocation12 + $0x2c0] sm:$0xff]
      %v1136 = vld [vmem:[#allocation12 + $0x2c8] sm:$0xff]
      %v1137 = vld [vmem:[#allocation12 + $0x2d0] sm:$0xff]
      %v1138 = vld [vmem:[#allocation12 + $0x2d8] sm:$0xff]
      %v1139 = vld [vmem:[#allocation12 + $0x2e0] sm:$0xff]
      %v1140 = vld [vmem:[#allocation12 + $0x2e8] sm:$0xff]
      %v1141 = vld [vmem:[#allocation12 + $0x2f0] sm:$0xff]
      %v1142 = vld [vmem:[#allocation12 + $0x2f8] sm:$0xff]
      %v1239 = vunpack.c.l.b16 %v1047
      %v1240 = vunpack.c.h.b16 %v1047
      %v1241 = vunpack.c.l.b16 %v1048
      %v1242 = vunpack.c.h.b16 %v1048
      %v1243 = vunpack.c.l.b16 %v1049
      %v1244 = vunpack.c.h.b16 %v1049
      %v1245 = vunpack.c.l.b16 %v1050
      %v1246 = vunpack.c.h.b16 %v1050
      %v1247 = vunpack.c.l.b16 %v1051
      %v1248 = vunpack.c.h.b16 %v1051
      %v1249 = vunpack.c.l.b16 %v1052
      %v1250 = vunpack.c.h.b16 %v1052
      %v1251 = vunpack.c.l.b16 %v1053
      %v1252 = vunpack.c.h.b16 %v1053
      %v1253 = vunpack.c.l.b16 %v1054
      %v1254 = vunpack.c.h.b16 %v1054
      %v1255 = vunpack.c.l.b16 %v1055
      %v1256 = vunpack.c.h.b16 %v1055
      %v1257 = vunpack.c.l.b16 %v1056
      %v1258 = vunpack.c.h.b16 %v1056
      %v1259 = vunpack.c.l.b16 %v1057
      %v1260 = vunpack.c.h.b16 %v1057
      %v1261 = vunpack.c.l.b16 %v1058
      %v1262 = vunpack.c.h.b16 %v1058
      %v1263 = vunpack.c.l.b16 %v1059
      %v1264 = vunpack.c.h.b16 %v1059
      %v1265 = vunpack.c.l.b16 %v1060
      %v1266 = vunpack.c.h.b16 %v1060
      %v1267 = vunpack.c.l.b16 %v1061
      %v1268 = vunpack.c.h.b16 %v1061
      %v1269 = vunpack.c.l.b16 %v1062
      %v1270 = vunpack.c.h.b16 %v1062
      %v1271 = vunpack.c.l.b16 %v1063
      %v1272 = vunpack.c.h.b16 %v1063
      %v1273 = vunpack.c.l.b16 %v1064
      %v1274 = vunpack.c.h.b16 %v1064
      %v1275 = vunpack.c.l.b16 %v1065
      %v1276 = vunpack.c.h.b16 %v1065
      %v1277 = vunpack.c.l.b16 %v1066
      %v1278 = vunpack.c.h.b16 %v1066
      %v1279 = vunpack.c.l.b16 %v1067
      %v1280 = vunpack.c.h.b16 %v1067
      %v1281 = vunpack.c.l.b16 %v1068
      %v1282 = vunpack.c.h.b16 %v1068
      %v1283 = vunpack.c.l.b16 %v1069
      %v1284 = vunpack.c.h.b16 %v1069
      %v1285 = vunpack.c.l.b16 %v1070
      %v1286 = vunpack.c.h.b16 %v1070
      %v1287 = vunpack.c.l.b16 %v1071
      %v1288 = vunpack.c.h.b16 %v1071
      %v1289 = vunpack.c.l.b16 %v1072
      %v1290 = vunpack.c.h.b16 %v1072
      %v1291 = vunpack.c.l.b16 %v1073
      %v1292 = vunpack.c.h.b16 %v1073
      %v1293 = vunpack.c.l.b16 %v1074
      %v1294 = vunpack.c.h.b16 %v1074
      %v1295 = vunpack.c.l.b16 %v1075
      %v1296 = vunpack.c.h.b16 %v1075
      %v1297 = vunpack.c.l.b16 %v1076
      %v1298 = vunpack.c.h.b16 %v1076
      %v1299 = vunpack.c.l.b16 %v1077
      %v1300 = vunpack.c.h.b16 %v1077
      %v1301 = vunpack.c.l.b16 %v1078
      %v1302 = vunpack.c.h.b16 %v1078
      %v1303 = vunpack.c.l.b16 %v1079
      %v1304 = vunpack.c.h.b16 %v1079
      %v1305 = vunpack.c.l.b16 %v1080
      %v1306 = vunpack.c.h.b16 %v1080
      %v1307 = vunpack.c.l.b16 %v1081
      %v1308 = vunpack.c.h.b16 %v1081
      %v1309 = vunpack.c.l.b16 %v1082
      %v1310 = vunpack.c.h.b16 %v1082
      %v1311 = vunpack.c.l.b16 %v1083
      %v1312 = vunpack.c.h.b16 %v1083
      %v1313 = vunpack.c.l.b16 %v1084
      %v1314 = vunpack.c.h.b16 %v1084
      %v1315 = vunpack.c.l.b16 %v1085
      %v1316 = vunpack.c.h.b16 %v1085
      %v1317 = vunpack.c.l.b16 %v1086
      %v1318 = vunpack.c.h.b16 %v1086
      %v1319 = vunpack.c.l.b16 %v1087
      %v1320 = vunpack.c.h.b16 %v1087
      %v1321 = vunpack.c.l.b16 %v1088
      %v1322 = vunpack.c.h.b16 %v1088
      %v1323 = vunpack.c.l.b16 %v1089
      %v1324 = vunpack.c.h.b16 %v1089
      %v1325 = vunpack.c.l.b16 %v1090
      %v1326 = vunpack.c.h.b16 %v1090
      %v1327 = vunpack.c.l.b16 %v1091
      %v1328 = vunpack.c.h.b16 %v1091
      %v1329 = vunpack.c.l.b16 %v1092
      %v1330 = vunpack.c.h.b16 %v1092
      %v1331 = vunpack.c.l.b16 %v1093
      %v1332 = vunpack.c.h.b16 %v1093
      %v1333 = vunpack.c.l.b16 %v1094
      %v1334 = vunpack.c.h.b16 %v1094
      %v1335 = vunpack.c.l.b16 %v1095
      %v1336 = vunpack.c.h.b16 %v1095
      %v1337 = vunpack.c.l.b16 %v1096
      %v1338 = vunpack.c.h.b16 %v1096
      %v1339 = vunpack.c.l.b16 %v1097
      %v1340 = vunpack.c.h.b16 %v1097
      %v1341 = vunpack.c.l.b16 %v1098
      %v1342 = vunpack.c.h.b16 %v1098
      %v1343 = vunpack.c.l.b16 %v1099
      %v1344 = vunpack.c.h.b16 %v1099
      %v1345 = vunpack.c.l.b16 %v1100
      %v1346 = vunpack.c.h.b16 %v1100
      %v1347 = vunpack.c.l.b16 %v1101
      %v1348 = vunpack.c.h.b16 %v1101
      %v1349 = vunpack.c.l.b16 %v1102
      %v1350 = vunpack.c.h.b16 %v1102
      %v1351 = vunpack.c.l.b16 %v1103
      %v1352 = vunpack.c.h.b16 %v1103
      %v1353 = vunpack.c.l.b16 %v1104
      %v1354 = vunpack.c.h.b16 %v1104
      %v1355 = vunpack.c.l.b16 %v1105
      %v1356 = vunpack.c.h.b16 %v1105
      %v1357 = vunpack.c.l.b16 %v1106
      %v1358 = vunpack.c.h.b16 %v1106
      %v1359 = vunpack.c.l.b16 %v1107
      %v1360 = vunpack.c.h.b16 %v1107
      %v1361 = vunpack.c.l.b16 %v1108
      %v1362 = vunpack.c.h.b16 %v1108
      %v1363 = vunpack.c.l.b16 %v1109
      %v1364 = vunpack.c.h.b16 %v1109
      %v1365 = vunpack.c.l.b16 %v1110
      %v1366 = vunpack.c.h.b16 %v1110
      %v1367 = vunpack.c.l.b16 %v1111
      %v1368 = vunpack.c.h.b16 %v1111
      %v1369 = vunpack.c.l.b16 %v1112
      %v1370 = vunpack.c.h.b16 %v1112
      %v1371 = vunpack.c.l.b16 %v1113
      %v1372 = vunpack.c.h.b16 %v1113
      %v1373 = vunpack.c.l.b16 %v1114
      %v1374 = vunpack.c.h.b16 %v1114
      %v1375 = vunpack.c.l.b16 %v1115
      %v1376 = vunpack.c.h.b16 %v1115
      %v1377 = vunpack.c.l.b16 %v1116
      %v1378 = vunpack.c.h.b16 %v1116
      %v1379 = vunpack.c.l.b16 %v1117
      %v1380 = vunpack.c.h.b16 %v1117
      %v1381 = vunpack.c.l.b16 %v1118
      %v1382 = vunpack.c.h.b16 %v1118
      %v1383 = vunpack.c.l.b16 %v1119
      %v1384 = vunpack.c.h.b16 %v1119
      %v1385 = vunpack.c.l.b16 %v1120
      %v1386 = vunpack.c.h.b16 %v1120
      %v1387 = vunpack.c.l.b16 %v1121
      %v1388 = vunpack.c.h.b16 %v1121
      %v1389 = vunpack.c.l.b16 %v1122
      %v1390 = vunpack.c.h.b16 %v1122
      %v1391 = vunpack.c.l.b16 %v1123
      %v1392 = vunpack.c.h.b16 %v1123
      %v1393 = vunpack.c.l.b16 %v1124
      %v1394 = vunpack.c.h.b16 %v1124
      %v1395 = vunpack.c.l.b16 %v1125
      %v1396 = vunpack.c.h.b16 %v1125
      %v1397 = vunpack.c.l.b16 %v1126
      %v1398 = vunpack.c.h.b16 %v1126
      %v1399 = vunpack.c.l.b16 %v1127
      %v1400 = vunpack.c.h.b16 %v1127
      %v1401 = vunpack.c.l.b16 %v1128
      %v1402 = vunpack.c.h.b16 %v1128
      %v1403 = vunpack.c.l.b16 %v1129
      %v1404 = vunpack.c.h.b16 %v1129
      %v1405 = vunpack.c.l.b16 %v1130
      %v1406 = vunpack.c.h.b16 %v1130
      %v1407 = vunpack.c.l.b16 %v1131
      %v1408 = vunpack.c.h.b16 %v1131
      %v1409 = vunpack.c.l.b16 %v1132
      %v1410 = vunpack.c.h.b16 %v1132
      %v1411 = vunpack.c.l.b16 %v1133
      %v1412 = vunpack.c.h.b16 %v1133
      %v1413 = vunpack.c.l.b16 %v1134
      %v1414 = vunpack.c.h.b16 %v1134
      %v1415 = vunpack.c.l.b16 %v1135
      %v1416 = vunpack.c.h.b16 %v1135
      %v1417 = vunpack.c.l.b16 %v1136
      %v1418 = vunpack.c.h.b16 %v1136
      %v1419 = vunpack.c.l.b16 %v1137
      %v1420 = vunpack.c.h.b16 %v1137
      %v1421 = vunpack.c.l.b16 %v1138
      %v1422 = vunpack.c.h.b16 %v1138
      %v1423 = vunpack.c.l.b16 %v1139
      %v1424 = vunpack.c.h.b16 %v1139
      %v1425 = vunpack.c.l.b16 %v1140
      %v1426 = vunpack.c.h.b16 %v1140
      %v1427 = vunpack.c.l.b16 %v1141
      %v1428 = vunpack.c.h.b16 %v1141
      %v1429 = vunpack.c.l.b16 %v1142
      %v1430 = vunpack.c.h.b16 %v1142
      %v1431 = vpack.c.b16 %v1245, %v1239
      %v1432 = vpack.c.b16 %v1246, %v1240
      %v1433 = vpack.c.b16 %v1247, %v1241
      %v1434 = vpack.c.b16 %v1248, %v1242
      %v1435 = vpack.c.b16 %v1249, %v1243
      %v1436 = vpack.c.b16 %v1250, %v1244
      %v1437 = vpack.c.b16 %v1257, %v1251
      %v1438 = vpack.c.b16 %v1258, %v1252
      %v1439 = vpack.c.b16 %v1259, %v1253
      %v1440 = vpack.c.b16 %v1260, %v1254
      %v1441 = vpack.c.b16 %v1261, %v1255
      %v1442 = vpack.c.b16 %v1262, %v1256
      %v1443 = vpack.c.b16 %v1269, %v1263
      %v1444 = vpack.c.b16 %v1270, %v1264
      %v1445 = vpack.c.b16 %v1271, %v1265
      %v1446 = vpack.c.b16 %v1272, %v1266
      %v1447 = vpack.c.b16 %v1273, %v1267
      %v1448 = vpack.c.b16 %v1274, %v1268
      %v1449 = vpack.c.b16 %v1281, %v1275
      %v1450 = vpack.c.b16 %v1282, %v1276
      %v1451 = vpack.c.b16 %v1283, %v1277
      %v1452 = vpack.c.b16 %v1284, %v1278
      %v1453 = vpack.c.b16 %v1285, %v1279
      %v1454 = vpack.c.b16 %v1286, %v1280
      %v1455 = vpack.c.b16 %v1293, %v1287
      %v1456 = vpack.c.b16 %v1294, %v1288
      %v1457 = vpack.c.b16 %v1295, %v1289
      %v1458 = vpack.c.b16 %v1296, %v1290
      %v1459 = vpack.c.b16 %v1297, %v1291
      %v1460 = vpack.c.b16 %v1298, %v1292
      %v1461 = vpack.c.b16 %v1305, %v1299
      %v1462 = vpack.c.b16 %v1306, %v1300
      %v1463 = vpack.c.b16 %v1307, %v1301
      %v1464 = vpack.c.b16 %v1308, %v1302
      %v1465 = vpack.c.b16 %v1309, %v1303
      %v1466 = vpack.c.b16 %v1310, %v1304
      %v1467 = vpack.c.b16 %v1317, %v1311
      %v1468 = vpack.c.b16 %v1318, %v1312
      %v1469 = vpack.c.b16 %v1319, %v1313
      %v1470 = vpack.c.b16 %v1320, %v1314
      %v1471 = vpack.c.b16 %v1321, %v1315
      %v1472 = vpack.c.b16 %v1322, %v1316
      %v1473 = vpack.c.b16 %v1329, %v1323
      %v1474 = vpack.c.b16 %v1330, %v1324
      %v1475 = vpack.c.b16 %v1331, %v1325
      %v1476 = vpack.c.b16 %v1332, %v1326
      %v1477 = vpack.c.b16 %v1333, %v1327
      %v1478 = vpack.c.b16 %v1334, %v1328
      %v1479 = vpack.c.b16 %v1341, %v1335
      %v1480 = vpack.c.b16 %v1342, %v1336
      %v1481 = vpack.c.b16 %v1343, %v1337
      %v1482 = vpack.c.b16 %v1344, %v1338
      %v1483 = vpack.c.b16 %v1345, %v1339
      %v1484 = vpack.c.b16 %v1346, %v1340
      %v1485 = vpack.c.b16 %v1353, %v1347
      %v1486 = vpack.c.b16 %v1354, %v1348
      %v1487 = vpack.c.b16 %v1355, %v1349
      %v1488 = vpack.c.b16 %v1356, %v1350
      %v1489 = vpack.c.b16 %v1357, %v1351
      %v1490 = vpack.c.b16 %v1358, %v1352
      %v1491 = vpack.c.b16 %v1365, %v1359
      %v1492 = vpack.c.b16 %v1366, %v1360
      %v1493 = vpack.c.b16 %v1367, %v1361
      %v1494 = vpack.c.b16 %v1368, %v1362
      %v1495 = vpack.c.b16 %v1369, %v1363
      %v1496 = vpack.c.b16 %v1370, %v1364
      %v1497 = vpack.c.b16 %v1377, %v1371
      %v1498 = vpack.c.b16 %v1378, %v1372
      %v1499 = vpack.c.b16 %v1379, %v1373
      %v1500 = vpack.c.b16 %v1380, %v1374
      %v1501 = vpack.c.b16 %v1381, %v1375
      %v1502 = vpack.c.b16 %v1382, %v1376
      %v1503 = vpack.c.b16 %v1389, %v1383
      %v1504 = vpack.c.b16 %v1390, %v1384
      %v1505 = vpack.c.b16 %v1391, %v1385
      %v1506 = vpack.c.b16 %v1392, %v1386
      %v1507 = vpack.c.b16 %v1393, %v1387
      %v1508 = vpack.c.b16 %v1394, %v1388
      %v1509 = vpack.c.b16 %v1401, %v1395
      %v1510 = vpack.c.b16 %v1402, %v1396
      %v1511 = vpack.c.b16 %v1403, %v1397
      %v1512 = vpack.c.b16 %v1404, %v1398
      %v1513 = vpack.c.b16 %v1405, %v1399
      %v1514 = vpack.c.b16 %v1406, %v1400
      %v1515 = vpack.c.b16 %v1413, %v1407
      %v1516 = vpack.c.b16 %v1414, %v1408
      %v1517 = vpack.c.b16 %v1415, %v1409
      %v1518 = vpack.c.b16 %v1416, %v1410
      %v1519 = vpack.c.b16 %v1417, %v1411
      %v1520 = vpack.c.b16 %v1418, %v1412
      %v1521 = vpack.c.b16 %v1425, %v1419
      %v1522 = vpack.c.b16 %v1426, %v1420
      %v1523 = vpack.c.b16 %v1427, %v1421
      %v1524 = vpack.c.b16 %v1428, %v1422
      %v1525 = vpack.c.b16 %v1429, %v1423
      %v1526 = vpack.c.b16 %v1430, %v1424
      %1623 = vmatpush.bf16.msra.mxu0 %v1473
      %1624 = vmatpush.bf16.msra.mxu0 %v1467
      %1625 = vmatpush.bf16.msra.mxu0 %v1461
      %1626 = vmatpush.bf16.msra.mxu0 %v1455
      %1627 = vmatpush.bf16.msra.mxu0 %v1449
      %1628 = vmatpush.bf16.msra.mxu0 %v1443
      %1629 = vmatpush.bf16.msra.mxu0 %v1437
      %1630 = vmatpush.bf16.msra.mxu0 %v1431
      %1631 = vmatmul.bf16.gmra.mxu0 %v1045
      %v1632 = vpop.f32.mrf.mxu0
      %v1633 = vadd.f32 0.0, %v1632
      %v1634 = vpop.f32.mrf.mxu0
      %1635 = vdwg.mxu0
      %1636 = vmatpush.bf16.msra.mxu0 %v1521
      %1637 = vmatpush.bf16.msra.mxu0 %v1515
      %1638 = vmatpush.bf16.msra.mxu0 %v1509
      %1639 = vmatpush.bf16.msra.mxu0 %v1503
      %1640 = vmatpush.bf16.msra.mxu0 %v1497
      %1641 = vmatpush.bf16.msra.mxu0 %v1491
      %1642 = vmatpush.bf16.msra.mxu0 %v1485
      %1643 = vmatpush.bf16.msra.mxu0 %v1479
      %1644 = vmatmul.bf16.gmra.mxu0 %v1046
      %v1645 = vpop.f32.mrf.mxu0
      %v1646 = vadd.f32 %v1633, %v1645
      %v1647 = vpop.f32.mrf.mxu0
      %1648 = vdwg.mxu0
      %1649 = vmatpush.bf16.msra.mxu0 %v1474
      %1650 = vmatpush.bf16.msra.mxu0 %v1468
      %1651 = vmatpush.bf16.msra.mxu0 %v1462
      %1652 = vmatpush.bf16.msra.mxu0 %v1456
      %1653 = vmatpush.bf16.msra.mxu0 %v1450
      %1654 = vmatpush.bf16.msra.mxu0 %v1444
      %1655 = vmatpush.bf16.msra.mxu0 %v1438
      %1656 = vmatpush.bf16.msra.mxu0 %v1432
      %1657 = vmatmul.bf16.gmra.mxu0 %v1045
      %v1658 = vpop.f32.mrf.mxu0
      %v1659 = vadd.f32 0.0, %v1658
      %v1660 = vpop.f32.mrf.mxu0
      %1661 = vdwg.mxu0
      %1662 = vmatpush.bf16.msra.mxu0 %v1522
      %1663 = vmatpush.bf16.msra.mxu0 %v1516
      %1664 = vmatpush.bf16.msra.mxu0 %v1510
      %1665 = vmatpush.bf16.msra.mxu0 %v1504
      %1666 = vmatpush.bf16.msra.mxu0 %v1498
      %1667 = vmatpush.bf16.msra.mxu0 %v1492
      %1668 = vmatpush.bf16.msra.mxu0 %v1486
      %1669 = vmatpush.bf16.msra.mxu0 %v1480
      %1670 = vmatmul.bf16.gmra.mxu0 %v1046
      %v1671 = vpop.f32.mrf.mxu0
      %v1672 = vadd.f32 %v1659, %v1671
      %v1673 = vpop.f32.mrf.mxu0
      %1674 = vdwg.mxu0
      %1675 = vmatpush.bf16.msra.mxu0 %v1475
      %1676 = vmatpush.bf16.msra.mxu0 %v1469
      %1677 = vmatpush.bf16.msra.mxu0 %v1463
      %1678 = vmatpush.bf16.msra.mxu0 %v1457
      %1679 = vmatpush.bf16.msra.mxu0 %v1451
      %1680 = vmatpush.bf16.msra.mxu0 %v1445
      %1681 = vmatpush.bf16.msra.mxu0 %v1439
      %1682 = vmatpush.bf16.msra.mxu0 %v1433
      %1683 = vmatmul.bf16.gmra.mxu0 %v1045
      %v1684 = vpop.f32.mrf.mxu0
      %v1685 = vadd.f32 0.0, %v1684
      %v1686 = vpop.f32.mrf.mxu0
      %1687 = vdwg.mxu0
      %1688 = vmatpush.bf16.msra.mxu0 %v1523
      %1689 = vmatpush.bf16.msra.mxu0 %v1517
      %1690 = vmatpush.bf16.msra.mxu0 %v1511
      %1691 = vmatpush.bf16.msra.mxu0 %v1505
      %1692 = vmatpush.bf16.msra.mxu0 %v1499
      %1693 = vmatpush.bf16.msra.mxu0 %v1493
      %1694 = vmatpush.bf16.msra.mxu0 %v1487
      %1695 = vmatpush.bf16.msra.mxu0 %v1481
      %1696 = vmatmul.bf16.gmra.mxu0 %v1046
      %v1697 = vpop.f32.mrf.mxu0
      %v1698 = vadd.f32 %v1685, %v1697
      %v1699 = vpop.f32.mrf.mxu0
      %1700 = vdwg.mxu0
      %1701 = vmatpush.bf16.msra.mxu0 %v1476
      %1702 = vmatpush.bf16.msra.mxu0 %v1470
      %1703 = vmatpush.bf16.msra.mxu0 %v1464
      %1704 = vmatpush.bf16.msra.mxu0 %v1458
      %1705 = vmatpush.bf16.msra.mxu0 %v1452
      %1706 = vmatpush.bf16.msra.mxu0 %v1446
      %1707 = vmatpush.bf16.msra.mxu0 %v1440
      %1708 = vmatpush.bf16.msra.mxu0 %v1434
      %1709 = vmatmul.bf16.gmra.mxu0 %v1045
      %v1710 = vpop.f32.mrf.mxu0
      %v1711 = vadd.f32 0.0, %v1710
      %v1712 = vpop.f32.mrf.mxu0
      %1713 = vdwg.mxu0
      %1714 = vmatpush.bf16.msra.mxu0 %v1524
      %1715 = vmatpush.bf16.msra.mxu0 %v1518
      %1716 = vmatpush.bf16.msra.mxu0 %v1512
      %1717 = vmatpush.bf16.msra.mxu0 %v1506
      %1718 = vmatpush.bf16.msra.mxu0 %v1500
      %1719 = vmatpush.bf16.msra.mxu0 %v1494
      %1720 = vmatpush.bf16.msra.mxu0 %v1488
      %1721 = vmatpush.bf16.msra.mxu0 %v1482
      %1722 = vmatmul.bf16.gmra.mxu0 %v1046
      %v1723 = vpop.f32.mrf.mxu0
      %v1724 = vadd.f32 %v1711, %v1723
      %v1725 = vpop.f32.mrf.mxu0
      %1726 = vdwg.mxu0
      %1727 = vmatpush.bf16.msra.mxu0 %v1477
      %1728 = vmatpush.bf16.msra.mxu0 %v1471
      %1729 = vmatpush.bf16.msra.mxu0 %v1465
      %1730 = vmatpush.bf16.msra.mxu0 %v1459
      %1731 = vmatpush.bf16.msra.mxu0 %v1453
      %1732 = vmatpush.bf16.msra.mxu0 %v1447
      %1733 = vmatpush.bf16.msra.mxu0 %v1441
      %1734 = vmatpush.bf16.msra.mxu0 %v1435
      %1735 = vmatmul.bf16.gmra.mxu0 %v1045
      %v1736 = vpop.f32.mrf.mxu0
      %v1737 = vadd.f32 0.0, %v1736
      %v1738 = vpop.f32.mrf.mxu0
      %1739 = vdwg.mxu0
      %1740 = vmatpush.bf16.msra.mxu0 %v1525
      %1741 = vmatpush.bf16.msra.mxu0 %v1519
      %1742 = vmatpush.bf16.msra.mxu0 %v1513
      %1743 = vmatpush.bf16.msra.mxu0 %v1507
      %1744 = vmatpush.bf16.msra.mxu0 %v1501
      %1745 = vmatpush.bf16.msra.mxu0 %v1495
      %1746 = vmatpush.bf16.msra.mxu0 %v1489
      %1747 = vmatpush.bf16.msra.mxu0 %v1483
      %1748 = vmatmul.bf16.gmra.mxu0 %v1046
      %v1749 = vpop.f32.mrf.mxu0
      %v1750 = vadd.f32 %v1737, %v1749
      %v1751 = vpop.f32.mrf.mxu0
      %1752 = vdwg.mxu0
      %1753 = vmatpush.bf16.msra.mxu0 %v1478
      %1754 = vmatpush.bf16.msra.mxu0 %v1472
      %1755 = vmatpush.bf16.msra.mxu0 %v1466
      %1756 = vmatpush.bf16.msra.mxu0 %v1460
      %1757 = vmatpush.bf16.msra.mxu0 %v1454
      %1758 = vmatpush.bf16.msra.mxu0 %v1448
      %1759 = vmatpush.bf16.msra.mxu0 %v1442
      %1760 = vmatpush.bf16.msra.mxu0 %v1436
      %1761 = vmatmul.bf16.gmra.mxu0 %v1045
      %v1762 = vpop.f32.mrf.mxu0
      %v1763 = vadd.f32 0.0, %v1762
      %v1764 = vpop.f32.mrf.mxu0
      %1765 = vdwg.mxu0
      %1766 = vmatpush.bf16.msra.mxu0 %v1526
      %1767 = vmatpush.bf16.msra.mxu0 %v1520
      %1768 = vmatpush.bf16.msra.mxu0 %v1514
      %1769 = vmatpush.bf16.msra.mxu0 %v1508
      %1770 = vmatpush.bf16.msra.mxu0 %v1502
      %1771 = vmatpush.bf16.msra.mxu0 %v1496
      %1772 = vmatpush.bf16.msra.mxu0 %v1490
      %1773 = vmatpush.bf16.msra.mxu0 %v1484
      %1774 = vmatmul.bf16.gmra.mxu0 %v1046
      %v1775 = vpop.f32.mrf.mxu0
      %v1776 = vadd.f32 %v1763, %v1775
      %v1777 = vpop.f32.mrf.mxu0
      %1778 = vdwg.mxu0
      %v1779 = vadd.f32 %v912, %v1646
      %v1780 = vadd.f32 %v938, %v1672
      %v1781 = vadd.f32 %v964, %v1698
      %v1782 = vadd.f32 %v990, %v1724
      %v1783 = vld [vmem:[#allocation13] ss:$4 sm:$0xf]
      %v1785 = vperm.slane %v1783, 0
      %v1786 = vperm.slane %v1783, 1
      %v1787 = vperm.slane %v1783, 2
      %v1788 = vperm.slane %v1783, 3
      %v1793 = vadd.f32 %v1779, %v1785
      %v1794 = vadd.f32 %v1780, %v1786
      %v1795 = vadd.f32 %v1781, %v1787
      %v1796 = vadd.f32 %v1782, %v1788
      %v1797 = vxor.u32 %v1793, 2147483648
      %v1798 = vxor.u32 %v1794, 2147483648
      %v1799 = vxor.u32 %v1795, 2147483648
      %v1800 = vxor.u32 %v1796, 2147483648
      %v1801 = vmul.f32 %v1797, 1.442695
      %v1802 = vpow.pop %v1801
      %v1803 = vmul.f32 %v1798, 1.442695
      %v1804 = vpow.pop %v1803
      %v1805 = vmul.f32 %v1799, 1.442695
      %v1806 = vpow.pop %v1805
      %v1807 = vmul.f32 %v1800, 1.442695
      %v1808 = vpow.pop %v1807
      %v1809 = vadd.f32 %v1802, 1.0
      %v1810 = vadd.f32 %v1804, 1.0
      %v1811 = vadd.f32 %v1806, 1.0
      %v1812 = vadd.f32 %v1808, 1.0
      %v1813 = vrcp.pop %v1809
      %v1814 = vmul.f32 %v1809, %v1813
      %v1815 = vsub.f32 1.0, %v1814
      %v1816 = vmul.f32 %v1813, %v1815
      %v1817 = vadd.f32 %v1813, %v1816
      %vm1818 = vweird.f32 %v1809
      %vm1819 = vweird.f32 %v1813
      %vm1820 = vmor %vm1818, %vm1819
      %v1821 = vsel %vm1820, %v1813, %v1817
      %v1822 = vand.u32 2147483647, %v1809
      %vm1823 = vcmp.eq.f32.partialorder %v1822, 8.507059e+37
      %v1824 = vand.u32 %v1809, 2147483648
      %v1825 = vor.u32 1.1754944e-38, %v1824
      %v1826 = vsel %vm1823, %v1825, %v1821
      %v1827 = vmul.f32 1.0, %v1826
      %v1828 = vrcp.pop %v1810
      %v1829 = vmul.f32 %v1810, %v1828
      %v1830 = vsub.f32 1.0, %v1829
      %v1831 = vmul.f32 %v1828, %v1830
      %v1832 = vadd.f32 %v1828, %v1831
      %vm1833 = vweird.f32 %v1810
      %vm1834 = vweird.f32 %v1828
      %vm1835 = vmor %vm1833, %vm1834
      %v1836 = vsel %vm1835, %v1828, %v1832
      %v1837 = vand.u32 2147483647, %v1810
      %vm1838 = vcmp.eq.f32.partialorder %v1837, 8.507059e+37
      %v1839 = vand.u32 %v1810, 2147483648
      %v1840 = vor.u32 1.1754944e-38, %v1839
      %v1841 = vsel %vm1838, %v1840, %v1836
      %v1842 = vmul.f32 1.0, %v1841
      %v1843 = vrcp.pop %v1811
      %v1844 = vmul.f32 %v1811, %v1843
      %v1845 = vsub.f32 1.0, %v1844
      %v1846 = vmul.f32 %v1843, %v1845
      %v1847 = vadd.f32 %v1843, %v1846
      %vm1848 = vweird.f32 %v1811
      %vm1849 = vweird.f32 %v1843
      %vm1850 = vmor %vm1848, %vm1849
      %v1851 = vsel %vm1850, %v1843, %v1847
      %v1852 = vand.u32 2147483647, %v1811
      %vm1853 = vcmp.eq.f32.partialorder %v1852, 8.507059e+37
      %v1854 = vand.u32 %v1811, 2147483648
      %v1855 = vor.u32 1.1754944e-38, %v1854
      %v1856 = vsel %vm1853, %v1855, %v1851
      %v1857 = vmul.f32 1.0, %v1856
      %v1858 = vrcp.pop %v1812
      %v1859 = vmul.f32 %v1812, %v1858
      %v1860 = vsub.f32 1.0, %v1859
      %v1861 = vmul.f32 %v1858, %v1860
      %v1862 = vadd.f32 %v1858, %v1861
      %vm1863 = vweird.f32 %v1812
      %vm1864 = vweird.f32 %v1858
      %vm1865 = vmor %vm1863, %vm1864
      %v1866 = vsel %vm1865, %v1858, %v1862
      %v1867 = vand.u32 2147483647, %v1812
      %vm1868 = vcmp.eq.f32.partialorder %v1867, 8.507059e+37
      %v1869 = vand.u32 %v1812, 2147483648
      %v1870 = vor.u32 1.1754944e-38, %v1869
      %v1871 = vsel %vm1868, %v1870, %v1866
      %v1872 = vmul.f32 1.0, %v1871
      %v1873 = vld [vmem:[#allocation15] ss:$4 sm:$0x3]
      %v1875 = vperm.slane %v1873, 0
      %v1876 = vperm.slane %v1873, 1
      %v1879 = vadd.f32 %v1016, %v1875
      %v1880 = vadd.f32 %v1042, %v1876
      %v1881 = vld [vmem:[#allocation16] ss:$4 sm:$0x3]
      %v1883 = vperm.slane %v1881, 0
      %v1884 = vperm.slane %v1881, 1
      %v1887 = vadd.f32 %v1750, %v1883
      %v1888 = vadd.f32 %v1776, %v1884
      %v1889 = vmul.f32 %v1827, %v1887
      %v1890 = vmul.f32 %v1842, %v1888
      %v1891 = vadd.f32 %v1879, %v1889
      %v1892 = vadd.f32 %v1880, %v1890
      %v1893 = vtanh.pop %v1891
      %v1894 = vtanh.pop %v1892
      %v1895 = vsub.f32 1.0, %v1857
      %v1896 = vsub.f32 1.0, %v1872
      %v1897 = vmul.f32 %v1895, %v1893
      %v1898 = vmul.f32 %v1896, %v1894
      %v1899 = vmul.f32 %v1857, %v309
      %v1900 = vmul.f32 %v1872, %v310
      %v1901 = vadd.f32 %v1897, %v1899
      %v1902 = vadd.f32 %v1898, %v1900
      %1903 = vst [vmem:[#allocation21] sm:$0xff] %v1901
      %1904 = vst [vmem:[#allocation21 + $0x8] sm:$0xff] %v1902
      %s1905 = scalar_lea.vmem [#allocation7], 16
      %v1906 = vld [vmem:[%s1905] sm:$0xff]
      %v1907 = vld [vmem:[%s1905 + $0x8] sm:$0xff]
      %v1908 = vpack.c.bf16 %v1901, %v1901
      %v1909 = vpack.c.bf16 %v1902, %v1902
      %s1910 = scalar_lea.vmem [#allocation10], 768
      %v1911 = vld [vmem:[%s1910] sm:$0xff]
      %v1912 = vld [vmem:[%s1910 + $0x8] sm:$0xff]
      %v1913 = vld [vmem:[%s1910 + $0x10] sm:$0xff]
      %v1914 = vld [vmem:[%s1910 + $0x18] sm:$0xff]
      %v1915 = vld [vmem:[%s1910 + $0x20] sm:$0xff]
      %v1916 = vld [vmem:[%s1910 + $0x28] sm:$0xff]
      %v1917 = vld [vmem:[%s1910 + $0x30] sm:$0xff]
      %v1918 = vld [vmem:[%s1910 + $0x38] sm:$0xff]
      %v1919 = vld [vmem:[%s1910 + $0x40] sm:$0xff]
      %v1920 = vld [vmem:[%s1910 + $0x48] sm:$0xff]
      %v1921 = vld [vmem:[%s1910 + $0x50] sm:$0xff]
      %v1922 = vld [vmem:[%s1910 + $0x58] sm:$0xff]
      %v1923 = vld [vmem:[%s1910 + $0x60] sm:$0xff]
      %v1924 = vld [vmem:[%s1910 + $0x68] sm:$0xff]
      %v1925 = vld [vmem:[%s1910 + $0x70] sm:$0xff]
      %v1926 = vld [vmem:[%s1910 + $0x78] sm:$0xff]
      %v1927 = vld [vmem:[%s1910 + $0x80] sm:$0xff]
      %v1928 = vld [vmem:[%s1910 + $0x88] sm:$0xff]
      %v1929 = vld [vmem:[%s1910 + $0x90] sm:$0xff]
      %v1930 = vld [vmem:[%s1910 + $0x98] sm:$0xff]
      %v1931 = vld [vmem:[%s1910 + $0xa0] sm:$0xff]
      %v1932 = vld [vmem:[%s1910 + $0xa8] sm:$0xff]
      %v1933 = vld [vmem:[%s1910 + $0xb0] sm:$0xff]
      %v1934 = vld [vmem:[%s1910 + $0xb8] sm:$0xff]
      %v1935 = vld [vmem:[%s1910 + $0xc0] sm:$0xff]
      %v1936 = vld [vmem:[%s1910 + $0xc8] sm:$0xff]
      %v1937 = vld [vmem:[%s1910 + $0xd0] sm:$0xff]
      %v1938 = vld [vmem:[%s1910 + $0xd8] sm:$0xff]
      %v1939 = vld [vmem:[%s1910 + $0xe0] sm:$0xff]
      %v1940 = vld [vmem:[%s1910 + $0xe8] sm:$0xff]
      %v1941 = vld [vmem:[%s1910 + $0xf0] sm:$0xff]
      %v1942 = vld [vmem:[%s1910 + $0xf8] sm:$0xff]
      %v1943 = vld [vmem:[%s1910 + $0x100] sm:$0xff]
      %v1944 = vld [vmem:[%s1910 + $0x108] sm:$0xff]
      %v1945 = vld [vmem:[%s1910 + $0x110] sm:$0xff]
      %v1946 = vld [vmem:[%s1910 + $0x118] sm:$0xff]
      %v1947 = vld [vmem:[%s1910 + $0x120] sm:$0xff]
      %v1948 = vld [vmem:[%s1910 + $0x128] sm:$0xff]
      %v1949 = vld [vmem:[%s1910 + $0x130] sm:$0xff]
      %v1950 = vld [vmem:[%s1910 + $0x138] sm:$0xff]
      %v1951 = vld [vmem:[%s1910 + $0x140] sm:$0xff]
      %v1952 = vld [vmem:[%s1910 + $0x148] sm:$0xff]
      %v1953 = vld [vmem:[%s1910 + $0x150] sm:$0xff]
      %v1954 = vld [vmem:[%s1910 + $0x158] sm:$0xff]
      %v1955 = vld [vmem:[%s1910 + $0x160] sm:$0xff]
      %v1956 = vld [vmem:[%s1910 + $0x168] sm:$0xff]
      %v1957 = vld [vmem:[%s1910 + $0x170] sm:$0xff]
      %v1958 = vld [vmem:[%s1910 + $0x178] sm:$0xff]
      %v1959 = vld [vmem:[%s1910 + $0x180] sm:$0xff]
      %v1960 = vld [vmem:[%s1910 + $0x188] sm:$0xff]
      %v1961 = vld [vmem:[%s1910 + $0x190] sm:$0xff]
      %v1962 = vld [vmem:[%s1910 + $0x198] sm:$0xff]
      %v1963 = vld [vmem:[%s1910 + $0x1a0] sm:$0xff]
      %v1964 = vld [vmem:[%s1910 + $0x1a8] sm:$0xff]
      %v1965 = vld [vmem:[%s1910 + $0x1b0] sm:$0xff]
      %v1966 = vld [vmem:[%s1910 + $0x1b8] sm:$0xff]
      %v1967 = vld [vmem:[%s1910 + $0x1c0] sm:$0xff]
      %v1968 = vld [vmem:[%s1910 + $0x1c8] sm:$0xff]
      %v1969 = vld [vmem:[%s1910 + $0x1d0] sm:$0xff]
      %v1970 = vld [vmem:[%s1910 + $0x1d8] sm:$0xff]
      %v1971 = vld [vmem:[%s1910 + $0x1e0] sm:$0xff]
      %v1972 = vld [vmem:[%s1910 + $0x1e8] sm:$0xff]
      %v1973 = vld [vmem:[%s1910 + $0x1f0] sm:$0xff]
      %v1974 = vld [vmem:[%s1910 + $0x1f8] sm:$0xff]
      %v1975 = vld [vmem:[%s1910 + $0x200] sm:$0xff]
      %v1976 = vld [vmem:[%s1910 + $0x208] sm:$0xff]
      %v1977 = vld [vmem:[%s1910 + $0x210] sm:$0xff]
      %v1978 = vld [vmem:[%s1910 + $0x218] sm:$0xff]
      %v1979 = vld [vmem:[%s1910 + $0x220] sm:$0xff]
      %v1980 = vld [vmem:[%s1910 + $0x228] sm:$0xff]
      %v1981 = vld [vmem:[%s1910 + $0x230] sm:$0xff]
      %v1982 = vld [vmem:[%s1910 + $0x238] sm:$0xff]
      %v1983 = vld [vmem:[%s1910 + $0x240] sm:$0xff]
      %v1984 = vld [vmem:[%s1910 + $0x248] sm:$0xff]
      %v1985 = vld [vmem:[%s1910 + $0x250] sm:$0xff]
      %v1986 = vld [vmem:[%s1910 + $0x258] sm:$0xff]
      %v1987 = vld [vmem:[%s1910 + $0x260] sm:$0xff]
      %v1988 = vld [vmem:[%s1910 + $0x268] sm:$0xff]
      %v1989 = vld [vmem:[%s1910 + $0x270] sm:$0xff]
      %v1990 = vld [vmem:[%s1910 + $0x278] sm:$0xff]
      %v1991 = vld [vmem:[%s1910 + $0x280] sm:$0xff]
      %v1992 = vld [vmem:[%s1910 + $0x288] sm:$0xff]
      %v1993 = vld [vmem:[%s1910 + $0x290] sm:$0xff]
      %v1994 = vld [vmem:[%s1910 + $0x298] sm:$0xff]
      %v1995 = vld [vmem:[%s1910 + $0x2a0] sm:$0xff]
      %v1996 = vld [vmem:[%s1910 + $0x2a8] sm:$0xff]
      %v1997 = vld [vmem:[%s1910 + $0x2b0] sm:$0xff]
      %v1998 = vld [vmem:[%s1910 + $0x2b8] sm:$0xff]
      %v1999 = vld [vmem:[%s1910 + $0x2c0] sm:$0xff]
      %v2000 = vld [vmem:[%s1910 + $0x2c8] sm:$0xff]
      %v2001 = vld [vmem:[%s1910 + $0x2d0] sm:$0xff]
      %v2002 = vld [vmem:[%s1910 + $0x2d8] sm:$0xff]
      %v2003 = vld [vmem:[%s1910 + $0x2e0] sm:$0xff]
      %v2004 = vld [vmem:[%s1910 + $0x2e8] sm:$0xff]
      %v2005 = vld [vmem:[%s1910 + $0x2f0] sm:$0xff]
      %v2006 = vld [vmem:[%s1910 + $0x2f8] sm:$0xff]
      %v2103 = vunpack.c.l.b16 %v1911
      %v2104 = vunpack.c.h.b16 %v1911
      %v2105 = vunpack.c.l.b16 %v1912
      %v2106 = vunpack.c.h.b16 %v1912
      %v2107 = vunpack.c.l.b16 %v1913
      %v2108 = vunpack.c.h.b16 %v1913
      %v2109 = vunpack.c.l.b16 %v1914
      %v2110 = vunpack.c.h.b16 %v1914
      %v2111 = vunpack.c.l.b16 %v1915
      %v2112 = vunpack.c.h.b16 %v1915
      %v2113 = vunpack.c.l.b16 %v1916
      %v2114 = vunpack.c.h.b16 %v1916
      %v2115 = vunpack.c.l.b16 %v1917
      %v2116 = vunpack.c.h.b16 %v1917
      %v2117 = vunpack.c.l.b16 %v1918
      %v2118 = vunpack.c.h.b16 %v1918
      %v2119 = vunpack.c.l.b16 %v1919
      %v2120 = vunpack.c.h.b16 %v1919
      %v2121 = vunpack.c.l.b16 %v1920
      %v2122 = vunpack.c.h.b16 %v1920
      %v2123 = vunpack.c.l.b16 %v1921
      %v2124 = vunpack.c.h.b16 %v1921
      %v2125 = vunpack.c.l.b16 %v1922
      %v2126 = vunpack.c.h.b16 %v1922
      %v2127 = vunpack.c.l.b16 %v1923
      %v2128 = vunpack.c.h.b16 %v1923
      %v2129 = vunpack.c.l.b16 %v1924
      %v2130 = vunpack.c.h.b16 %v1924
      %v2131 = vunpack.c.l.b16 %v1925
      %v2132 = vunpack.c.h.b16 %v1925
      %v2133 = vunpack.c.l.b16 %v1926
      %v2134 = vunpack.c.h.b16 %v1926
      %v2135 = vunpack.c.l.b16 %v1927
      %v2136 = vunpack.c.h.b16 %v1927
      %v2137 = vunpack.c.l.b16 %v1928
      %v2138 = vunpack.c.h.b16 %v1928
      %v2139 = vunpack.c.l.b16 %v1929
      %v2140 = vunpack.c.h.b16 %v1929
      %v2141 = vunpack.c.l.b16 %v1930
      %v2142 = vunpack.c.h.b16 %v1930
      %v2143 = vunpack.c.l.b16 %v1931
      %v2144 = vunpack.c.h.b16 %v1931
      %v2145 = vunpack.c.l.b16 %v1932
      %v2146 = vunpack.c.h.b16 %v1932
      %v2147 = vunpack.c.l.b16 %v1933
      %v2148 = vunpack.c.h.b16 %v1933
      %v2149 = vunpack.c.l.b16 %v1934
      %v2150 = vunpack.c.h.b16 %v1934
      %v2151 = vunpack.c.l.b16 %v1935
      %v2152 = vunpack.c.h.b16 %v1935
      %v2153 = vunpack.c.l.b16 %v1936
      %v2154 = vunpack.c.h.b16 %v1936
      %v2155 = vunpack.c.l.b16 %v1937
      %v2156 = vunpack.c.h.b16 %v1937
      %v2157 = vunpack.c.l.b16 %v1938
      %v2158 = vunpack.c.h.b16 %v1938
      %v2159 = vunpack.c.l.b16 %v1939
      %v2160 = vunpack.c.h.b16 %v1939
      %v2161 = vunpack.c.l.b16 %v1940
      %v2162 = vunpack.c.h.b16 %v1940
      %v2163 = vunpack.c.l.b16 %v1941
      %v2164 = vunpack.c.h.b16 %v1941
      %v2165 = vunpack.c.l.b16 %v1942
      %v2166 = vunpack.c.h.b16 %v1942
      %v2167 = vunpack.c.l.b16 %v1943
      %v2168 = vunpack.c.h.b16 %v1943
      %v2169 = vunpack.c.l.b16 %v1944
      %v2170 = vunpack.c.h.b16 %v1944
      %v2171 = vunpack.c.l.b16 %v1945
      %v2172 = vunpack.c.h.b16 %v1945
      %v2173 = vunpack.c.l.b16 %v1946
      %v2174 = vunpack.c.h.b16 %v1946
      %v2175 = vunpack.c.l.b16 %v1947
      %v2176 = vunpack.c.h.b16 %v1947
      %v2177 = vunpack.c.l.b16 %v1948
      %v2178 = vunpack.c.h.b16 %v1948
      %v2179 = vunpack.c.l.b16 %v1949
      %v2180 = vunpack.c.h.b16 %v1949
      %v2181 = vunpack.c.l.b16 %v1950
      %v2182 = vunpack.c.h.b16 %v1950
      %v2183 = vunpack.c.l.b16 %v1951
      %v2184 = vunpack.c.h.b16 %v1951
      %v2185 = vunpack.c.l.b16 %v1952
      %v2186 = vunpack.c.h.b16 %v1952
      %v2187 = vunpack.c.l.b16 %v1953
      %v2188 = vunpack.c.h.b16 %v1953
      %v2189 = vunpack.c.l.b16 %v1954
      %v2190 = vunpack.c.h.b16 %v1954
      %v2191 = vunpack.c.l.b16 %v1955
      %v2192 = vunpack.c.h.b16 %v1955
      %v2193 = vunpack.c.l.b16 %v1956
      %v2194 = vunpack.c.h.b16 %v1956
      %v2195 = vunpack.c.l.b16 %v1957
      %v2196 = vunpack.c.h.b16 %v1957
      %v2197 = vunpack.c.l.b16 %v1958
      %v2198 = vunpack.c.h.b16 %v1958
      %v2199 = vunpack.c.l.b16 %v1959
      %v2200 = vunpack.c.h.b16 %v1959
      %v2201 = vunpack.c.l.b16 %v1960
      %v2202 = vunpack.c.h.b16 %v1960
      %v2203 = vunpack.c.l.b16 %v1961
      %v2204 = vunpack.c.h.b16 %v1961
      %v2205 = vunpack.c.l.b16 %v1962
      %v2206 = vunpack.c.h.b16 %v1962
      %v2207 = vunpack.c.l.b16 %v1963
      %v2208 = vunpack.c.h.b16 %v1963
      %v2209 = vunpack.c.l.b16 %v1964
      %v2210 = vunpack.c.h.b16 %v1964
      %v2211 = vunpack.c.l.b16 %v1965
      %v2212 = vunpack.c.h.b16 %v1965
      %v2213 = vunpack.c.l.b16 %v1966
      %v2214 = vunpack.c.h.b16 %v1966
      %v2215 = vunpack.c.l.b16 %v1967
      %v2216 = vunpack.c.h.b16 %v1967
      %v2217 = vunpack.c.l.b16 %v1968
      %v2218 = vunpack.c.h.b16 %v1968
      %v2219 = vunpack.c.l.b16 %v1969
      %v2220 = vunpack.c.h.b16 %v1969
      %v2221 = vunpack.c.l.b16 %v1970
      %v2222 = vunpack.c.h.b16 %v1970
      %v2223 = vunpack.c.l.b16 %v1971
      %v2224 = vunpack.c.h.b16 %v1971
      %v2225 = vunpack.c.l.b16 %v1972
      %v2226 = vunpack.c.h.b16 %v1972
      %v2227 = vunpack.c.l.b16 %v1973
      %v2228 = vunpack.c.h.b16 %v1973
      %v2229 = vunpack.c.l.b16 %v1974
      %v2230 = vunpack.c.h.b16 %v1974
      %v2231 = vunpack.c.l.b16 %v1975
      %v2232 = vunpack.c.h.b16 %v1975
      %v2233 = vunpack.c.l.b16 %v1976
      %v2234 = vunpack.c.h.b16 %v1976
      %v2235 = vunpack.c.l.b16 %v1977
      %v2236 = vunpack.c.h.b16 %v1977
      %v2237 = vunpack.c.l.b16 %v1978
      %v2238 = vunpack.c.h.b16 %v1978
      %v2239 = vunpack.c.l.b16 %v1979
      %v2240 = vunpack.c.h.b16 %v1979
      %v2241 = vunpack.c.l.b16 %v1980
      %v2242 = vunpack.c.h.b16 %v1980
      %v2243 = vunpack.c.l.b16 %v1981
      %v2244 = vunpack.c.h.b16 %v1981
      %v2245 = vunpack.c.l.b16 %v1982
      %v2246 = vunpack.c.h.b16 %v1982
      %v2247 = vunpack.c.l.b16 %v1983
      %v2248 = vunpack.c.h.b16 %v1983
      %v2249 = vunpack.c.l.b16 %v1984
      %v2250 = vunpack.c.h.b16 %v1984
      %v2251 = vunpack.c.l.b16 %v1985
      %v2252 = vunpack.c.h.b16 %v1985
      %v2253 = vunpack.c.l.b16 %v1986
      %v2254 = vunpack.c.h.b16 %v1986
      %v2255 = vunpack.c.l.b16 %v1987
      %v2256 = vunpack.c.h.b16 %v1987
      %v2257 = vunpack.c.l.b16 %v1988
      %v2258 = vunpack.c.h.b16 %v1988
      %v2259 = vunpack.c.l.b16 %v1989
      %v2260 = vunpack.c.h.b16 %v1989
      %v2261 = vunpack.c.l.b16 %v1990
      %v2262 = vunpack.c.h.b16 %v1990
      %v2263 = vunpack.c.l.b16 %v1991
      %v2264 = vunpack.c.h.b16 %v1991
      %v2265 = vunpack.c.l.b16 %v1992
      %v2266 = vunpack.c.h.b16 %v1992
      %v2267 = vunpack.c.l.b16 %v1993
      %v2268 = vunpack.c.h.b16 %v1993
      %v2269 = vunpack.c.l.b16 %v1994
      %v2270 = vunpack.c.h.b16 %v1994
      %v2271 = vunpack.c.l.b16 %v1995
      %v2272 = vunpack.c.h.b16 %v1995
      %v2273 = vunpack.c.l.b16 %v1996
      %v2274 = vunpack.c.h.b16 %v1996
      %v2275 = vunpack.c.l.b16 %v1997
      %v2276 = vunpack.c.h.b16 %v1997
      %v2277 = vunpack.c.l.b16 %v1998
      %v2278 = vunpack.c.h.b16 %v1998
      %v2279 = vunpack.c.l.b16 %v1999
      %v2280 = vunpack.c.h.b16 %v1999
      %v2281 = vunpack.c.l.b16 %v2000
      %v2282 = vunpack.c.h.b16 %v2000
      %v2283 = vunpack.c.l.b16 %v2001
      %v2284 = vunpack.c.h.b16 %v2001
      %v2285 = vunpack.c.l.b16 %v2002
      %v2286 = vunpack.c.h.b16 %v2002
      %v2287 = vunpack.c.l.b16 %v2003
      %v2288 = vunpack.c.h.b16 %v2003
      %v2289 = vunpack.c.l.b16 %v2004
      %v2290 = vunpack.c.h.b16 %v2004
      %v2291 = vunpack.c.l.b16 %v2005
      %v2292 = vunpack.c.h.b16 %v2005
      %v2293 = vunpack.c.l.b16 %v2006
      %v2294 = vunpack.c.h.b16 %v2006
      %v2295 = vpack.c.b16 %v2109, %v2103
      %v2296 = vpack.c.b16 %v2110, %v2104
      %v2297 = vpack.c.b16 %v2111, %v2105
      %v2298 = vpack.c.b16 %v2112, %v2106
      %v2299 = vpack.c.b16 %v2113, %v2107
      %v2300 = vpack.c.b16 %v2114, %v2108
      %v2301 = vpack.c.b16 %v2121, %v2115
      %v2302 = vpack.c.b16 %v2122, %v2116
      %v2303 = vpack.c.b16 %v2123, %v2117
      %v2304 = vpack.c.b16 %v2124, %v2118
      %v2305 = vpack.c.b16 %v2125, %v2119
      %v2306 = vpack.c.b16 %v2126, %v2120
      %v2307 = vpack.c.b16 %v2133, %v2127
      %v2308 = vpack.c.b16 %v2134, %v2128
      %v2309 = vpack.c.b16 %v2135, %v2129
      %v2310 = vpack.c.b16 %v2136, %v2130
      %v2311 = vpack.c.b16 %v2137, %v2131
      %v2312 = vpack.c.b16 %v2138, %v2132
      %v2313 = vpack.c.b16 %v2145, %v2139
      %v2314 = vpack.c.b16 %v2146, %v2140
      %v2315 = vpack.c.b16 %v2147, %v2141
      %v2316 = vpack.c.b16 %v2148, %v2142
      %v2317 = vpack.c.b16 %v2149, %v2143
      %v2318 = vpack.c.b16 %v2150, %v2144
      %v2319 = vpack.c.b16 %v2157, %v2151
      %v2320 = vpack.c.b16 %v2158, %v2152
      %v2321 = vpack.c.b16 %v2159, %v2153
      %v2322 = vpack.c.b16 %v2160, %v2154
      %v2323 = vpack.c.b16 %v2161, %v2155
      %v2324 = vpack.c.b16 %v2162, %v2156
      %v2325 = vpack.c.b16 %v2169, %v2163
      %v2326 = vpack.c.b16 %v2170, %v2164
      %v2327 = vpack.c.b16 %v2171, %v2165
      %v2328 = vpack.c.b16 %v2172, %v2166
      %v2329 = vpack.c.b16 %v2173, %v2167
      %v2330 = vpack.c.b16 %v2174, %v2168
      %v2331 = vpack.c.b16 %v2181, %v2175
      %v2332 = vpack.c.b16 %v2182, %v2176
      %v2333 = vpack.c.b16 %v2183, %v2177
      %v2334 = vpack.c.b16 %v2184, %v2178
      %v2335 = vpack.c.b16 %v2185, %v2179
      %v2336 = vpack.c.b16 %v2186, %v2180
      %v2337 = vpack.c.b16 %v2193, %v2187
      %v2338 = vpack.c.b16 %v2194, %v2188
      %v2339 = vpack.c.b16 %v2195, %v2189
      %v2340 = vpack.c.b16 %v2196, %v2190
      %v2341 = vpack.c.b16 %v2197, %v2191
      %v2342 = vpack.c.b16 %v2198, %v2192
      %v2343 = vpack.c.b16 %v2205, %v2199
      %v2344 = vpack.c.b16 %v2206, %v2200
      %v2345 = vpack.c.b16 %v2207, %v2201
      %v2346 = vpack.c.b16 %v2208, %v2202
      %v2347 = vpack.c.b16 %v2209, %v2203
      %v2348 = vpack.c.b16 %v2210, %v2204
      %v2349 = vpack.c.b16 %v2217, %v2211
      %v2350 = vpack.c.b16 %v2218, %v2212
      %v2351 = vpack.c.b16 %v2219, %v2213
      %v2352 = vpack.c.b16 %v2220, %v2214
      %v2353 = vpack.c.b16 %v2221, %v2215
      %v2354 = vpack.c.b16 %v2222, %v2216
      %v2355 = vpack.c.b16 %v2229, %v2223
      %v2356 = vpack.c.b16 %v2230, %v2224
      %v2357 = vpack.c.b16 %v2231, %v2225
      %v2358 = vpack.c.b16 %v2232, %v2226
      %v2359 = vpack.c.b16 %v2233, %v2227
      %v2360 = vpack.c.b16 %v2234, %v2228
      %v2361 = vpack.c.b16 %v2241, %v2235
      %v2362 = vpack.c.b16 %v2242, %v2236
      %v2363 = vpack.c.b16 %v2243, %v2237
      %v2364 = vpack.c.b16 %v2244, %v2238
      %v2365 = vpack.c.b16 %v2245, %v2239
      %v2366 = vpack.c.b16 %v2246, %v2240
      %v2367 = vpack.c.b16 %v2253, %v2247
      %v2368 = vpack.c.b16 %v2254, %v2248
      %v2369 = vpack.c.b16 %v2255, %v2249
      %v2370 = vpack.c.b16 %v2256, %v2250
      %v2371 = vpack.c.b16 %v2257, %v2251
      %v2372 = vpack.c.b16 %v2258, %v2252
      %v2373 = vpack.c.b16 %v2265, %v2259
      %v2374 = vpack.c.b16 %v2266, %v2260
      %v2375 = vpack.c.b16 %v2267, %v2261
      %v2376 = vpack.c.b16 %v2268, %v2262
      %v2377 = vpack.c.b16 %v2269, %v2263
      %v2378 = vpack.c.b16 %v2270, %v2264
      %v2379 = vpack.c.b16 %v2277, %v2271
      %v2380 = vpack.c.b16 %v2278, %v2272
      %v2381 = vpack.c.b16 %v2279, %v2273
      %v2382 = vpack.c.b16 %v2280, %v2274
      %v2383 = vpack.c.b16 %v2281, %v2275
      %v2384 = vpack.c.b16 %v2282, %v2276
      %v2385 = vpack.c.b16 %v2289, %v2283
      %v2386 = vpack.c.b16 %v2290, %v2284
      %v2387 = vpack.c.b16 %v2291, %v2285
      %v2388 = vpack.c.b16 %v2292, %v2286
      %v2389 = vpack.c.b16 %v2293, %v2287
      %v2390 = vpack.c.b16 %v2294, %v2288
      %2487 = vmatpush.bf16.msra.mxu0 %v2337
      %2488 = vmatpush.bf16.msra.mxu0 %v2331
      %2489 = vmatpush.bf16.msra.mxu0 %v2325
      %2490 = vmatpush.bf16.msra.mxu0 %v2319
      %2491 = vmatpush.bf16.msra.mxu0 %v2313
      %2492 = vmatpush.bf16.msra.mxu0 %v2307
      %2493 = vmatpush.bf16.msra.mxu0 %v2301
      %2494 = vmatpush.bf16.msra.mxu0 %v2295
      %2495 = vmatmul.bf16.gmra.mxu0 %v1908
      %v2496 = vpop.f32.mrf.mxu0
      %v2497 = vadd.f32 0.0, %v2496
      %v2498 = vpop.f32.mrf.mxu0
      %2499 = vdwg.mxu0
      %2500 = vmatpush.bf16.msra.mxu0 %v2385
      %2501 = vmatpush.bf16.msra.mxu0 %v2379
      %2502 = vmatpush.bf16.msra.mxu0 %v2373
      %2503 = vmatpush.bf16.msra.mxu0 %v2367
      %2504 = vmatpush.bf16.msra.mxu0 %v2361
      %2505 = vmatpush.bf16.msra.mxu0 %v2355
      %2506 = vmatpush.bf16.msra.mxu0 %v2349
      %2507 = vmatpush.bf16.msra.mxu0 %v2343
      %2508 = vmatmul.bf16.gmra.mxu0 %v1909
      %v2509 = vpop.f32.mrf.mxu0
      %v2510 = vadd.f32 %v2497, %v2509
      %v2511 = vpop.f32.mrf.mxu0
      %2512 = vdwg.mxu0
      %2513 = vmatpush.bf16.msra.mxu0 %v2338
      %2514 = vmatpush.bf16.msra.mxu0 %v2332
      %2515 = vmatpush.bf16.msra.mxu0 %v2326
      %2516 = vmatpush.bf16.msra.mxu0 %v2320
      %2517 = vmatpush.bf16.msra.mxu0 %v2314
      %2518 = vmatpush.bf16.msra.mxu0 %v2308
      %2519 = vmatpush.bf16.msra.mxu0 %v2302
      %2520 = vmatpush.bf16.msra.mxu0 %v2296
      %2521 = vmatmul.bf16.gmra.mxu0 %v1908
      %v2522 = vpop.f32.mrf.mxu0
      %v2523 = vadd.f32 0.0, %v2522
      %v2524 = vpop.f32.mrf.mxu0
      %2525 = vdwg.mxu0
      %2526 = vmatpush.bf16.msra.mxu0 %v2386
      %2527 = vmatpush.bf16.msra.mxu0 %v2380
      %2528 = vmatpush.bf16.msra.mxu0 %v2374
      %2529 = vmatpush.bf16.msra.mxu0 %v2368
      %2530 = vmatpush.bf16.msra.mxu0 %v2362
      %2531 = vmatpush.bf16.msra.mxu0 %v2356
      %2532 = vmatpush.bf16.msra.mxu0 %v2350
      %2533 = vmatpush.bf16.msra.mxu0 %v2344
      %2534 = vmatmul.bf16.gmra.mxu0 %v1909
      %v2535 = vpop.f32.mrf.mxu0
      %v2536 = vadd.f32 %v2523, %v2535
      %v2537 = vpop.f32.mrf.mxu0
      %2538 = vdwg.mxu0
      %2539 = vmatpush.bf16.msra.mxu0 %v2339
      %2540 = vmatpush.bf16.msra.mxu0 %v2333
      %2541 = vmatpush.bf16.msra.mxu0 %v2327
      %2542 = vmatpush.bf16.msra.mxu0 %v2321
      %2543 = vmatpush.bf16.msra.mxu0 %v2315
      %2544 = vmatpush.bf16.msra.mxu0 %v2309
      %2545 = vmatpush.bf16.msra.mxu0 %v2303
      %2546 = vmatpush.bf16.msra.mxu0 %v2297
      %2547 = vmatmul.bf16.gmra.mxu0 %v1908
      %v2548 = vpop.f32.mrf.mxu0
      %v2549 = vadd.f32 0.0, %v2548
      %v2550 = vpop.f32.mrf.mxu0
      %2551 = vdwg.mxu0
      %2552 = vmatpush.bf16.msra.mxu0 %v2387
      %2553 = vmatpush.bf16.msra.mxu0 %v2381
      %2554 = vmatpush.bf16.msra.mxu0 %v2375
      %2555 = vmatpush.bf16.msra.mxu0 %v2369
      %2556 = vmatpush.bf16.msra.mxu0 %v2363
      %2557 = vmatpush.bf16.msra.mxu0 %v2357
      %2558 = vmatpush.bf16.msra.mxu0 %v2351
      %2559 = vmatpush.bf16.msra.mxu0 %v2345
      %2560 = vmatmul.bf16.gmra.mxu0 %v1909
      %v2561 = vpop.f32.mrf.mxu0
      %v2562 = vadd.f32 %v2549, %v2561
      %v2563 = vpop.f32.mrf.mxu0
      %2564 = vdwg.mxu0
      %2565 = vmatpush.bf16.msra.mxu0 %v2340
      %2566 = vmatpush.bf16.msra.mxu0 %v2334
      %2567 = vmatpush.bf16.msra.mxu0 %v2328
      %2568 = vmatpush.bf16.msra.mxu0 %v2322
      %2569 = vmatpush.bf16.msra.mxu0 %v2316
      %2570 = vmatpush.bf16.msra.mxu0 %v2310
      %2571 = vmatpush.bf16.msra.mxu0 %v2304
      %2572 = vmatpush.bf16.msra.mxu0 %v2298
      %2573 = vmatmul.bf16.gmra.mxu0 %v1908
      %v2574 = vpop.f32.mrf.mxu0
      %v2575 = vadd.f32 0.0, %v2574
      %v2576 = vpop.f32.mrf.mxu0
      %2577 = vdwg.mxu0
      %2578 = vmatpush.bf16.msra.mxu0 %v2388
      %2579 = vmatpush.bf16.msra.mxu0 %v2382
      %2580 = vmatpush.bf16.msra.mxu0 %v2376
      %2581 = vmatpush.bf16.msra.mxu0 %v2370
      %2582 = vmatpush.bf16.msra.mxu0 %v2364
      %2583 = vmatpush.bf16.msra.mxu0 %v2358
      %2584 = vmatpush.bf16.msra.mxu0 %v2352
      %2585 = vmatpush.bf16.msra.mxu0 %v2346
      %2586 = vmatmul.bf16.gmra.mxu0 %v1909
      %v2587 = vpop.f32.mrf.mxu0
      %v2588 = vadd.f32 %v2575, %v2587
      %v2589 = vpop.f32.mrf.mxu0
      %2590 = vdwg.mxu0
      %2591 = vmatpush.bf16.msra.mxu0 %v2341
      %2592 = vmatpush.bf16.msra.mxu0 %v2335
      %2593 = vmatpush.bf16.msra.mxu0 %v2329
      %2594 = vmatpush.bf16.msra.mxu0 %v2323
      %2595 = vmatpush.bf16.msra.mxu0 %v2317
      %2596 = vmatpush.bf16.msra.mxu0 %v2311
      %2597 = vmatpush.bf16.msra.mxu0 %v2305
      %2598 = vmatpush.bf16.msra.mxu0 %v2299
      %2599 = vmatmul.bf16.gmra.mxu0 %v1908
      %v2600 = vpop.f32.mrf.mxu0
      %v2601 = vadd.f32 0.0, %v2600
      %v2602 = vpop.f32.mrf.mxu0
      %2603 = vdwg.mxu0
      %2604 = vmatpush.bf16.msra.mxu0 %v2389
      %2605 = vmatpush.bf16.msra.mxu0 %v2383
      %2606 = vmatpush.bf16.msra.mxu0 %v2377
      %2607 = vmatpush.bf16.msra.mxu0 %v2371
      %2608 = vmatpush.bf16.msra.mxu0 %v2365
      %2609 = vmatpush.bf16.msra.mxu0 %v2359
      %2610 = vmatpush.bf16.msra.mxu0 %v2353
      %2611 = vmatpush.bf16.msra.mxu0 %v2347
      %2612 = vmatmul.bf16.gmra.mxu0 %v1909
      %v2613 = vpop.f32.mrf.mxu0
      %v2614 = vadd.f32 %v2601, %v2613
      %v2615 = vpop.f32.mrf.mxu0
      %2616 = vdwg.mxu0
      %2617 = vmatpush.bf16.msra.mxu0 %v2342
      %2618 = vmatpush.bf16.msra.mxu0 %v2336
      %2619 = vmatpush.bf16.msra.mxu0 %v2330
      %2620 = vmatpush.bf16.msra.mxu0 %v2324
      %2621 = vmatpush.bf16.msra.mxu0 %v2318
      %2622 = vmatpush.bf16.msra.mxu0 %v2312
      %2623 = vmatpush.bf16.msra.mxu0 %v2306
      %2624 = vmatpush.bf16.msra.mxu0 %v2300
      %2625 = vmatmul.bf16.gmra.mxu0 %v1908
      %v2626 = vpop.f32.mrf.mxu0
      %v2627 = vadd.f32 0.0, %v2626
      %v2628 = vpop.f32.mrf.mxu0
      %2629 = vdwg.mxu0
      %2630 = vmatpush.bf16.msra.mxu0 %v2390
      %2631 = vmatpush.bf16.msra.mxu0 %v2384
      %2632 = vmatpush.bf16.msra.mxu0 %v2378
      %2633 = vmatpush.bf16.msra.mxu0 %v2372
      %2634 = vmatpush.bf16.msra.mxu0 %v2366
      %2635 = vmatpush.bf16.msra.mxu0 %v2360
      %2636 = vmatpush.bf16.msra.mxu0 %v2354
      %2637 = vmatpush.bf16.msra.mxu0 %v2348
      %2638 = vmatmul.bf16.gmra.mxu0 %v1909
      %v2639 = vpop.f32.mrf.mxu0
      %v2640 = vadd.f32 %v2627, %v2639
      %v2641 = vpop.f32.mrf.mxu0
      %2642 = vdwg.mxu0
      %v2643 = vpack.c.bf16 %v1906, %v1906
      %v2644 = vpack.c.bf16 %v1907, %v1907
      %s2645 = scalar_lea.vmem [#allocation12], 768
      %v2646 = vld [vmem:[%s2645] sm:$0xff]
      %v2647 = vld [vmem:[%s2645 + $0x8] sm:$0xff]
      %v2648 = vld [vmem:[%s2645 + $0x10] sm:$0xff]
      %v2649 = vld [vmem:[%s2645 + $0x18] sm:$0xff]
      %v2650 = vld [vmem:[%s2645 + $0x20] sm:$0xff]
      %v2651 = vld [vmem:[%s2645 + $0x28] sm:$0xff]
      %v2652 = vld [vmem:[%s2645 + $0x30] sm:$0xff]
      %v2653 = vld [vmem:[%s2645 + $0x38] sm:$0xff]
      %v2654 = vld [vmem:[%s2645 + $0x40] sm:$0xff]
      %v2655 = vld [vmem:[%s2645 + $0x48] sm:$0xff]
      %v2656 = vld [vmem:[%s2645 + $0x50] sm:$0xff]
      %v2657 = vld [vmem:[%s2645 + $0x58] sm:$0xff]
      %v2658 = vld [vmem:[%s2645 + $0x60] sm:$0xff]
      %v2659 = vld [vmem:[%s2645 + $0x68] sm:$0xff]
      %v2660 = vld [vmem:[%s2645 + $0x70] sm:$0xff]
      %v2661 = vld [vmem:[%s2645 + $0x78] sm:$0xff]
      %v2662 = vld [vmem:[%s2645 + $0x80] sm:$0xff]
      %v2663 = vld [vmem:[%s2645 + $0x88] sm:$0xff]
      %v2664 = vld [vmem:[%s2645 + $0x90] sm:$0xff]
      %v2665 = vld [vmem:[%s2645 + $0x98] sm:$0xff]
      %v2666 = vld [vmem:[%s2645 + $0xa0] sm:$0xff]
      %v2667 = vld [vmem:[%s2645 + $0xa8] sm:$0xff]
      %v2668 = vld [vmem:[%s2645 + $0xb0] sm:$0xff]
      %v2669 = vld [vmem:[%s2645 + $0xb8] sm:$0xff]
      %v2670 = vld [vmem:[%s2645 + $0xc0] sm:$0xff]
      %v2671 = vld [vmem:[%s2645 + $0xc8] sm:$0xff]
      %v2672 = vld [vmem:[%s2645 + $0xd0] sm:$0xff]
      %v2673 = vld [vmem:[%s2645 + $0xd8] sm:$0xff]
      %v2674 = vld [vmem:[%s2645 + $0xe0] sm:$0xff]
      %v2675 = vld [vmem:[%s2645 + $0xe8] sm:$0xff]
      %v2676 = vld [vmem:[%s2645 + $0xf0] sm:$0xff]
      %v2677 = vld [vmem:[%s2645 + $0xf8] sm:$0xff]
      %v2678 = vld [vmem:[%s2645 + $0x100] sm:$0xff]
      %v2679 = vld [vmem:[%s2645 + $0x108] sm:$0xff]
      %v2680 = vld [vmem:[%s2645 + $0x110] sm:$0xff]
      %v2681 = vld [vmem:[%s2645 + $0x118] sm:$0xff]
      %v2682 = vld [vmem:[%s2645 + $0x120] sm:$0xff]
      %v2683 = vld [vmem:[%s2645 + $0x128] sm:$0xff]
      %v2684 = vld [vmem:[%s2645 + $0x130] sm:$0xff]
      %v2685 = vld [vmem:[%s2645 + $0x138] sm:$0xff]
      %v2686 = vld [vmem:[%s2645 + $0x140] sm:$0xff]
      %v2687 = vld [vmem:[%s2645 + $0x148] sm:$0xff]
      %v2688 = vld [vmem:[%s2645 + $0x150] sm:$0xff]
      %v2689 = vld [vmem:[%s2645 + $0x158] sm:$0xff]
      %v2690 = vld [vmem:[%s2645 + $0x160] sm:$0xff]
      %v2691 = vld [vmem:[%s2645 + $0x168] sm:$0xff]
      %v2692 = vld [vmem:[%s2645 + $0x170] sm:$0xff]
      %v2693 = vld [vmem:[%s2645 + $0x178] sm:$0xff]
      %v2694 = vld [vmem:[%s2645 + $0x180] sm:$0xff]
      %v2695 = vld [vmem:[%s2645 + $0x188] sm:$0xff]
      %v2696 = vld [vmem:[%s2645 + $0x190] sm:$0xff]
      %v2697 = vld [vmem:[%s2645 + $0x198] sm:$0xff]
      %v2698 = vld [vmem:[%s2645 + $0x1a0] sm:$0xff]
      %v2699 = vld [vmem:[%s2645 + $0x1a8] sm:$0xff]
      %v2700 = vld [vmem:[%s2645 + $0x1b0] sm:$0xff]
      %v2701 = vld [vmem:[%s2645 + $0x1b8] sm:$0xff]
      %v2702 = vld [vmem:[%s2645 + $0x1c0] sm:$0xff]
      %v2703 = vld [vmem:[%s2645 + $0x1c8] sm:$0xff]
      %v2704 = vld [vmem:[%s2645 + $0x1d0] sm:$0xff]
      %v2705 = vld [vmem:[%s2645 + $0x1d8] sm:$0xff]
      %v2706 = vld [vmem:[%s2645 + $0x1e0] sm:$0xff]
      %v2707 = vld [vmem:[%s2645 + $0x1e8] sm:$0xff]
      %v2708 = vld [vmem:[%s2645 + $0x1f0] sm:$0xff]
      %v2709 = vld [vmem:[%s2645 + $0x1f8] sm:$0xff]
      %v2710 = vld [vmem:[%s2645 + $0x200] sm:$0xff]
      %v2711 = vld [vmem:[%s2645 + $0x208] sm:$0xff]
      %v2712 = vld [vmem:[%s2645 + $0x210] sm:$0xff]
      %v2713 = vld [vmem:[%s2645 + $0x218] sm:$0xff]
      %v2714 = vld [vmem:[%s2645 + $0x220] sm:$0xff]
      %v2715 = vld [vmem:[%s2645 + $0x228] sm:$0xff]
      %v2716 = vld [vmem:[%s2645 + $0x230] sm:$0xff]
      %v2717 = vld [vmem:[%s2645 + $0x238] sm:$0xff]
      %v2718 = vld [vmem:[%s2645 + $0x240] sm:$0xff]
      %v2719 = vld [vmem:[%s2645 + $0x248] sm:$0xff]
      %v2720 = vld [vmem:[%s2645 + $0x250] sm:$0xff]
      %v2721 = vld [vmem:[%s2645 + $0x258] sm:$0xff]
      %v2722 = vld [vmem:[%s2645 + $0x260] sm:$0xff]
      %v2723 = vld [vmem:[%s2645 + $0x268] sm:$0xff]
      %v2724 = vld [vmem:[%s2645 + $0x270] sm:$0xff]
      %v2725 = vld [vmem:[%s2645 + $0x278] sm:$0xff]
      %v2726 = vld [vmem:[%s2645 + $0x280] sm:$0xff]
      %v2727 = vld [vmem:[%s2645 + $0x288] sm:$0xff]
      %v2728 = vld [vmem:[%s2645 + $0x290] sm:$0xff]
      %v2729 = vld [vmem:[%s2645 + $0x298] sm:$0xff]
      %v2730 = vld [vmem:[%s2645 + $0x2a0] sm:$0xff]
      %v2731 = vld [vmem:[%s2645 + $0x2a8] sm:$0xff]
      %v2732 = vld [vmem:[%s2645 + $0x2b0] sm:$0xff]
      %v2733 = vld [vmem:[%s2645 + $0x2b8] sm:$0xff]
      %v2734 = vld [vmem:[%s2645 + $0x2c0] sm:$0xff]
      %v2735 = vld [vmem:[%s2645 + $0x2c8] sm:$0xff]
      %v2736 = vld [vmem:[%s2645 + $0x2d0] sm:$0xff]
      %v2737 = vld [vmem:[%s2645 + $0x2d8] sm:$0xff]
      %v2738 = vld [vmem:[%s2645 + $0x2e0] sm:$0xff]
      %v2739 = vld [vmem:[%s2645 + $0x2e8] sm:$0xff]
      %v2740 = vld [vmem:[%s2645 + $0x2f0] sm:$0xff]
      %v2741 = vld [vmem:[%s2645 + $0x2f8] sm:$0xff]
      %v2838 = vunpack.c.l.b16 %v2646
      %v2839 = vunpack.c.h.b16 %v2646
      %v2840 = vunpack.c.l.b16 %v2647
      %v2841 = vunpack.c.h.b16 %v2647
      %v2842 = vunpack.c.l.b16 %v2648
      %v2843 = vunpack.c.h.b16 %v2648
      %v2844 = vunpack.c.l.b16 %v2649
      %v2845 = vunpack.c.h.b16 %v2649
      %v2846 = vunpack.c.l.b16 %v2650
      %v2847 = vunpack.c.h.b16 %v2650
      %v2848 = vunpack.c.l.b16 %v2651
      %v2849 = vunpack.c.h.b16 %v2651
      %v2850 = vunpack.c.l.b16 %v2652
      %v2851 = vunpack.c.h.b16 %v2652
      %v2852 = vunpack.c.l.b16 %v2653
      %v2853 = vunpack.c.h.b16 %v2653
      %v2854 = vunpack.c.l.b16 %v2654
      %v2855 = vunpack.c.h.b16 %v2654
      %v2856 = vunpack.c.l.b16 %v2655
      %v2857 = vunpack.c.h.b16 %v2655
      %v2858 = vunpack.c.l.b16 %v2656
      %v2859 = vunpack.c.h.b16 %v2656
      %v2860 = vunpack.c.l.b16 %v2657
      %v2861 = vunpack.c.h.b16 %v2657
      %v2862 = vunpack.c.l.b16 %v2658
      %v2863 = vunpack.c.h.b16 %v2658
      %v2864 = vunpack.c.l.b16 %v2659
      %v2865 = vunpack.c.h.b16 %v2659
      %v2866 = vunpack.c.l.b16 %v2660
      %v2867 = vunpack.c.h.b16 %v2660
      %v2868 = vunpack.c.l.b16 %v2661
      %v2869 = vunpack.c.h.b16 %v2661
      %v2870 = vunpack.c.l.b16 %v2662
      %v2871 = vunpack.c.h.b16 %v2662
      %v2872 = vunpack.c.l.b16 %v2663
      %v2873 = vunpack.c.h.b16 %v2663
      %v2874 = vunpack.c.l.b16 %v2664
      %v2875 = vunpack.c.h.b16 %v2664
      %v2876 = vunpack.c.l.b16 %v2665
      %v2877 = vunpack.c.h.b16 %v2665
      %v2878 = vunpack.c.l.b16 %v2666
      %v2879 = vunpack.c.h.b16 %v2666
      %v2880 = vunpack.c.l.b16 %v2667
      %v2881 = vunpack.c.h.b16 %v2667
      %v2882 = vunpack.c.l.b16 %v2668
      %v2883 = vunpack.c.h.b16 %v2668
      %v2884 = vunpack.c.l.b16 %v2669
      %v2885 = vunpack.c.h.b16 %v2669
      %v2886 = vunpack.c.l.b16 %v2670
      %v2887 = vunpack.c.h.b16 %v2670
      %v2888 = vunpack.c.l.b16 %v2671
      %v2889 = vunpack.c.h.b16 %v2671
      %v2890 = vunpack.c.l.b16 %v2672
      %v2891 = vunpack.c.h.b16 %v2672
      %v2892 = vunpack.c.l.b16 %v2673
      %v2893 = vunpack.c.h.b16 %v2673
      %v2894 = vunpack.c.l.b16 %v2674
      %v2895 = vunpack.c.h.b16 %v2674
      %v2896 = vunpack.c.l.b16 %v2675
      %v2897 = vunpack.c.h.b16 %v2675
      %v2898 = vunpack.c.l.b16 %v2676
      %v2899 = vunpack.c.h.b16 %v2676
      %v2900 = vunpack.c.l.b16 %v2677
      %v2901 = vunpack.c.h.b16 %v2677
      %v2902 = vunpack.c.l.b16 %v2678
      %v2903 = vunpack.c.h.b16 %v2678
      %v2904 = vunpack.c.l.b16 %v2679
      %v2905 = vunpack.c.h.b16 %v2679
      %v2906 = vunpack.c.l.b16 %v2680
      %v2907 = vunpack.c.h.b16 %v2680
      %v2908 = vunpack.c.l.b16 %v2681
      %v2909 = vunpack.c.h.b16 %v2681
      %v2910 = vunpack.c.l.b16 %v2682
      %v2911 = vunpack.c.h.b16 %v2682
      %v2912 = vunpack.c.l.b16 %v2683
      %v2913 = vunpack.c.h.b16 %v2683
      %v2914 = vunpack.c.l.b16 %v2684
      %v2915 = vunpack.c.h.b16 %v2684
      %v2916 = vunpack.c.l.b16 %v2685
      %v2917 = vunpack.c.h.b16 %v2685
      %v2918 = vunpack.c.l.b16 %v2686
      %v2919 = vunpack.c.h.b16 %v2686
      %v2920 = vunpack.c.l.b16 %v2687
      %v2921 = vunpack.c.h.b16 %v2687
      %v2922 = vunpack.c.l.b16 %v2688
      %v2923 = vunpack.c.h.b16 %v2688
      %v2924 = vunpack.c.l.b16 %v2689
      %v2925 = vunpack.c.h.b16 %v2689
      %v2926 = vunpack.c.l.b16 %v2690
      %v2927 = vunpack.c.h.b16 %v2690
      %v2928 = vunpack.c.l.b16 %v2691
      %v2929 = vunpack.c.h.b16 %v2691
      %v2930 = vunpack.c.l.b16 %v2692
      %v2931 = vunpack.c.h.b16 %v2692
      %v2932 = vunpack.c.l.b16 %v2693
      %v2933 = vunpack.c.h.b16 %v2693
      %v2934 = vunpack.c.l.b16 %v2694
      %v2935 = vunpack.c.h.b16 %v2694
      %v2936 = vunpack.c.l.b16 %v2695
      %v2937 = vunpack.c.h.b16 %v2695
      %v2938 = vunpack.c.l.b16 %v2696
      %v2939 = vunpack.c.h.b16 %v2696
      %v2940 = vunpack.c.l.b16 %v2697
      %v2941 = vunpack.c.h.b16 %v2697
      %v2942 = vunpack.c.l.b16 %v2698
      %v2943 = vunpack.c.h.b16 %v2698
      %v2944 = vunpack.c.l.b16 %v2699
      %v2945 = vunpack.c.h.b16 %v2699
      %v2946 = vunpack.c.l.b16 %v2700
      %v2947 = vunpack.c.h.b16 %v2700
      %v2948 = vunpack.c.l.b16 %v2701
      %v2949 = vunpack.c.h.b16 %v2701
      %v2950 = vunpack.c.l.b16 %v2702
      %v2951 = vunpack.c.h.b16 %v2702
      %v2952 = vunpack.c.l.b16 %v2703
      %v2953 = vunpack.c.h.b16 %v2703
      %v2954 = vunpack.c.l.b16 %v2704
      %v2955 = vunpack.c.h.b16 %v2704
      %v2956 = vunpack.c.l.b16 %v2705
      %v2957 = vunpack.c.h.b16 %v2705
      %v2958 = vunpack.c.l.b16 %v2706
      %v2959 = vunpack.c.h.b16 %v2706
      %v2960 = vunpack.c.l.b16 %v2707
      %v2961 = vunpack.c.h.b16 %v2707
      %v2962 = vunpack.c.l.b16 %v2708
      %v2963 = vunpack.c.h.b16 %v2708
      %v2964 = vunpack.c.l.b16 %v2709
      %v2965 = vunpack.c.h.b16 %v2709
      %v2966 = vunpack.c.l.b16 %v2710
      %v2967 = vunpack.c.h.b16 %v2710
      %v2968 = vunpack.c.l.b16 %v2711
      %v2969 = vunpack.c.h.b16 %v2711
      %v2970 = vunpack.c.l.b16 %v2712
      %v2971 = vunpack.c.h.b16 %v2712
      %v2972 = vunpack.c.l.b16 %v2713
      %v2973 = vunpack.c.h.b16 %v2713
      %v2974 = vunpack.c.l.b16 %v2714
      %v2975 = vunpack.c.h.b16 %v2714
      %v2976 = vunpack.c.l.b16 %v2715
      %v2977 = vunpack.c.h.b16 %v2715
      %v2978 = vunpack.c.l.b16 %v2716
      %v2979 = vunpack.c.h.b16 %v2716
      %v2980 = vunpack.c.l.b16 %v2717
      %v2981 = vunpack.c.h.b16 %v2717
      %v2982 = vunpack.c.l.b16 %v2718
      %v2983 = vunpack.c.h.b16 %v2718
      %v2984 = vunpack.c.l.b16 %v2719
      %v2985 = vunpack.c.h.b16 %v2719
      %v2986 = vunpack.c.l.b16 %v2720
      %v2987 = vunpack.c.h.b16 %v2720
      %v2988 = vunpack.c.l.b16 %v2721
      %v2989 = vunpack.c.h.b16 %v2721
      %v2990 = vunpack.c.l.b16 %v2722
      %v2991 = vunpack.c.h.b16 %v2722
      %v2992 = vunpack.c.l.b16 %v2723
      %v2993 = vunpack.c.h.b16 %v2723
      %v2994 = vunpack.c.l.b16 %v2724
      %v2995 = vunpack.c.h.b16 %v2724
      %v2996 = vunpack.c.l.b16 %v2725
      %v2997 = vunpack.c.h.b16 %v2725
      %v2998 = vunpack.c.l.b16 %v2726
      %v2999 = vunpack.c.h.b16 %v2726
      %v3000 = vunpack.c.l.b16 %v2727
      %v3001 = vunpack.c.h.b16 %v2727
      %v3002 = vunpack.c.l.b16 %v2728
      %v3003 = vunpack.c.h.b16 %v2728
      %v3004 = vunpack.c.l.b16 %v2729
      %v3005 = vunpack.c.h.b16 %v2729
      %v3006 = vunpack.c.l.b16 %v2730
      %v3007 = vunpack.c.h.b16 %v2730
      %v3008 = vunpack.c.l.b16 %v2731
      %v3009 = vunpack.c.h.b16 %v2731
      %v3010 = vunpack.c.l.b16 %v2732
      %v3011 = vunpack.c.h.b16 %v2732
      %v3012 = vunpack.c.l.b16 %v2733
      %v3013 = vunpack.c.h.b16 %v2733
      %v3014 = vunpack.c.l.b16 %v2734
      %v3015 = vunpack.c.h.b16 %v2734
      %v3016 = vunpack.c.l.b16 %v2735
      %v3017 = vunpack.c.h.b16 %v2735
      %v3018 = vunpack.c.l.b16 %v2736
      %v3019 = vunpack.c.h.b16 %v2736
      %v3020 = vunpack.c.l.b16 %v2737
      %v3021 = vunpack.c.h.b16 %v2737
      %v3022 = vunpack.c.l.b16 %v2738
      %v3023 = vunpack.c.h.b16 %v2738
      %v3024 = vunpack.c.l.b16 %v2739
      %v3025 = vunpack.c.h.b16 %v2739
      %v3026 = vunpack.c.l.b16 %v2740
      %v3027 = vunpack.c.h.b16 %v2740
      %v3028 = vunpack.c.l.b16 %v2741
      %v3029 = vunpack.c.h.b16 %v2741
      %v3030 = vpack.c.b16 %v2844, %v2838
      %v3031 = vpack.c.b16 %v2845, %v2839
      %v3032 = vpack.c.b16 %v2846, %v2840
      %v3033 = vpack.c.b16 %v2847, %v2841
      %v3034 = vpack.c.b16 %v2848, %v2842
      %v3035 = vpack.c.b16 %v2849, %v2843
      %v3036 = vpack.c.b16 %v2856, %v2850
      %v3037 = vpack.c.b16 %v2857, %v2851
      %v3038 = vpack.c.b16 %v2858, %v2852
      %v3039 = vpack.c.b16 %v2859, %v2853
      %v3040 = vpack.c.b16 %v2860, %v2854
      %v3041 = vpack.c.b16 %v2861, %v2855
      %v3042 = vpack.c.b16 %v2868, %v2862
      %v3043 = vpack.c.b16 %v2869, %v2863
      %v3044 = vpack.c.b16 %v2870, %v2864
      %v3045 = vpack.c.b16 %v2871, %v2865
      %v3046 = vpack.c.b16 %v2872, %v2866
      %v3047 = vpack.c.b16 %v2873, %v2867
      %v3048 = vpack.c.b16 %v2880, %v2874
      %v3049 = vpack.c.b16 %v2881, %v2875
      %v3050 = vpack.c.b16 %v2882, %v2876
      %v3051 = vpack.c.b16 %v2883, %v2877
      %v3052 = vpack.c.b16 %v2884, %v2878
      %v3053 = vpack.c.b16 %v2885, %v2879
      %v3054 = vpack.c.b16 %v2892, %v2886
      %v3055 = vpack.c.b16 %v2893, %v2887
      %v3056 = vpack.c.b16 %v2894, %v2888
      %v3057 = vpack.c.b16 %v2895, %v2889
      %v3058 = vpack.c.b16 %v2896, %v2890
      %v3059 = vpack.c.b16 %v2897, %v2891
      %v3060 = vpack.c.b16 %v2904, %v2898
      %v3061 = vpack.c.b16 %v2905, %v2899
      %v3062 = vpack.c.b16 %v2906, %v2900
      %v3063 = vpack.c.b16 %v2907, %v2901
      %v3064 = vpack.c.b16 %v2908, %v2902
      %v3065 = vpack.c.b16 %v2909, %v2903
      %v3066 = vpack.c.b16 %v2916, %v2910
      %v3067 = vpack.c.b16 %v2917, %v2911
      %v3068 = vpack.c.b16 %v2918, %v2912
      %v3069 = vpack.c.b16 %v2919, %v2913
      %v3070 = vpack.c.b16 %v2920, %v2914
      %v3071 = vpack.c.b16 %v2921, %v2915
      %v3072 = vpack.c.b16 %v2928, %v2922
      %v3073 = vpack.c.b16 %v2929, %v2923
      %v3074 = vpack.c.b16 %v2930, %v2924
      %v3075 = vpack.c.b16 %v2931, %v2925
      %v3076 = vpack.c.b16 %v2932, %v2926
      %v3077 = vpack.c.b16 %v2933, %v2927
      %v3078 = vpack.c.b16 %v2940, %v2934
      %v3079 = vpack.c.b16 %v2941, %v2935
      %v3080 = vpack.c.b16 %v2942, %v2936
      %v3081 = vpack.c.b16 %v2943, %v2937
      %v3082 = vpack.c.b16 %v2944, %v2938
      %v3083 = vpack.c.b16 %v2945, %v2939
      %v3084 = vpack.c.b16 %v2952, %v2946
      %v3085 = vpack.c.b16 %v2953, %v2947
      %v3086 = vpack.c.b16 %v2954, %v2948
      %v3087 = vpack.c.b16 %v2955, %v2949
      %v3088 = vpack.c.b16 %v2956, %v2950
      %v3089 = vpack.c.b16 %v2957, %v2951
      %v3090 = vpack.c.b16 %v2964, %v2958
      %v3091 = vpack.c.b16 %v2965, %v2959
      %v3092 = vpack.c.b16 %v2966, %v2960
      %v3093 = vpack.c.b16 %v2967, %v2961
      %v3094 = vpack.c.b16 %v2968, %v2962
      %v3095 = vpack.c.b16 %v2969, %v2963
      %v3096 = vpack.c.b16 %v2976, %v2970
      %v3097 = vpack.c.b16 %v2977, %v2971
      %v3098 = vpack.c.b16 %v2978, %v2972
      %v3099 = vpack.c.b16 %v2979, %v2973
      %v3100 = vpack.c.b16 %v2980, %v2974
      %v3101 = vpack.c.b16 %v2981, %v2975
      %v3102 = vpack.c.b16 %v2988, %v2982
      %v3103 = vpack.c.b16 %v2989, %v2983
      %v3104 = vpack.c.b16 %v2990, %v2984
      %v3105 = vpack.c.b16 %v2991, %v2985
      %v3106 = vpack.c.b16 %v2992, %v2986
      %v3107 = vpack.c.b16 %v2993, %v2987
      %v3108 = vpack.c.b16 %v3000, %v2994
      %v3109 = vpack.c.b16 %v3001, %v2995
      %v3110 = vpack.c.b16 %v3002, %v2996
      %v3111 = vpack.c.b16 %v3003, %v2997
      %v3112 = vpack.c.b16 %v3004, %v2998
      %v3113 = vpack.c.b16 %v3005, %v2999
      %v3114 = vpack.c.b16 %v3012, %v3006
      %v3115 = vpack.c.b16 %v3013, %v3007
      %v3116 = vpack.c.b16 %v3014, %v3008
      %v3117 = vpack.c.b16 %v3015, %v3009
      %v3118 = vpack.c.b16 %v3016, %v3010
      %v3119 = vpack.c.b16 %v3017, %v3011
      %v3120 = vpack.c.b16 %v3024, %v3018
      %v3121 = vpack.c.b16 %v3025, %v3019
      %v3122 = vpack.c.b16 %v3026, %v3020
      %v3123 = vpack.c.b16 %v3027, %v3021
      %v3124 = vpack.c.b16 %v3028, %v3022
      %v3125 = vpack.c.b16 %v3029, %v3023
      %3222 = vmatpush.bf16.msra.mxu0 %v3072
      %3223 = vmatpush.bf16.msra.mxu0 %v3066
      %3224 = vmatpush.bf16.msra.mxu0 %v3060
      %3225 = vmatpush.bf16.msra.mxu0 %v3054
      %3226 = vmatpush.bf16.msra.mxu0 %v3048
      %3227 = vmatpush.bf16.msra.mxu0 %v3042
      %3228 = vmatpush.bf16.msra.mxu0 %v3036
      %3229 = vmatpush.bf16.msra.mxu0 %v3030
      %3230 = vmatmul.bf16.gmra.mxu0 %v2643
      %v3231 = vpop.f32.mrf.mxu0
      %v3232 = vadd.f32 0.0, %v3231
      %v3233 = vpop.f32.mrf.mxu0
      %3234 = vdwg.mxu0
      %3235 = vmatpush.bf16.msra.mxu0 %v3120
      %3236 = vmatpush.bf16.msra.mxu0 %v3114
      %3237 = vmatpush.bf16.msra.mxu0 %v3108
      %3238 = vmatpush.bf16.msra.mxu0 %v3102
      %3239 = vmatpush.bf16.msra.mxu0 %v3096
      %3240 = vmatpush.bf16.msra.mxu0 %v3090
      %3241 = vmatpush.bf16.msra.mxu0 %v3084
      %3242 = vmatpush.bf16.msra.mxu0 %v3078
      %3243 = vmatmul.bf16.gmra.mxu0 %v2644
      %v3244 = vpop.f32.mrf.mxu0
      %v3245 = vadd.f32 %v3232, %v3244
      %v3246 = vpop.f32.mrf.mxu0
      %3247 = vdwg.mxu0
      %3248 = vmatpush.bf16.msra.mxu0 %v3073
      %3249 = vmatpush.bf16.msra.mxu0 %v3067
      %3250 = vmatpush.bf16.msra.mxu0 %v3061
      %3251 = vmatpush.bf16.msra.mxu0 %v3055
      %3252 = vmatpush.bf16.msra.mxu0 %v3049
      %3253 = vmatpush.bf16.msra.mxu0 %v3043
      %3254 = vmatpush.bf16.msra.mxu0 %v3037
      %3255 = vmatpush.bf16.msra.mxu0 %v3031
      %3256 = vmatmul.bf16.gmra.mxu0 %v2643
      %v3257 = vpop.f32.mrf.mxu0
      %v3258 = vadd.f32 0.0, %v3257
      %v3259 = vpop.f32.mrf.mxu0
      %3260 = vdwg.mxu0
      %3261 = vmatpush.bf16.msra.mxu0 %v3121
      %3262 = vmatpush.bf16.msra.mxu0 %v3115
      %3263 = vmatpush.bf16.msra.mxu0 %v3109
      %3264 = vmatpush.bf16.msra.mxu0 %v3103
      %3265 = vmatpush.bf16.msra.mxu0 %v3097
      %3266 = vmatpush.bf16.msra.mxu0 %v3091
      %3267 = vmatpush.bf16.msra.mxu0 %v3085
      %3268 = vmatpush.bf16.msra.mxu0 %v3079
      %3269 = vmatmul.bf16.gmra.mxu0 %v2644
      %v3270 = vpop.f32.mrf.mxu0
      %v3271 = vadd.f32 %v3258, %v3270
      %v3272 = vpop.f32.mrf.mxu0
      %3273 = vdwg.mxu0
      %3274 = vmatpush.bf16.msra.mxu0 %v3074
      %3275 = vmatpush.bf16.msra.mxu0 %v3068
      %3276 = vmatpush.bf16.msra.mxu0 %v3062
      %3277 = vmatpush.bf16.msra.mxu0 %v3056
      %3278 = vmatpush.bf16.msra.mxu0 %v3050
      %3279 = vmatpush.bf16.msra.mxu0 %v3044
      %3280 = vmatpush.bf16.msra.mxu0 %v3038
      %3281 = vmatpush.bf16.msra.mxu0 %v3032
      %3282 = vmatmul.bf16.gmra.mxu0 %v2643
      %v3283 = vpop.f32.mrf.mxu0
      %v3284 = vadd.f32 0.0, %v3283
      %v3285 = vpop.f32.mrf.mxu0
      %3286 = vdwg.mxu0
      %3287 = vmatpush.bf16.msra.mxu0 %v3122
      %3288 = vmatpush.bf16.msra.mxu0 %v3116
      %3289 = vmatpush.bf16.msra.mxu0 %v3110
      %3290 = vmatpush.bf16.msra.mxu0 %v3104
      %3291 = vmatpush.bf16.msra.mxu0 %v3098
      %3292 = vmatpush.bf16.msra.mxu0 %v3092
      %3293 = vmatpush.bf16.msra.mxu0 %v3086
      %3294 = vmatpush.bf16.msra.mxu0 %v3080
      %3295 = vmatmul.bf16.gmra.mxu0 %v2644
      %v3296 = vpop.f32.mrf.mxu0
      %v3297 = vadd.f32 %v3284, %v3296
      %v3298 = vpop.f32.mrf.mxu0
      %3299 = vdwg.mxu0
      %3300 = vmatpush.bf16.msra.mxu0 %v3075
      %3301 = vmatpush.bf16.msra.mxu0 %v3069
      %3302 = vmatpush.bf16.msra.mxu0 %v3063
      %3303 = vmatpush.bf16.msra.mxu0 %v3057
      %3304 = vmatpush.bf16.msra.mxu0 %v3051
      %3305 = vmatpush.bf16.msra.mxu0 %v3045
      %3306 = vmatpush.bf16.msra.mxu0 %v3039
      %3307 = vmatpush.bf16.msra.mxu0 %v3033
      %3308 = vmatmul.bf16.gmra.mxu0 %v2643
      %v3309 = vpop.f32.mrf.mxu0
      %v3310 = vadd.f32 0.0, %v3309
      %v3311 = vpop.f32.mrf.mxu0
      %3312 = vdwg.mxu0
      %3313 = vmatpush.bf16.msra.mxu0 %v3123
      %3314 = vmatpush.bf16.msra.mxu0 %v3117
      %3315 = vmatpush.bf16.msra.mxu0 %v3111
      %3316 = vmatpush.bf16.msra.mxu0 %v3105
      %3317 = vmatpush.bf16.msra.mxu0 %v3099
      %3318 = vmatpush.bf16.msra.mxu0 %v3093
      %3319 = vmatpush.bf16.msra.mxu0 %v3087
      %3320 = vmatpush.bf16.msra.mxu0 %v3081
      %3321 = vmatmul.bf16.gmra.mxu0 %v2644
      %v3322 = vpop.f32.mrf.mxu0
      %v3323 = vadd.f32 %v3310, %v3322
      %v3324 = vpop.f32.mrf.mxu0
      %3325 = vdwg.mxu0
      %3326 = vmatpush.bf16.msra.mxu0 %v3076
      %3327 = vmatpush.bf16.msra.mxu0 %v3070
      %3328 = vmatpush.bf16.msra.mxu0 %v3064
      %3329 = vmatpush.bf16.msra.mxu0 %v3058
      %3330 = vmatpush.bf16.msra.mxu0 %v3052
      %3331 = vmatpush.bf16.msra.mxu0 %v3046
      %3332 = vmatpush.bf16.msra.mxu0 %v3040
      %3333 = vmatpush.bf16.msra.mxu0 %v3034
      %3334 = vmatmul.bf16.gmra.mxu0 %v2643
      %v3335 = vpop.f32.mrf.mxu0
      %v3336 = vadd.f32 0.0, %v3335
      %v3337 = vpop.f32.mrf.mxu0
      %3338 = vdwg.mxu0
      %3339 = vmatpush.bf16.msra.mxu0 %v3124
      %3340 = vmatpush.bf16.msra.mxu0 %v3118
      %3341 = vmatpush.bf16.msra.mxu0 %v3112
      %3342 = vmatpush.bf16.msra.mxu0 %v3106
      %3343 = vmatpush.bf16.msra.mxu0 %v3100
      %3344 = vmatpush.bf16.msra.mxu0 %v3094
      %3345 = vmatpush.bf16.msra.mxu0 %v3088
      %3346 = vmatpush.bf16.msra.mxu0 %v3082
      %3347 = vmatmul.bf16.gmra.mxu0 %v2644
      %v3348 = vpop.f32.mrf.mxu0
      %v3349 = vadd.f32 %v3336, %v3348
      %v3350 = vpop.f32.mrf.mxu0
      %3351 = vdwg.mxu0
      %3352 = vmatpush.bf16.msra.mxu0 %v3077
      %3353 = vmatpush.bf16.msra.mxu0 %v3071
      %3354 = vmatpush.bf16.msra.mxu0 %v3065
      %3355 = vmatpush.bf16.msra.mxu0 %v3059
      %3356 = vmatpush.bf16.msra.mxu0 %v3053
      %3357 = vmatpush.bf16.msra.mxu0 %v3047
      %3358 = vmatpush.bf16.msra.mxu0 %v3041
      %3359 = vmatpush.bf16.msra.mxu0 %v3035
      %3360 = vmatmul.bf16.gmra.mxu0 %v2643
      %v3361 = vpop.f32.mrf.mxu0
      %v3362 = vadd.f32 0.0, %v3361
      %v3363 = vpop.f32.mrf.mxu0
      %3364 = vdwg.mxu0
      %3365 = vmatpush.bf16.msra.mxu0 %v3125
      %3366 = vmatpush.bf16.msra.mxu0 %v3119
      %3367 = vmatpush.bf16.msra.mxu0 %v3113
      %3368 = vmatpush.bf16.msra.mxu0 %v3107
      %3369 = vmatpush.bf16.msra.mxu0 %v3101
      %3370 = vmatpush.bf16.msra.mxu0 %v3095
      %3371 = vmatpush.bf16.msra.mxu0 %v3089
      %3372 = vmatpush.bf16.msra.mxu0 %v3083
      %3373 = vmatmul.bf16.gmra.mxu0 %v2644
      %v3374 = vpop.f32.mrf.mxu0
      %v3375 = vadd.f32 %v3362, %v3374
      %v3376 = vpop.f32.mrf.mxu0
      %3377 = vdwg.mxu0
      %v3378 = vadd.f32 %v2510, %v3245
      %v3379 = vadd.f32 %v2536, %v3271
      %v3380 = vadd.f32 %v2562, %v3297
      %v3381 = vadd.f32 %v2588, %v3323
      %s3382 = scalar_lea.vmem [#allocation13], 1
      %v3383 = vld [vmem:[%s3382] ss:$4 sm:$0xf]
      %v3385 = vperm.slane %v3383, 0
      %v3386 = vperm.slane %v3383, 1
      %v3387 = vperm.slane %v3383, 2
      %v3388 = vperm.slane %v3383, 3
      %v3393 = vadd.f32 %v3378, %v3385
      %v3394 = vadd.f32 %v3379, %v3386
      %v3395 = vadd.f32 %v3380, %v3387
      %v3396 = vadd.f32 %v3381, %v3388
      %v3397 = vxor.u32 %v3393, 2147483648
      %v3398 = vxor.u32 %v3394, 2147483648
      %v3399 = vxor.u32 %v3395, 2147483648
      %v3400 = vxor.u32 %v3396, 2147483648
      %v3401 = vmul.f32 %v3397, 1.442695
      %v3402 = vpow.pop %v3401
      %v3403 = vmul.f32 %v3398, 1.442695
      %v3404 = vpow.pop %v3403
      %v3405 = vmul.f32 %v3399, 1.442695
      %v3406 = vpow.pop %v3405
      %v3407 = vmul.f32 %v3400, 1.442695
      %v3408 = vpow.pop %v3407
      %v3409 = vadd.f32 %v3402, 1.0
      %v3410 = vadd.f32 %v3404, 1.0
      %v3411 = vadd.f32 %v3406, 1.0
      %v3412 = vadd.f32 %v3408, 1.0
      %v3413 = vrcp.pop %v3409
      %v3414 = vmul.f32 %v3409, %v3413
      %v3415 = vsub.f32 1.0, %v3414
      %v3416 = vmul.f32 %v3413, %v3415
      %v3417 = vadd.f32 %v3413, %v3416
      %vm3418 = vweird.f32 %v3409
      %vm3419 = vweird.f32 %v3413
      %vm3420 = vmor %vm3418, %vm3419
      %v3421 = vsel %vm3420, %v3413, %v3417
      %v3422 = vand.u32 2147483647, %v3409
      %vm3423 = vcmp.eq.f32.partialorder %v3422, 8.507059e+37
      %v3424 = vand.u32 %v3409, 2147483648
      %v3425 = vor.u32 1.1754944e-38, %v3424
      %v3426 = vsel %vm3423, %v3425, %v3421
      %v3427 = vmul.f32 1.0, %v3426
      %v3428 = vrcp.pop %v3410
      %v3429 = vmul.f32 %v3410, %v3428
      %v3430 = vsub.f32 1.0, %v3429
      %v3431 = vmul.f32 %v3428, %v3430
      %v3432 = vadd.f32 %v3428, %v3431
      %vm3433 = vweird.f32 %v3410
      %vm3434 = vweird.f32 %v3428
      %vm3435 = vmor %vm3433, %vm3434
      %v3436 = vsel %vm3435, %v3428, %v3432
      %v3437 = vand.u32 2147483647, %v3410
      %vm3438 = vcmp.eq.f32.partialorder %v3437, 8.507059e+37
      %v3439 = vand.u32 %v3410, 2147483648
      %v3440 = vor.u32 1.1754944e-38, %v3439
      %v3441 = vsel %vm3438, %v3440, %v3436
      %v3442 = vmul.f32 1.0, %v3441
      %v3443 = vrcp.pop %v3411
      %v3444 = vmul.f32 %v3411, %v3443
      %v3445 = vsub.f32 1.0, %v3444
      %v3446 = vmul.f32 %v3443, %v3445
      %v3447 = vadd.f32 %v3443, %v3446
      %vm3448 = vweird.f32 %v3411
      %vm3449 = vweird.f32 %v3443
      %vm3450 = vmor %vm3448, %vm3449
      %v3451 = vsel %vm3450, %v3443, %v3447
      %v3452 = vand.u32 2147483647, %v3411
      %vm3453 = vcmp.eq.f32.partialorder %v3452, 8.507059e+37
      %v3454 = vand.u32 %v3411, 2147483648
      %v3455 = vor.u32 1.1754944e-38, %v3454
      %v3456 = vsel %vm3453, %v3455, %v3451
      %v3457 = vmul.f32 1.0, %v3456
      %v3458 = vrcp.pop %v3412
      %v3459 = vmul.f32 %v3412, %v3458
      %v3460 = vsub.f32 1.0, %v3459
      %v3461 = vmul.f32 %v3458, %v3460
      %v3462 = vadd.f32 %v3458, %v3461
      %vm3463 = vweird.f32 %v3412
      %vm3464 = vweird.f32 %v3458
      %vm3465 = vmor %vm3463, %vm3464
      %v3466 = vsel %vm3465, %v3458, %v3462
      %v3467 = vand.u32 2147483647, %v3412
      %vm3468 = vcmp.eq.f32.partialorder %v3467, 8.507059e+37
      %v3469 = vand.u32 %v3412, 2147483648
      %v3470 = vor.u32 1.1754944e-38, %v3469
      %v3471 = vsel %vm3468, %v3470, %v3466
      %v3472 = vmul.f32 1.0, %v3471
      %s3473 = scalar_lea.vmem [#allocation15], 1
      %v3474 = vld [vmem:[%s3473] ss:$4 sm:$0x3]
      %v3476 = vperm.slane %v3474, 0
      %v3477 = vperm.slane %v3474, 1
      %v3480 = vadd.f32 %v2614, %v3476
      %v3481 = vadd.f32 %v2640, %v3477
      %s3482 = scalar_lea.vmem [#allocation16], 1
      %v3483 = vld [vmem:[%s3482] ss:$4 sm:$0x3]
      %v3485 = vperm.slane %v3483, 0
      %v3486 = vperm.slane %v3483, 1
      %v3489 = vadd.f32 %v3349, %v3485
      %v3490 = vadd.f32 %v3375, %v3486
      %v3491 = vmul.f32 %v3427, %v3489
      %v3492 = vmul.f32 %v3442, %v3490
      %v3493 = vadd.f32 %v3480, %v3491
      %v3494 = vadd.f32 %v3481, %v3492
      %v3495 = vtanh.pop %v3493
      %v3496 = vtanh.pop %v3494
      %v3497 = vsub.f32 1.0, %v3457
      %v3498 = vsub.f32 1.0, %v3472
      %v3499 = vmul.f32 %v3497, %v3495
      %v3500 = vmul.f32 %v3498, %v3496
      %v3501 = vmul.f32 %v3457, %v1906
      %v3502 = vmul.f32 %v3472, %v1907
      %v3503 = vadd.f32 %v3499, %v3501
      %v3504 = vadd.f32 %v3500, %v3502
      %s3505 = scalar_lea.vmem [#allocation21], 16
      %3506 = vst [vmem:[%s3505] sm:$0xff] %v3503
      %3507 = vst [vmem:[%s3505 + $0x8] sm:$0xff] %v3504
      %s3508 = scalar_lea.vmem [#allocation7], 32
      %v3509 = vld [vmem:[%s3508] sm:$0xff]
      %v3510 = vld [vmem:[%s3508 + $0x8] sm:$0xff]
      %v3511 = vpack.c.bf16 %v3503, %v3503
      %v3512 = vpack.c.bf16 %v3504, %v3504
      %s3513 = scalar_lea.vmem [#allocation10], 1536
      %v3514 = vld [vmem:[%s3513] sm:$0xff]
      %v3515 = vld [vmem:[%s3513 + $0x8] sm:$0xff]
      %v3516 = vld [vmem:[%s3513 + $0x10] sm:$0xff]
      %v3517 = vld [vmem:[%s3513 + $0x18] sm:$0xff]
      %v3518 = vld [vmem:[%s3513 + $0x20] sm:$0xff]
      %v3519 = vld [vmem:[%s3513 + $0x28] sm:$0xff]
      %v3520 = vld [vmem:[%s3513 + $0x30] sm:$0xff]
      %v3521 = vld [vmem:[%s3513 + $0x38] sm:$0xff]
      %v3522 = vld [vmem:[%s3513 + $0x40] sm:$0xff]
      %v3523 = vld [vmem:[%s3513 + $0x48] sm:$0xff]
      %v3524 = vld [vmem:[%s3513 + $0x50] sm:$0xff]
      %v3525 = vld [vmem:[%s3513 + $0x58] sm:$0xff]
      %v3526 = vld [vmem:[%s3513 + $0x60] sm:$0xff]
      %v3527 = vld [vmem:[%s3513 + $0x68] sm:$0xff]
      %v3528 = vld [vmem:[%s3513 + $0x70] sm:$0xff]
      %v3529 = vld [vmem:[%s3513 + $0x78] sm:$0xff]
      %v3530 = vld [vmem:[%s3513 + $0x80] sm:$0xff]
      %v3531 = vld [vmem:[%s3513 + $0x88] sm:$0xff]
      %v3532 = vld [vmem:[%s3513 + $0x90] sm:$0xff]
      %v3533 = vld [vmem:[%s3513 + $0x98] sm:$0xff]
      %v3534 = vld [vmem:[%s3513 + $0xa0] sm:$0xff]
      %v3535 = vld [vmem:[%s3513 + $0xa8] sm:$0xff]
      %v3536 = vld [vmem:[%s3513 + $0xb0] sm:$0xff]
      %v3537 = vld [vmem:[%s3513 + $0xb8] sm:$0xff]
      %v3538 = vld [vmem:[%s3513 + $0xc0] sm:$0xff]
      %v3539 = vld [vmem:[%s3513 + $0xc8] sm:$0xff]
      %v3540 = vld [vmem:[%s3513 + $0xd0] sm:$0xff]
      %v3541 = vld [vmem:[%s3513 + $0xd8] sm:$0xff]
      %v3542 = vld [vmem:[%s3513 + $0xe0] sm:$0xff]
      %v3543 = vld [vmem:[%s3513 + $0xe8] sm:$0xff]
      %v3544 = vld [vmem:[%s3513 + $0xf0] sm:$0xff]
      %v3545 = vld [vmem:[%s3513 + $0xf8] sm:$0xff]
      %v3546 = vld [vmem:[%s3513 + $0x100] sm:$0xff]
      %v3547 = vld [vmem:[%s3513 + $0x108] sm:$0xff]
      %v3548 = vld [vmem:[%s3513 + $0x110] sm:$0xff]
      %v3549 = vld [vmem:[%s3513 + $0x118] sm:$0xff]
      %v3550 = vld [vmem:[%s3513 + $0x120] sm:$0xff]
      %v3551 = vld [vmem:[%s3513 + $0x128] sm:$0xff]
      %v3552 = vld [vmem:[%s3513 + $0x130] sm:$0xff]
      %v3553 = vld [vmem:[%s3513 + $0x138] sm:$0xff]
      %v3554 = vld [vmem:[%s3513 + $0x140] sm:$0xff]
      %v3555 = vld [vmem:[%s3513 + $0x148] sm:$0xff]
      %v3556 = vld [vmem:[%s3513 + $0x150] sm:$0xff]
      %v3557 = vld [vmem:[%s3513 + $0x158] sm:$0xff]
      %v3558 = vld [vmem:[%s3513 + $0x160] sm:$0xff]
      %v3559 = vld [vmem:[%s3513 + $0x168] sm:$0xff]
      %v3560 = vld [vmem:[%s3513 + $0x170] sm:$0xff]
      %v3561 = vld [vmem:[%s3513 + $0x178] sm:$0xff]
      %v3562 = vld [vmem:[%s3513 + $0x180] sm:$0xff]
      %v3563 = vld [vmem:[%s3513 + $0x188] sm:$0xff]
      %v3564 = vld [vmem:[%s3513 + $0x190] sm:$0xff]
      %v3565 = vld [vmem:[%s3513 + $0x198] sm:$0xff]
      %v3566 = vld [vmem:[%s3513 + $0x1a0] sm:$0xff]
      %v3567 = vld [vmem:[%s3513 + $0x1a8] sm:$0xff]
      %v3568 = vld [vmem:[%s3513 + $0x1b0] sm:$0xff]
      %v3569 = vld [vmem:[%s3513 + $0x1b8] sm:$0xff]
      %v3570 = vld [vmem:[%s3513 + $0x1c0] sm:$0xff]
      %v3571 = vld [vmem:[%s3513 + $0x1c8] sm:$0xff]
      %v3572 = vld [vmem:[%s3513 + $0x1d0] sm:$0xff]
      %v3573 = vld [vmem:[%s3513 + $0x1d8] sm:$0xff]
      %v3574 = vld [vmem:[%s3513 + $0x1e0] sm:$0xff]
      %v3575 = vld [vmem:[%s3513 + $0x1e8] sm:$0xff]
      %v3576 = vld [vmem:[%s3513 + $0x1f0] sm:$0xff]
      %v3577 = vld [vmem:[%s3513 + $0x1f8] sm:$0xff]
      %v3578 = vld [vmem:[%s3513 + $0x200] sm:$0xff]
      %v3579 = vld [vmem:[%s3513 + $0x208] sm:$0xff]
      %v3580 = vld [vmem:[%s3513 + $0x210] sm:$0xff]
      %v3581 = vld [vmem:[%s3513 + $0x218] sm:$0xff]
      %v3582 = vld [vmem:[%s3513 + $0x220] sm:$0xff]
      %v3583 = vld [vmem:[%s3513 + $0x228] sm:$0xff]
      %v3584 = vld [vmem:[%s3513 + $0x230] sm:$0xff]
      %v3585 = vld [vmem:[%s3513 + $0x238] sm:$0xff]
      %v3586 = vld [vmem:[%s3513 + $0x240] sm:$0xff]
      %v3587 = vld [vmem:[%s3513 + $0x248] sm:$0xff]
      %v3588 = vld [vmem:[%s3513 + $0x250] sm:$0xff]
      %v3589 = vld [vmem:[%s3513 + $0x258] sm:$0xff]
      %v3590 = vld [vmem:[%s3513 + $0x260] sm:$0xff]
      %v3591 = vld [vmem:[%s3513 + $0x268] sm:$0xff]
      %v3592 = vld [vmem:[%s3513 + $0x270] sm:$0xff]
      %v3593 = vld [vmem:[%s3513 + $0x278] sm:$0xff]
      %v3594 = vld [vmem:[%s3513 + $0x280] sm:$0xff]
      %v3595 = vld [vmem:[%s3513 + $0x288] sm:$0xff]
      %v3596 = vld [vmem:[%s3513 + $0x290] sm:$0xff]
      %v3597 = vld [vmem:[%s3513 + $0x298] sm:$0xff]
      %v3598 = vld [vmem:[%s3513 + $0x2a0] sm:$0xff]
      %v3599 = vld [vmem:[%s3513 + $0x2a8] sm:$0xff]
      %v3600 = vld [vmem:[%s3513 + $0x2b0] sm:$0xff]
      %v3601 = vld [vmem:[%s3513 + $0x2b8] sm:$0xff]
      %v3602 = vld [vmem:[%s3513 + $0x2c0] sm:$0xff]
      %v3603 = vld [vmem:[%s3513 + $0x2c8] sm:$0xff]
      %v3604 = vld [vmem:[%s3513 + $0x2d0] sm:$0xff]
      %v3605 = vld [vmem:[%s3513 + $0x2d8] sm:$0xff]
      %v3606 = vld [vmem:[%s3513 + $0x2e0] sm:$0xff]
      %v3607 = vld [vmem:[%s3513 + $0x2e8] sm:$0xff]
      %v3608 = vld [vmem:[%s3513 + $0x2f0] sm:$0xff]
      %v3609 = vld [vmem:[%s3513 + $0x2f8] sm:$0xff]
      %v3706 = vunpack.c.l.b16 %v3514
      %v3707 = vunpack.c.h.b16 %v3514
      %v3708 = vunpack.c.l.b16 %v3515
      %v3709 = vunpack.c.h.b16 %v3515
      %v3710 = vunpack.c.l.b16 %v3516
      %v3711 = vunpack.c.h.b16 %v3516
      %v3712 = vunpack.c.l.b16 %v3517
      %v3713 = vunpack.c.h.b16 %v3517
      %v3714 = vunpack.c.l.b16 %v3518
      %v3715 = vunpack.c.h.b16 %v3518
      %v3716 = vunpack.c.l.b16 %v3519
      %v3717 = vunpack.c.h.b16 %v3519
      %v3718 = vunpack.c.l.b16 %v3520
      %v3719 = vunpack.c.h.b16 %v3520
      %v3720 = vunpack.c.l.b16 %v3521
      %v3721 = vunpack.c.h.b16 %v3521
      %v3722 = vunpack.c.l.b16 %v3522
      %v3723 = vunpack.c.h.b16 %v3522
      %v3724 = vunpack.c.l.b16 %v3523
      %v3725 = vunpack.c.h.b16 %v3523
      %v3726 = vunpack.c.l.b16 %v3524
      %v3727 = vunpack.c.h.b16 %v3524
      %v3728 = vunpack.c.l.b16 %v3525
      %v3729 = vunpack.c.h.b16 %v3525
      %v3730 = vunpack.c.l.b16 %v3526
      %v3731 = vunpack.c.h.b16 %v3526
      %v3732 = vunpack.c.l.b16 %v3527
      %v3733 = vunpack.c.h.b16 %v3527
      %v3734 = vunpack.c.l.b16 %v3528
      %v3735 = vunpack.c.h.b16 %v3528
      %v3736 = vunpack.c.l.b16 %v3529
      %v3737 = vunpack.c.h.b16 %v3529
      %v3738 = vunpack.c.l.b16 %v3530
      %v3739 = vunpack.c.h.b16 %v3530
      %v3740 = vunpack.c.l.b16 %v3531
      %v3741 = vunpack.c.h.b16 %v3531
      %v3742 = vunpack.c.l.b16 %v3532
      %v3743 = vunpack.c.h.b16 %v3532
      %v3744 = vunpack.c.l.b16 %v3533
      %v3745 = vunpack.c.h.b16 %v3533
      %v3746 = vunpack.c.l.b16 %v3534
      %v3747 = vunpack.c.h.b16 %v3534
      %v3748 = vunpack.c.l.b16 %v3535
      %v3749 = vunpack.c.h.b16 %v3535
      %v3750 = vunpack.c.l.b16 %v3536
      %v3751 = vunpack.c.h.b16 %v3536
      %v3752 = vunpack.c.l.b16 %v3537
      %v3753 = vunpack.c.h.b16 %v3537
      %v3754 = vunpack.c.l.b16 %v3538
      %v3755 = vunpack.c.h.b16 %v3538
      %v3756 = vunpack.c.l.b16 %v3539
      %v3757 = vunpack.c.h.b16 %v3539
      %v3758 = vunpack.c.l.b16 %v3540
      %v3759 = vunpack.c.h.b16 %v3540
      %v3760 = vunpack.c.l.b16 %v3541
      %v3761 = vunpack.c.h.b16 %v3541
      %v3762 = vunpack.c.l.b16 %v3542
      %v3763 = vunpack.c.h.b16 %v3542
      %v3764 = vunpack.c.l.b16 %v3543
      %v3765 = vunpack.c.h.b16 %v3543
      %v3766 = vunpack.c.l.b16 %v3544
      %v3767 = vunpack.c.h.b16 %v3544
      %v3768 = vunpack.c.l.b16 %v3545
      %v3769 = vunpack.c.h.b16 %v3545
      %v3770 = vunpack.c.l.b16 %v3546
      %v3771 = vunpack.c.h.b16 %v3546
      %v3772 = vunpack.c.l.b16 %v3547
      %v3773 = vunpack.c.h.b16 %v3547
      %v3774 = vunpack.c.l.b16 %v3548
      %v3775 = vunpack.c.h.b16 %v3548
      %v3776 = vunpack.c.l.b16 %v3549
      %v3777 = vunpack.c.h.b16 %v3549
      %v3778 = vunpack.c.l.b16 %v3550
      %v3779 = vunpack.c.h.b16 %v3550
      %v3780 = vunpack.c.l.b16 %v3551
      %v3781 = vunpack.c.h.b16 %v3551
      %v3782 = vunpack.c.l.b16 %v3552
      %v3783 = vunpack.c.h.b16 %v3552
      %v3784 = vunpack.c.l.b16 %v3553
      %v3785 = vunpack.c.h.b16 %v3553
      %v3786 = vunpack.c.l.b16 %v3554
      %v3787 = vunpack.c.h.b16 %v3554
      %v3788 = vunpack.c.l.b16 %v3555
      %v3789 = vunpack.c.h.b16 %v3555
      %v3790 = vunpack.c.l.b16 %v3556
      %v3791 = vunpack.c.h.b16 %v3556
      %v3792 = vunpack.c.l.b16 %v3557
      %v3793 = vunpack.c.h.b16 %v3557
      %v3794 = vunpack.c.l.b16 %v3558
      %v3795 = vunpack.c.h.b16 %v3558
      %v3796 = vunpack.c.l.b16 %v3559
      %v3797 = vunpack.c.h.b16 %v3559
      %v3798 = vunpack.c.l.b16 %v3560
      %v3799 = vunpack.c.h.b16 %v3560
      %v3800 = vunpack.c.l.b16 %v3561
      %v3801 = vunpack.c.h.b16 %v3561
      %v3802 = vunpack.c.l.b16 %v3562
      %v3803 = vunpack.c.h.b16 %v3562
      %v3804 = vunpack.c.l.b16 %v3563
      %v3805 = vunpack.c.h.b16 %v3563
      %v3806 = vunpack.c.l.b16 %v3564
      %v3807 = vunpack.c.h.b16 %v3564
      %v3808 = vunpack.c.l.b16 %v3565
      %v3809 = vunpack.c.h.b16 %v3565
      %v3810 = vunpack.c.l.b16 %v3566
      %v3811 = vunpack.c.h.b16 %v3566
      %v3812 = vunpack.c.l.b16 %v3567
      %v3813 = vunpack.c.h.b16 %v3567
      %v3814 = vunpack.c.l.b16 %v3568
      %v3815 = vunpack.c.h.b16 %v3568
      %v3816 = vunpack.c.l.b16 %v3569
      %v3817 = vunpack.c.h.b16 %v3569
      %v3818 = vunpack.c.l.b16 %v3570
      %v3819 = vunpack.c.h.b16 %v3570
      %v3820 = vunpack.c.l.b16 %v3571
      %v3821 = vunpack.c.h.b16 %v3571
      %v3822 = vunpack.c.l.b16 %v3572
      %v3823 = vunpack.c.h.b16 %v3572
      %v3824 = vunpack.c.l.b16 %v3573
      %v3825 = vunpack.c.h.b16 %v3573
      %v3826 = vunpack.c.l.b16 %v3574
      %v3827 = vunpack.c.h.b16 %v3574
      %v3828 = vunpack.c.l.b16 %v3575
      %v3829 = vunpack.c.h.b16 %v3575
      %v3830 = vunpack.c.l.b16 %v3576
      %v3831 = vunpack.c.h.b16 %v3576
      %v3832 = vunpack.c.l.b16 %v3577
      %v3833 = vunpack.c.h.b16 %v3577
      %v3834 = vunpack.c.l.b16 %v3578
      %v3835 = vunpack.c.h.b16 %v3578
      %v3836 = vunpack.c.l.b16 %v3579
      %v3837 = vunpack.c.h.b16 %v3579
      %v3838 = vunpack.c.l.b16 %v3580
      %v3839 = vunpack.c.h.b16 %v3580
      %v3840 = vunpack.c.l.b16 %v3581
      %v3841 = vunpack.c.h.b16 %v3581
      %v3842 = vunpack.c.l.b16 %v3582
      %v3843 = vunpack.c.h.b16 %v3582
      %v3844 = vunpack.c.l.b16 %v3583
      %v3845 = vunpack.c.h.b16 %v3583
      %v3846 = vunpack.c.l.b16 %v3584
      %v3847 = vunpack.c.h.b16 %v3584
      %v3848 = vunpack.c.l.b16 %v3585
      %v3849 = vunpack.c.h.b16 %v3585
      %v3850 = vunpack.c.l.b16 %v3586
      %v3851 = vunpack.c.h.b16 %v3586
      %v3852 = vunpack.c.l.b16 %v3587
      %v3853 = vunpack.c.h.b16 %v3587
      %v3854 = vunpack.c.l.b16 %v3588
      %v3855 = vunpack.c.h.b16 %v3588
      %v3856 = vunpack.c.l.b16 %v3589
      %v3857 = vunpack.c.h.b16 %v3589
      %v3858 = vunpack.c.l.b16 %v3590
      %v3859 = vunpack.c.h.b16 %v3590
      %v3860 = vunpack.c.l.b16 %v3591
      %v3861 = vunpack.c.h.b16 %v3591
      %v3862 = vunpack.c.l.b16 %v3592
      %v3863 = vunpack.c.h.b16 %v3592
      %v3864 = vunpack.c.l.b16 %v3593
      %v3865 = vunpack.c.h.b16 %v3593
      %v3866 = vunpack.c.l.b16 %v3594
      %v3867 = vunpack.c.h.b16 %v3594
      %v3868 = vunpack.c.l.b16 %v3595
      %v3869 = vunpack.c.h.b16 %v3595
      %v3870 = vunpack.c.l.b16 %v3596
      %v3871 = vunpack.c.h.b16 %v3596
      %v3872 = vunpack.c.l.b16 %v3597
      %v3873 = vunpack.c.h.b16 %v3597
      %v3874 = vunpack.c.l.b16 %v3598
      %v3875 = vunpack.c.h.b16 %v3598
      %v3876 = vunpack.c.l.b16 %v3599
      %v3877 = vunpack.c.h.b16 %v3599
      %v3878 = vunpack.c.l.b16 %v3600
      %v3879 = vunpack.c.h.b16 %v3600
      %v3880 = vunpack.c.l.b16 %v3601
      %v3881 = vunpack.c.h.b16 %v3601
      %v3882 = vunpack.c.l.b16 %v3602
      %v3883 = vunpack.c.h.b16 %v3602
      %v3884 = vunpack.c.l.b16 %v3603
      %v3885 = vunpack.c.h.b16 %v3603
      %v3886 = vunpack.c.l.b16 %v3604
      %v3887 = vunpack.c.h.b16 %v3604
      %v3888 = vunpack.c.l.b16 %v3605
      %v3889 = vunpack.c.h.b16 %v3605
      %v3890 = vunpack.c.l.b16 %v3606
      %v3891 = vunpack.c.h.b16 %v3606
      %v3892 = vunpack.c.l.b16 %v3607
      %v3893 = vunpack.c.h.b16 %v3607
      %v3894 = vunpack.c.l.b16 %v3608
      %v3895 = vunpack.c.h.b16 %v3608
      %v3896 = vunpack.c.l.b16 %v3609
      %v3897 = vunpack.c.h.b16 %v3609
      %v3898 = vpack.c.b16 %v3712, %v3706
      %v3899 = vpack.c.b16 %v3713, %v3707
      %v3900 = vpack.c.b16 %v3714, %v3708
      %v3901 = vpack.c.b16 %v3715, %v3709
      %v3902 = vpack.c.b16 %v3716, %v3710
      %v3903 = vpack.c.b16 %v3717, %v3711
      %v3904 = vpack.c.b16 %v3724, %v3718
      %v3905 = vpack.c.b16 %v3725, %v3719
      %v3906 = vpack.c.b16 %v3726, %v3720
      %v3907 = vpack.c.b16 %v3727, %v3721
      %v3908 = vpack.c.b16 %v3728, %v3722
      %v3909 = vpack.c.b16 %v3729, %v3723
      %v3910 = vpack.c.b16 %v3736, %v3730
      %v3911 = vpack.c.b16 %v3737, %v3731
      %v3912 = vpack.c.b16 %v3738, %v3732
      %v3913 = vpack.c.b16 %v3739, %v3733
      %v3914 = vpack.c.b16 %v3740, %v3734
      %v3915 = vpack.c.b16 %v3741, %v3735
      %v3916 = vpack.c.b16 %v3748, %v3742
      %v3917 = vpack.c.b16 %v3749, %v3743
      %v3918 = vpack.c.b16 %v3750, %v3744
      %v3919 = vpack.c.b16 %v3751, %v3745
      %v3920 = vpack.c.b16 %v3752, %v3746
      %v3921 = vpack.c.b16 %v3753, %v3747
      %v3922 = vpack.c.b16 %v3760, %v3754
      %v3923 = vpack.c.b16 %v3761, %v3755
      %v3924 = vpack.c.b16 %v3762, %v3756
      %v3925 = vpack.c.b16 %v3763, %v3757
      %v3926 = vpack.c.b16 %v3764, %v3758
      %v3927 = vpack.c.b16 %v3765, %v3759
      %v3928 = vpack.c.b16 %v3772, %v3766
      %v3929 = vpack.c.b16 %v3773, %v3767
      %v3930 = vpack.c.b16 %v3774, %v3768
      %v3931 = vpack.c.b16 %v3775, %v3769
      %v3932 = vpack.c.b16 %v3776, %v3770
      %v3933 = vpack.c.b16 %v3777, %v3771
      %v3934 = vpack.c.b16 %v3784, %v3778
      %v3935 = vpack.c.b16 %v3785, %v3779
      %v3936 = vpack.c.b16 %v3786, %v3780
      %v3937 = vpack.c.b16 %v3787, %v3781
      %v3938 = vpack.c.b16 %v3788, %v3782
      %v3939 = vpack.c.b16 %v3789, %v3783
      %v3940 = vpack.c.b16 %v3796, %v3790
      %v3941 = vpack.c.b16 %v3797, %v3791
      %v3942 = vpack.c.b16 %v3798, %v3792
      %v3943 = vpack.c.b16 %v3799, %v3793
      %v3944 = vpack.c.b16 %v3800, %v3794
      %v3945 = vpack.c.b16 %v3801, %v3795
      %v3946 = vpack.c.b16 %v3808, %v3802
      %v3947 = vpack.c.b16 %v3809, %v3803
      %v3948 = vpack.c.b16 %v3810, %v3804
      %v3949 = vpack.c.b16 %v3811, %v3805
      %v3950 = vpack.c.b16 %v3812, %v3806
      %v3951 = vpack.c.b16 %v3813, %v3807
      %v3952 = vpack.c.b16 %v3820, %v3814
      %v3953 = vpack.c.b16 %v3821, %v3815
      %v3954 = vpack.c.b16 %v3822, %v3816
      %v3955 = vpack.c.b16 %v3823, %v3817
      %v3956 = vpack.c.b16 %v3824, %v3818
      %v3957 = vpack.c.b16 %v3825, %v3819
      %v3958 = vpack.c.b16 %v3832, %v3826
      %v3959 = vpack.c.b16 %v3833, %v3827
      %v3960 = vpack.c.b16 %v3834, %v3828
      %v3961 = vpack.c.b16 %v3835, %v3829
      %v3962 = vpack.c.b16 %v3836, %v3830
      %v3963 = vpack.c.b16 %v3837, %v3831
      %v3964 = vpack.c.b16 %v3844, %v3838
      %v3965 = vpack.c.b16 %v3845, %v3839
      %v3966 = vpack.c.b16 %v3846, %v3840
      %v3967 = vpack.c.b16 %v3847, %v3841
      %v3968 = vpack.c.b16 %v3848, %v3842
      %v3969 = vpack.c.b16 %v3849, %v3843
      %v3970 = vpack.c.b16 %v3856, %v3850
      %v3971 = vpack.c.b16 %v3857, %v3851
      %v3972 = vpack.c.b16 %v3858, %v3852
      %v3973 = vpack.c.b16 %v3859, %v3853
      %v3974 = vpack.c.b16 %v3860, %v3854
      %v3975 = vpack.c.b16 %v3861, %v3855
      %v3976 = vpack.c.b16 %v3868, %v3862
      %v3977 = vpack.c.b16 %v3869, %v3863
      %v3978 = vpack.c.b16 %v3870, %v3864
      %v3979 = vpack.c.b16 %v3871, %v3865
      %v3980 = vpack.c.b16 %v3872, %v3866
      %v3981 = vpack.c.b16 %v3873, %v3867
      %v3982 = vpack.c.b16 %v3880, %v3874
      %v3983 = vpack.c.b16 %v3881, %v3875
      %v3984 = vpack.c.b16 %v3882, %v3876
      %v3985 = vpack.c.b16 %v3883, %v3877
      %v3986 = vpack.c.b16 %v3884, %v3878
      %v3987 = vpack.c.b16 %v3885, %v3879
      %v3988 = vpack.c.b16 %v3892, %v3886
      %v3989 = vpack.c.b16 %v3893, %v3887
      %v3990 = vpack.c.b16 %v3894, %v3888
      %v3991 = vpack.c.b16 %v3895, %v3889
      %v3992 = vpack.c.b16 %v3896, %v3890
      %v3993 = vpack.c.b16 %v3897, %v3891
      %4090 = vmatpush.bf16.msra.mxu0 %v3940
      %4091 = vmatpush.bf16.msra.mxu0 %v3934
      %4092 = vmatpush.bf16.msra.mxu0 %v3928
      %4093 = vmatpush.bf16.msra.mxu0 %v3922
      %4094 = vmatpush.bf16.msra.mxu0 %v3916
      %4095 = vmatpush.bf16.msra.mxu0 %v3910
      %4096 = vmatpush.bf16.msra.mxu0 %v3904
      %4097 = vmatpush.bf16.msra.mxu0 %v3898
      %4098 = vmatmul.bf16.gmra.mxu0 %v3511
      %v4099 = vpop.f32.mrf.mxu0
      %v4100 = vadd.f32 0.0, %v4099
      %v4101 = vpop.f32.mrf.mxu0
      %4102 = vdwg.mxu0
      %4103 = vmatpush.bf16.msra.mxu0 %v3988
      %4104 = vmatpush.bf16.msra.mxu0 %v3982
      %4105 = vmatpush.bf16.msra.mxu0 %v3976
      %4106 = vmatpush.bf16.msra.mxu0 %v3970
      %4107 = vmatpush.bf16.msra.mxu0 %v3964
      %4108 = vmatpush.bf16.msra.mxu0 %v3958
      %4109 = vmatpush.bf16.msra.mxu0 %v3952
      %4110 = vmatpush.bf16.msra.mxu0 %v3946
      %4111 = vmatmul.bf16.gmra.mxu0 %v3512
      %v4112 = vpop.f32.mrf.mxu0
      %v4113 = vadd.f32 %v4100, %v4112
      %v4114 = vpop.f32.mrf.mxu0
      %4115 = vdwg.mxu0
      %4116 = vmatpush.bf16.msra.mxu0 %v3941
      %4117 = vmatpush.bf16.msra.mxu0 %v3935
      %4118 = vmatpush.bf16.msra.mxu0 %v3929
      %4119 = vmatpush.bf16.msra.mxu0 %v3923
      %4120 = vmatpush.bf16.msra.mxu0 %v3917
      %4121 = vmatpush.bf16.msra.mxu0 %v3911
      %4122 = vmatpush.bf16.msra.mxu0 %v3905
      %4123 = vmatpush.bf16.msra.mxu0 %v3899
      %4124 = vmatmul.bf16.gmra.mxu0 %v3511
      %v4125 = vpop.f32.mrf.mxu0
      %v4126 = vadd.f32 0.0, %v4125
      %v4127 = vpop.f32.mrf.mxu0
      %4128 = vdwg.mxu0
      %4129 = vmatpush.bf16.msra.mxu0 %v3989
      %4130 = vmatpush.bf16.msra.mxu0 %v3983
      %4131 = vmatpush.bf16.msra.mxu0 %v3977
      %4132 = vmatpush.bf16.msra.mxu0 %v3971
      %4133 = vmatpush.bf16.msra.mxu0 %v3965
      %4134 = vmatpush.bf16.msra.mxu0 %v3959
      %4135 = vmatpush.bf16.msra.mxu0 %v3953
      %4136 = vmatpush.bf16.msra.mxu0 %v3947
      %4137 = vmatmul.bf16.gmra.mxu0 %v3512
      %v4138 = vpop.f32.mrf.mxu0
      %v4139 = vadd.f32 %v4126, %v4138
      %v4140 = vpop.f32.mrf.mxu0
      %4141 = vdwg.mxu0
      %4142 = vmatpush.bf16.msra.mxu0 %v3942
      %4143 = vmatpush.bf16.msra.mxu0 %v3936
      %4144 = vmatpush.bf16.msra.mxu0 %v3930
      %4145 = vmatpush.bf16.msra.mxu0 %v3924
      %4146 = vmatpush.bf16.msra.mxu0 %v3918
      %4147 = vmatpush.bf16.msra.mxu0 %v3912
      %4148 = vmatpush.bf16.msra.mxu0 %v3906
      %4149 = vmatpush.bf16.msra.mxu0 %v3900
      %4150 = vmatmul.bf16.gmra.mxu0 %v3511
      %v4151 = vpop.f32.mrf.mxu0
      %v4152 = vadd.f32 0.0, %v4151
      %v4153 = vpop.f32.mrf.mxu0
      %4154 = vdwg.mxu0
      %4155 = vmatpush.bf16.msra.mxu0 %v3990
      %4156 = vmatpush.bf16.msra.mxu0 %v3984
      %4157 = vmatpush.bf16.msra.mxu0 %v3978
      %4158 = vmatpush.bf16.msra.mxu0 %v3972
      %4159 = vmatpush.bf16.msra.mxu0 %v3966
      %4160 = vmatpush.bf16.msra.mxu0 %v3960
      %4161 = vmatpush.bf16.msra.mxu0 %v3954
      %4162 = vmatpush.bf16.msra.mxu0 %v3948
      %4163 = vmatmul.bf16.gmra.mxu0 %v3512
      %v4164 = vpop.f32.mrf.mxu0
      %v4165 = vadd.f32 %v4152, %v4164
      %v4166 = vpop.f32.mrf.mxu0
      %4167 = vdwg.mxu0
      %4168 = vmatpush.bf16.msra.mxu0 %v3943
      %4169 = vmatpush.bf16.msra.mxu0 %v3937
      %4170 = vmatpush.bf16.msra.mxu0 %v3931
      %4171 = vmatpush.bf16.msra.mxu0 %v3925
      %4172 = vmatpush.bf16.msra.mxu0 %v3919
      %4173 = vmatpush.bf16.msra.mxu0 %v3913
      %4174 = vmatpush.bf16.msra.mxu0 %v3907
      %4175 = vmatpush.bf16.msra.mxu0 %v3901
      %4176 = vmatmul.bf16.gmra.mxu0 %v3511
      %v4177 = vpop.f32.mrf.mxu0
      %v4178 = vadd.f32 0.0, %v4177
      %v4179 = vpop.f32.mrf.mxu0
      %4180 = vdwg.mxu0
      %4181 = vmatpush.bf16.msra.mxu0 %v3991
      %4182 = vmatpush.bf16.msra.mxu0 %v3985
      %4183 = vmatpush.bf16.msra.mxu0 %v3979
      %4184 = vmatpush.bf16.msra.mxu0 %v3973
      %4185 = vmatpush.bf16.msra.mxu0 %v3967
      %4186 = vmatpush.bf16.msra.mxu0 %v3961
      %4187 = vmatpush.bf16.msra.mxu0 %v3955
      %4188 = vmatpush.bf16.msra.mxu0 %v3949
      %4189 = vmatmul.bf16.gmra.mxu0 %v3512
      %v4190 = vpop.f32.mrf.mxu0
      %v4191 = vadd.f32 %v4178, %v4190
      %v4192 = vpop.f32.mrf.mxu0
      %4193 = vdwg.mxu0
      %4194 = vmatpush.bf16.msra.mxu0 %v3944
      %4195 = vmatpush.bf16.msra.mxu0 %v3938
      %4196 = vmatpush.bf16.msra.mxu0 %v3932
      %4197 = vmatpush.bf16.msra.mxu0 %v3926
      %4198 = vmatpush.bf16.msra.mxu0 %v3920
      %4199 = vmatpush.bf16.msra.mxu0 %v3914
      %4200 = vmatpush.bf16.msra.mxu0 %v3908
      %4201 = vmatpush.bf16.msra.mxu0 %v3902
      %4202 = vmatmul.bf16.gmra.mxu0 %v3511
      %v4203 = vpop.f32.mrf.mxu0
      %v4204 = vadd.f32 0.0, %v4203
      %v4205 = vpop.f32.mrf.mxu0
      %4206 = vdwg.mxu0
      %4207 = vmatpush.bf16.msra.mxu0 %v3992
      %4208 = vmatpush.bf16.msra.mxu0 %v3986
      %4209 = vmatpush.bf16.msra.mxu0 %v3980
      %4210 = vmatpush.bf16.msra.mxu0 %v3974
      %4211 = vmatpush.bf16.msra.mxu0 %v3968
      %4212 = vmatpush.bf16.msra.mxu0 %v3962
      %4213 = vmatpush.bf16.msra.mxu0 %v3956
      %4214 = vmatpush.bf16.msra.mxu0 %v3950
      %4215 = vmatmul.bf16.gmra.mxu0 %v3512
      %v4216 = vpop.f32.mrf.mxu0
      %v4217 = vadd.f32 %v4204, %v4216
      %v4218 = vpop.f32.mrf.mxu0
      %4219 = vdwg.mxu0
      %4220 = vmatpush.bf16.msra.mxu0 %v3945
      %4221 = vmatpush.bf16.msra.mxu0 %v3939
      %4222 = vmatpush.bf16.msra.mxu0 %v3933
      %4223 = vmatpush.bf16.msra.mxu0 %v3927
      %4224 = vmatpush.bf16.msra.mxu0 %v3921
      %4225 = vmatpush.bf16.msra.mxu0 %v3915
      %4226 = vmatpush.bf16.msra.mxu0 %v3909
      %4227 = vmatpush.bf16.msra.mxu0 %v3903
      %4228 = vmatmul.bf16.gmra.mxu0 %v3511
      %v4229 = vpop.f32.mrf.mxu0
      %v4230 = vadd.f32 0.0, %v4229
      %v4231 = vpop.f32.mrf.mxu0
      %4232 = vdwg.mxu0
      %4233 = vmatpush.bf16.msra.mxu0 %v3993
      %4234 = vmatpush.bf16.msra.mxu0 %v3987
      %4235 = vmatpush.bf16.msra.mxu0 %v3981
      %4236 = vmatpush.bf16.msra.mxu0 %v3975
      %4237 = vmatpush.bf16.msra.mxu0 %v3969
      %4238 = vmatpush.bf16.msra.mxu0 %v3963
      %4239 = vmatpush.bf16.msra.mxu0 %v3957
      %4240 = vmatpush.bf16.msra.mxu0 %v3951
      %4241 = vmatmul.bf16.gmra.mxu0 %v3512
      %v4242 = vpop.f32.mrf.mxu0
      %v4243 = vadd.f32 %v4230, %v4242
      %v4244 = vpop.f32.mrf.mxu0
      %4245 = vdwg.mxu0
      %v4246 = vpack.c.bf16 %v3509, %v3509
      %v4247 = vpack.c.bf16 %v3510, %v3510
      %s4248 = scalar_lea.vmem [#allocation12], 1536
      %v4249 = vld [vmem:[%s4248] sm:$0xff]
      %v4250 = vld [vmem:[%s4248 + $0x8] sm:$0xff]
      %v4251 = vld [vmem:[%s4248 + $0x10] sm:$0xff]
      %v4252 = vld [vmem:[%s4248 + $0x18] sm:$0xff]
      %v4253 = vld [vmem:[%s4248 + $0x20] sm:$0xff]
      %v4254 = vld [vmem:[%s4248 + $0x28] sm:$0xff]
      %v4255 = vld [vmem:[%s4248 + $0x30] sm:$0xff]
      %v4256 = vld [vmem:[%s4248 + $0x38] sm:$0xff]
      %v4257 = vld [vmem:[%s4248 + $0x40] sm:$0xff]
      %v4258 = vld [vmem:[%s4248 + $0x48] sm:$0xff]
      %v4259 = vld [vmem:[%s4248 + $0x50] sm:$0xff]
      %v4260 = vld [vmem:[%s4248 + $0x58] sm:$0xff]
      %v4261 = vld [vmem:[%s4248 + $0x60] sm:$0xff]
      %v4262 = vld [vmem:[%s4248 + $0x68] sm:$0xff]
      %v4263 = vld [vmem:[%s4248 + $0x70] sm:$0xff]
      %v4264 = vld [vmem:[%s4248 + $0x78] sm:$0xff]
      %v4265 = vld [vmem:[%s4248 + $0x80] sm:$0xff]
      %v4266 = vld [vmem:[%s4248 + $0x88] sm:$0xff]
      %v4267 = vld [vmem:[%s4248 + $0x90] sm:$0xff]
      %v4268 = vld [vmem:[%s4248 + $0x98] sm:$0xff]
      %v4269 = vld [vmem:[%s4248 + $0xa0] sm:$0xff]
      %v4270 = vld [vmem:[%s4248 + $0xa8] sm:$0xff]
      %v4271 = vld [vmem:[%s4248 + $0xb0] sm:$0xff]
      %v4272 = vld [vmem:[%s4248 + $0xb8] sm:$0xff]
      %v4273 = vld [vmem:[%s4248 + $0xc0] sm:$0xff]
      %v4274 = vld [vmem:[%s4248 + $0xc8] sm:$0xff]
      %v4275 = vld [vmem:[%s4248 + $0xd0] sm:$0xff]
      %v4276 = vld [vmem:[%s4248 + $0xd8] sm:$0xff]
      %v4277 = vld [vmem:[%s4248 + $0xe0] sm:$0xff]
      %v4278 = vld [vmem:[%s4248 + $0xe8] sm:$0xff]
      %v4279 = vld [vmem:[%s4248 + $0xf0] sm:$0xff]
      %v4280 = vld [vmem:[%s4248 + $0xf8] sm:$0xff]
      %v4281 = vld [vmem:[%s4248 + $0x100] sm:$0xff]
      %v4282 = vld [vmem:[%s4248 + $0x108] sm:$0xff]
      %v4283 = vld [vmem:[%s4248 + $0x110] sm:$0xff]
      %v4284 = vld [vmem:[%s4248 + $0x118] sm:$0xff]
      %v4285 = vld [vmem:[%s4248 + $0x120] sm:$0xff]
      %v4286 = vld [vmem:[%s4248 + $0x128] sm:$0xff]
      %v4287 = vld [vmem:[%s4248 + $0x130] sm:$0xff]
      %v4288 = vld [vmem:[%s4248 + $0x138] sm:$0xff]
      %v4289 = vld [vmem:[%s4248 + $0x140] sm:$0xff]
      %v4290 = vld [vmem:[%s4248 + $0x148] sm:$0xff]
      %v4291 = vld [vmem:[%s4248 + $0x150] sm:$0xff]
      %v4292 = vld [vmem:[%s4248 + $0x158] sm:$0xff]
      %v4293 = vld [vmem:[%s4248 + $0x160] sm:$0xff]
      %v4294 = vld [vmem:[%s4248 + $0x168] sm:$0xff]
      %v4295 = vld [vmem:[%s4248 + $0x170] sm:$0xff]
      %v4296 = vld [vmem:[%s4248 + $0x178] sm:$0xff]
      %v4297 = vld [vmem:[%s4248 + $0x180] sm:$0xff]
      %v4298 = vld [vmem:[%s4248 + $0x188] sm:$0xff]
      %v4299 = vld [vmem:[%s4248 + $0x190] sm:$0xff]
      %v4300 = vld [vmem:[%s4248 + $0x198] sm:$0xff]
      %v4301 = vld [vmem:[%s4248 + $0x1a0] sm:$0xff]
      %v4302 = vld [vmem:[%s4248 + $0x1a8] sm:$0xff]
      %v4303 = vld [vmem:[%s4248 + $0x1b0] sm:$0xff]
      %v4304 = vld [vmem:[%s4248 + $0x1b8] sm:$0xff]
      %v4305 = vld [vmem:[%s4248 + $0x1c0] sm:$0xff]
      %v4306 = vld [vmem:[%s4248 + $0x1c8] sm:$0xff]
      %v4307 = vld [vmem:[%s4248 + $0x1d0] sm:$0xff]
      %v4308 = vld [vmem:[%s4248 + $0x1d8] sm:$0xff]
      %v4309 = vld [vmem:[%s4248 + $0x1e0] sm:$0xff]
      %v4310 = vld [vmem:[%s4248 + $0x1e8] sm:$0xff]
      %v4311 = vld [vmem:[%s4248 + $0x1f0] sm:$0xff]
      %v4312 = vld [vmem:[%s4248 + $0x1f8] sm:$0xff]
      %v4313 = vld [vmem:[%s4248 + $0x200] sm:$0xff]
      %v4314 = vld [vmem:[%s4248 + $0x208] sm:$0xff]
      %v4315 = vld [vmem:[%s4248 + $0x210] sm:$0xff]
      %v4316 = vld [vmem:[%s4248 + $0x218] sm:$0xff]
      %v4317 = vld [vmem:[%s4248 + $0x220] sm:$0xff]
      %v4318 = vld [vmem:[%s4248 + $0x228] sm:$0xff]
      %v4319 = vld [vmem:[%s4248 + $0x230] sm:$0xff]
      %v4320 = vld [vmem:[%s4248 + $0x238] sm:$0xff]
      %v4321 = vld [vmem:[%s4248 + $0x240] sm:$0xff]
      %v4322 = vld [vmem:[%s4248 + $0x248] sm:$0xff]
      %v4323 = vld [vmem:[%s4248 + $0x250] sm:$0xff]
      %v4324 = vld [vmem:[%s4248 + $0x258] sm:$0xff]
      %v4325 = vld [vmem:[%s4248 + $0x260] sm:$0xff]
      %v4326 = vld [vmem:[%s4248 + $0x268] sm:$0xff]
      %v4327 = vld [vmem:[%s4248 + $0x270] sm:$0xff]
      %v4328 = vld [vmem:[%s4248 + $0x278] sm:$0xff]
      %v4329 = vld [vmem:[%s4248 + $0x280] sm:$0xff]
      %v4330 = vld [vmem:[%s4248 + $0x288] sm:$0xff]
      %v4331 = vld [vmem:[%s4248 + $0x290] sm:$0xff]
      %v4332 = vld [vmem:[%s4248 + $0x298] sm:$0xff]
      %v4333 = vld [vmem:[%s4248 + $0x2a0] sm:$0xff]
      %v4334 = vld [vmem:[%s4248 + $0x2a8] sm:$0xff]
      %v4335 = vld [vmem:[%s4248 + $0x2b0] sm:$0xff]
      %v4336 = vld [vmem:[%s4248 + $0x2b8] sm:$0xff]
      %v4337 = vld [vmem:[%s4248 + $0x2c0] sm:$0xff]
      %v4338 = vld [vmem:[%s4248 + $0x2c8] sm:$0xff]
      %v4339 = vld [vmem:[%s4248 + $0x2d0] sm:$0xff]
      %v4340 = vld [vmem:[%s4248 + $0x2d8] sm:$0xff]
      %v4341 = vld [vmem:[%s4248 + $0x2e0] sm:$0xff]
      %v4342 = vld [vmem:[%s4248 + $0x2e8] sm:$0xff]
      %v4343 = vld [vmem:[%s4248 + $0x2f0] sm:$0xff]
      %v4344 = vld [vmem:[%s4248 + $0x2f8] sm:$0xff]
      %v4441 = vunpack.c.l.b16 %v4249
      %v4442 = vunpack.c.h.b16 %v4249
      %v4443 = vunpack.c.l.b16 %v4250
      %v4444 = vunpack.c.h.b16 %v4250
      %v4445 = vunpack.c.l.b16 %v4251
      %v4446 = vunpack.c.h.b16 %v4251
      %v4447 = vunpack.c.l.b16 %v4252
      %v4448 = vunpack.c.h.b16 %v4252
      %v4449 = vunpack.c.l.b16 %v4253
      %v4450 = vunpack.c.h.b16 %v4253
      %v4451 = vunpack.c.l.b16 %v4254
      %v4452 = vunpack.c.h.b16 %v4254
      %v4453 = vunpack.c.l.b16 %v4255
      %v4454 = vunpack.c.h.b16 %v4255
      %v4455 = vunpack.c.l.b16 %v4256
      %v4456 = vunpack.c.h.b16 %v4256
      %v4457 = vunpack.c.l.b16 %v4257
      %v4458 = vunpack.c.h.b16 %v4257
      %v4459 = vunpack.c.l.b16 %v4258
      %v4460 = vunpack.c.h.b16 %v4258
      %v4461 = vunpack.c.l.b16 %v4259
      %v4462 = vunpack.c.h.b16 %v4259
      %v4463 = vunpack.c.l.b16 %v4260
      %v4464 = vunpack.c.h.b16 %v4260
      %v4465 = vunpack.c.l.b16 %v4261
      %v4466 = vunpack.c.h.b16 %v4261
      %v4467 = vunpack.c.l.b16 %v4262
      %v4468 = vunpack.c.h.b16 %v4262
      %v4469 = vunpack.c.l.b16 %v4263
      %v4470 = vunpack.c.h.b16 %v4263
      %v4471 = vunpack.c.l.b16 %v4264
      %v4472 = vunpack.c.h.b16 %v4264
      %v4473 = vunpack.c.l.b16 %v4265
      %v4474 = vunpack.c.h.b16 %v4265
      %v4475 = vunpack.c.l.b16 %v4266
      %v4476 = vunpack.c.h.b16 %v4266
      %v4477 = vunpack.c.l.b16 %v4267
      %v4478 = vunpack.c.h.b16 %v4267
      %v4479 = vunpack.c.l.b16 %v4268
      %v4480 = vunpack.c.h.b16 %v4268
      %v4481 = vunpack.c.l.b16 %v4269
      %v4482 = vunpack.c.h.b16 %v4269
      %v4483 = vunpack.c.l.b16 %v4270
      %v4484 = vunpack.c.h.b16 %v4270
      %v4485 = vunpack.c.l.b16 %v4271
      %v4486 = vunpack.c.h.b16 %v4271
      %v4487 = vunpack.c.l.b16 %v4272
      %v4488 = vunpack.c.h.b16 %v4272
      %v4489 = vunpack.c.l.b16 %v4273
      %v4490 = vunpack.c.h.b16 %v4273
      %v4491 = vunpack.c.l.b16 %v4274
      %v4492 = vunpack.c.h.b16 %v4274
      %v4493 = vunpack.c.l.b16 %v4275
      %v4494 = vunpack.c.h.b16 %v4275
      %v4495 = vunpack.c.l.b16 %v4276
      %v4496 = vunpack.c.h.b16 %v4276
      %v4497 = vunpack.c.l.b16 %v4277
      %v4498 = vunpack.c.h.b16 %v4277
      %v4499 = vunpack.c.l.b16 %v4278
      %v4500 = vunpack.c.h.b16 %v4278
      %v4501 = vunpack.c.l.b16 %v4279
      %v4502 = vunpack.c.h.b16 %v4279
      %v4503 = vunpack.c.l.b16 %v4280
      %v4504 = vunpack.c.h.b16 %v4280
      %v4505 = vunpack.c.l.b16 %v4281
      %v4506 = vunpack.c.h.b16 %v4281
      %v4507 = vunpack.c.l.b16 %v4282
      %v4508 = vunpack.c.h.b16 %v4282
      %v4509 = vunpack.c.l.b16 %v4283
      %v4510 = vunpack.c.h.b16 %v4283
      %v4511 = vunpack.c.l.b16 %v4284
      %v4512 = vunpack.c.h.b16 %v4284
      %v4513 = vunpack.c.l.b16 %v4285
      %v4514 = vunpack.c.h.b16 %v4285
      %v4515 = vunpack.c.l.b16 %v4286
      %v4516 = vunpack.c.h.b16 %v4286
      %v4517 = vunpack.c.l.b16 %v4287
      %v4518 = vunpack.c.h.b16 %v4287
      %v4519 = vunpack.c.l.b16 %v4288
      %v4520 = vunpack.c.h.b16 %v4288
      %v4521 = vunpack.c.l.b16 %v4289
      %v4522 = vunpack.c.h.b16 %v4289
      %v4523 = vunpack.c.l.b16 %v4290
      %v4524 = vunpack.c.h.b16 %v4290
      %v4525 = vunpack.c.l.b16 %v4291
      %v4526 = vunpack.c.h.b16 %v4291
      %v4527 = vunpack.c.l.b16 %v4292
      %v4528 = vunpack.c.h.b16 %v4292
      %v4529 = vunpack.c.l.b16 %v4293
      %v4530 = vunpack.c.h.b16 %v4293
      %v4531 = vunpack.c.l.b16 %v4294
      %v4532 = vunpack.c.h.b16 %v4294
      %v4533 = vunpack.c.l.b16 %v4295
      %v4534 = vunpack.c.h.b16 %v4295
      %v4535 = vunpack.c.l.b16 %v4296
      %v4536 = vunpack.c.h.b16 %v4296
      %v4537 = vunpack.c.l.b16 %v4297
      %v4538 = vunpack.c.h.b16 %v4297
      %v4539 = vunpack.c.l.b16 %v4298
      %v4540 = vunpack.c.h.b16 %v4298
      %v4541 = vunpack.c.l.b16 %v4299
      %v4542 = vunpack.c.h.b16 %v4299
      %v4543 = vunpack.c.l.b16 %v4300
      %v4544 = vunpack.c.h.b16 %v4300
      %v4545 = vunpack.c.l.b16 %v4301
      %v4546 = vunpack.c.h.b16 %v4301
      %v4547 = vunpack.c.l.b16 %v4302
      %v4548 = vunpack.c.h.b16 %v4302
      %v4549 = vunpack.c.l.b16 %v4303
      %v4550 = vunpack.c.h.b16 %v4303
      %v4551 = vunpack.c.l.b16 %v4304
      %v4552 = vunpack.c.h.b16 %v4304
      %v4553 = vunpack.c.l.b16 %v4305
      %v4554 = vunpack.c.h.b16 %v4305
      %v4555 = vunpack.c.l.b16 %v4306
      %v4556 = vunpack.c.h.b16 %v4306
      %v4557 = vunpack.c.l.b16 %v4307
      %v4558 = vunpack.c.h.b16 %v4307
      %v4559 = vunpack.c.l.b16 %v4308
      %v4560 = vunpack.c.h.b16 %v4308
      %v4561 = vunpack.c.l.b16 %v4309
      %v4562 = vunpack.c.h.b16 %v4309
      %v4563 = vunpack.c.l.b16 %v4310
      %v4564 = vunpack.c.h.b16 %v4310
      %v4565 = vunpack.c.l.b16 %v4311
      %v4566 = vunpack.c.h.b16 %v4311
      %v4567 = vunpack.c.l.b16 %v4312
      %v4568 = vunpack.c.h.b16 %v4312
      %v4569 = vunpack.c.l.b16 %v4313
      %v4570 = vunpack.c.h.b16 %v4313
      %v4571 = vunpack.c.l.b16 %v4314
      %v4572 = vunpack.c.h.b16 %v4314
      %v4573 = vunpack.c.l.b16 %v4315
      %v4574 = vunpack.c.h.b16 %v4315
      %v4575 = vunpack.c.l.b16 %v4316
      %v4576 = vunpack.c.h.b16 %v4316
      %v4577 = vunpack.c.l.b16 %v4317
      %v4578 = vunpack.c.h.b16 %v4317
      %v4579 = vunpack.c.l.b16 %v4318
      %v4580 = vunpack.c.h.b16 %v4318
      %v4581 = vunpack.c.l.b16 %v4319
      %v4582 = vunpack.c.h.b16 %v4319
      %v4583 = vunpack.c.l.b16 %v4320
      %v4584 = vunpack.c.h.b16 %v4320
      %v4585 = vunpack.c.l.b16 %v4321
      %v4586 = vunpack.c.h.b16 %v4321
      %v4587 = vunpack.c.l.b16 %v4322
      %v4588 = vunpack.c.h.b16 %v4322
      %v4589 = vunpack.c.l.b16 %v4323
      %v4590 = vunpack.c.h.b16 %v4323
      %v4591 = vunpack.c.l.b16 %v4324
      %v4592 = vunpack.c.h.b16 %v4324
      %v4593 = vunpack.c.l.b16 %v4325
      %v4594 = vunpack.c.h.b16 %v4325
      %v4595 = vunpack.c.l.b16 %v4326
      %v4596 = vunpack.c.h.b16 %v4326
      %v4597 = vunpack.c.l.b16 %v4327
      %v4598 = vunpack.c.h.b16 %v4327
      %v4599 = vunpack.c.l.b16 %v4328
      %v4600 = vunpack.c.h.b16 %v4328
      %v4601 = vunpack.c.l.b16 %v4329
      %v4602 = vunpack.c.h.b16 %v4329
      %v4603 = vunpack.c.l.b16 %v4330
      %v4604 = vunpack.c.h.b16 %v4330
      %v4605 = vunpack.c.l.b16 %v4331
      %v4606 = vunpack.c.h.b16 %v4331
      %v4607 = vunpack.c.l.b16 %v4332
      %v4608 = vunpack.c.h.b16 %v4332
      %v4609 = vunpack.c.l.b16 %v4333
      %v4610 = vunpack.c.h.b16 %v4333
      %v4611 = vunpack.c.l.b16 %v4334
      %v4612 = vunpack.c.h.b16 %v4334
      %v4613 = vunpack.c.l.b16 %v4335
      %v4614 = vunpack.c.h.b16 %v4335
      %v4615 = vunpack.c.l.b16 %v4336
      %v4616 = vunpack.c.h.b16 %v4336
      %v4617 = vunpack.c.l.b16 %v4337
      %v4618 = vunpack.c.h.b16 %v4337
      %v4619 = vunpack.c.l.b16 %v4338
      %v4620 = vunpack.c.h.b16 %v4338
      %v4621 = vunpack.c.l.b16 %v4339
      %v4622 = vunpack.c.h.b16 %v4339
      %v4623 = vunpack.c.l.b16 %v4340
      %v4624 = vunpack.c.h.b16 %v4340
      %v4625 = vunpack.c.l.b16 %v4341
      %v4626 = vunpack.c.h.b16 %v4341
      %v4627 = vunpack.c.l.b16 %v4342
      %v4628 = vunpack.c.h.b16 %v4342
      %v4629 = vunpack.c.l.b16 %v4343
      %v4630 = vunpack.c.h.b16 %v4343
      %v4631 = vunpack.c.l.b16 %v4344
      %v4632 = vunpack.c.h.b16 %v4344
      %v4633 = vpack.c.b16 %v4447, %v4441
      %v4634 = vpack.c.b16 %v4448, %v4442
      %v4635 = vpack.c.b16 %v4449, %v4443
      %v4636 = vpack.c.b16 %v4450, %v4444
      %v4637 = vpack.c.b16 %v4451, %v4445
      %v4638 = vpack.c.b16 %v4452, %v4446
      %v4639 = vpack.c.b16 %v4459, %v4453
      %v4640 = vpack.c.b16 %v4460, %v4454
      %v4641 = vpack.c.b16 %v4461, %v4455
      %v4642 = vpack.c.b16 %v4462, %v4456
      %v4643 = vpack.c.b16 %v4463, %v4457
      %v4644 = vpack.c.b16 %v4464, %v4458
      %v4645 = vpack.c.b16 %v4471, %v4465
      %v4646 = vpack.c.b16 %v4472, %v4466
      %v4647 = vpack.c.b16 %v4473, %v4467
      %v4648 = vpack.c.b16 %v4474, %v4468
      %v4649 = vpack.c.b16 %v4475, %v4469
      %v4650 = vpack.c.b16 %v4476, %v4470
      %v4651 = vpack.c.b16 %v4483, %v4477
      %v4652 = vpack.c.b16 %v4484, %v4478
      %v4653 = vpack.c.b16 %v4485, %v4479
      %v4654 = vpack.c.b16 %v4486, %v4480
      %v4655 = vpack.c.b16 %v4487, %v4481
      %v4656 = vpack.c.b16 %v4488, %v4482
      %v4657 = vpack.c.b16 %v4495, %v4489
      %v4658 = vpack.c.b16 %v4496, %v4490
      %v4659 = vpack.c.b16 %v4497, %v4491
      %v4660 = vpack.c.b16 %v4498, %v4492
      %v4661 = vpack.c.b16 %v4499, %v4493
      %v4662 = vpack.c.b16 %v4500, %v4494
      %v4663 = vpack.c.b16 %v4507, %v4501
      %v4664 = vpack.c.b16 %v4508, %v4502
      %v4665 = vpack.c.b16 %v4509, %v4503
      %v4666 = vpack.c.b16 %v4510, %v4504
      %v4667 = vpack.c.b16 %v4511, %v4505
      %v4668 = vpack.c.b16 %v4512, %v4506
      %v4669 = vpack.c.b16 %v4519, %v4513
      %v4670 = vpack.c.b16 %v4520, %v4514
      %v4671 = vpack.c.b16 %v4521, %v4515
      %v4672 = vpack.c.b16 %v4522, %v4516
      %v4673 = vpack.c.b16 %v4523, %v4517
      %v4674 = vpack.c.b16 %v4524, %v4518
      %v4675 = vpack.c.b16 %v4531, %v4525
      %v4676 = vpack.c.b16 %v4532, %v4526
      %v4677 = vpack.c.b16 %v4533, %v4527
      %v4678 = vpack.c.b16 %v4534, %v4528
      %v4679 = vpack.c.b16 %v4535, %v4529
      %v4680 = vpack.c.b16 %v4536, %v4530
      %v4681 = vpack.c.b16 %v4543, %v4537
      %v4682 = vpack.c.b16 %v4544, %v4538
      %v4683 = vpack.c.b16 %v4545, %v4539
      %v4684 = vpack.c.b16 %v4546, %v4540
      %v4685 = vpack.c.b16 %v4547, %v4541
      %v4686 = vpack.c.b16 %v4548, %v4542
      %v4687 = vpack.c.b16 %v4555, %v4549
      %v4688 = vpack.c.b16 %v4556, %v4550
      %v4689 = vpack.c.b16 %v4557, %v4551
      %v4690 = vpack.c.b16 %v4558, %v4552
      %v4691 = vpack.c.b16 %v4559, %v4553
      %v4692 = vpack.c.b16 %v4560, %v4554
      %v4693 = vpack.c.b16 %v4567, %v4561
      %v4694 = vpack.c.b16 %v4568, %v4562
      %v4695 = vpack.c.b16 %v4569, %v4563
      %v4696 = vpack.c.b16 %v4570, %v4564
      %v4697 = vpack.c.b16 %v4571, %v4565
      %v4698 = vpack.c.b16 %v4572, %v4566
      %v4699 = vpack.c.b16 %v4579, %v4573
      %v4700 = vpack.c.b16 %v4580, %v4574
      %v4701 = vpack.c.b16 %v4581, %v4575
      %v4702 = vpack.c.b16 %v4582, %v4576
      %v4703 = vpack.c.b16 %v4583, %v4577
      %v4704 = vpack.c.b16 %v4584, %v4578
      %v4705 = vpack.c.b16 %v4591, %v4585
      %v4706 = vpack.c.b16 %v4592, %v4586
      %v4707 = vpack.c.b16 %v4593, %v4587
      %v4708 = vpack.c.b16 %v4594, %v4588
      %v4709 = vpack.c.b16 %v4595, %v4589
      %v4710 = vpack.c.b16 %v4596, %v4590
      %v4711 = vpack.c.b16 %v4603, %v4597
      %v4712 = vpack.c.b16 %v4604, %v4598
      %v4713 = vpack.c.b16 %v4605, %v4599
      %v4714 = vpack.c.b16 %v4606, %v4600
      %v4715 = vpack.c.b16 %v4607, %v4601
      %v4716 = vpack.c.b16 %v4608, %v4602
      %v4717 = vpack.c.b16 %v4615, %v4609
      %v4718 = vpack.c.b16 %v4616, %v4610
      %v4719 = vpack.c.b16 %v4617, %v4611
      %v4720 = vpack.c.b16 %v4618, %v4612
      %v4721 = vpack.c.b16 %v4619, %v4613
      %v4722 = vpack.c.b16 %v4620, %v4614
      %v4723 = vpack.c.b16 %v4627, %v4621
      %v4724 = vpack.c.b16 %v4628, %v4622
      %v4725 = vpack.c.b16 %v4629, %v4623
      %v4726 = vpack.c.b16 %v4630, %v4624
      %v4727 = vpack.c.b16 %v4631, %v4625
      %v4728 = vpack.c.b16 %v4632, %v4626
      %4825 = vmatpush.bf16.msra.mxu0 %v4675
      %4826 = vmatpush.bf16.msra.mxu0 %v4669
      %4827 = vmatpush.bf16.msra.mxu0 %v4663
      %4828 = vmatpush.bf16.msra.mxu0 %v4657
      %4829 = vmatpush.bf16.msra.mxu0 %v4651
      %4830 = vmatpush.bf16.msra.mxu0 %v4645
      %4831 = vmatpush.bf16.msra.mxu0 %v4639
      %4832 = vmatpush.bf16.msra.mxu0 %v4633
      %4833 = vmatmul.bf16.gmra.mxu0 %v4246
      %v4834 = vpop.f32.mrf.mxu0
      %v4835 = vadd.f32 0.0, %v4834
      %v4836 = vpop.f32.mrf.mxu0
      %4837 = vdwg.mxu0
      %4838 = vmatpush.bf16.msra.mxu0 %v4723
      %4839 = vmatpush.bf16.msra.mxu0 %v4717
      %4840 = vmatpush.bf16.msra.mxu0 %v4711
      %4841 = vmatpush.bf16.msra.mxu0 %v4705
      %4842 = vmatpush.bf16.msra.mxu0 %v4699
      %4843 = vmatpush.bf16.msra.mxu0 %v4693
      %4844 = vmatpush.bf16.msra.mxu0 %v4687
      %4845 = vmatpush.bf16.msra.mxu0 %v4681
      %4846 = vmatmul.bf16.gmra.mxu0 %v4247
      %v4847 = vpop.f32.mrf.mxu0
      %v4848 = vadd.f32 %v4835, %v4847
      %v4849 = vpop.f32.mrf.mxu0
      %4850 = vdwg.mxu0
      %4851 = vmatpush.bf16.msra.mxu0 %v4676
      %4852 = vmatpush.bf16.msra.mxu0 %v4670
      %4853 = vmatpush.bf16.msra.mxu0 %v4664
      %4854 = vmatpush.bf16.msra.mxu0 %v4658
      %4855 = vmatpush.bf16.msra.mxu0 %v4652
      %4856 = vmatpush.bf16.msra.mxu0 %v4646
      %4857 = vmatpush.bf16.msra.mxu0 %v4640
      %4858 = vmatpush.bf16.msra.mxu0 %v4634
      %4859 = vmatmul.bf16.gmra.mxu0 %v4246
      %v4860 = vpop.f32.mrf.mxu0
      %v4861 = vadd.f32 0.0, %v4860
      %v4862 = vpop.f32.mrf.mxu0
      %4863 = vdwg.mxu0
      %4864 = vmatpush.bf16.msra.mxu0 %v4724
      %4865 = vmatpush.bf16.msra.mxu0 %v4718
      %4866 = vmatpush.bf16.msra.mxu0 %v4712
      %4867 = vmatpush.bf16.msra.mxu0 %v4706
      %4868 = vmatpush.bf16.msra.mxu0 %v4700
      %4869 = vmatpush.bf16.msra.mxu0 %v4694
      %4870 = vmatpush.bf16.msra.mxu0 %v4688
      %4871 = vmatpush.bf16.msra.mxu0 %v4682
      %4872 = vmatmul.bf16.gmra.mxu0 %v4247
      %v4873 = vpop.f32.mrf.mxu0
      %v4874 = vadd.f32 %v4861, %v4873
      %v4875 = vpop.f32.mrf.mxu0
      %4876 = vdwg.mxu0
      %4877 = vmatpush.bf16.msra.mxu0 %v4677
      %4878 = vmatpush.bf16.msra.mxu0 %v4671
      %4879 = vmatpush.bf16.msra.mxu0 %v4665
      %4880 = vmatpush.bf16.msra.mxu0 %v4659
      %4881 = vmatpush.bf16.msra.mxu0 %v4653
      %4882 = vmatpush.bf16.msra.mxu0 %v4647
      %4883 = vmatpush.bf16.msra.mxu0 %v4641
      %4884 = vmatpush.bf16.msra.mxu0 %v4635
      %4885 = vmatmul.bf16.gmra.mxu0 %v4246
      %v4886 = vpop.f32.mrf.mxu0
      %v4887 = vadd.f32 0.0, %v4886
      %v4888 = vpop.f32.mrf.mxu0
      %4889 = vdwg.mxu0
      %4890 = vmatpush.bf16.msra.mxu0 %v4725
      %4891 = vmatpush.bf16.msra.mxu0 %v4719
      %4892 = vmatpush.bf16.msra.mxu0 %v4713
      %4893 = vmatpush.bf16.msra.mxu0 %v4707
      %4894 = vmatpush.bf16.msra.mxu0 %v4701
      %4895 = vmatpush.bf16.msra.mxu0 %v4695
      %4896 = vmatpush.bf16.msra.mxu0 %v4689
      %4897 = vmatpush.bf16.msra.mxu0 %v4683
      %4898 = vmatmul.bf16.gmra.mxu0 %v4247
      %v4899 = vpop.f32.mrf.mxu0
      %v4900 = vadd.f32 %v4887, %v4899
      %v4901 = vpop.f32.mrf.mxu0
      %4902 = vdwg.mxu0
      %4903 = vmatpush.bf16.msra.mxu0 %v4678
      %4904 = vmatpush.bf16.msra.mxu0 %v4672
      %4905 = vmatpush.bf16.msra.mxu0 %v4666
      %4906 = vmatpush.bf16.msra.mxu0 %v4660
      %4907 = vmatpush.bf16.msra.mxu0 %v4654
      %4908 = vmatpush.bf16.msra.mxu0 %v4648
      %4909 = vmatpush.bf16.msra.mxu0 %v4642
      %4910 = vmatpush.bf16.msra.mxu0 %v4636
      %4911 = vmatmul.bf16.gmra.mxu0 %v4246
      %v4912 = vpop.f32.mrf.mxu0
      %v4913 = vadd.f32 0.0, %v4912
      %v4914 = vpop.f32.mrf.mxu0
      %4915 = vdwg.mxu0
      %4916 = vmatpush.bf16.msra.mxu0 %v4726
      %4917 = vmatpush.bf16.msra.mxu0 %v4720
      %4918 = vmatpush.bf16.msra.mxu0 %v4714
      %4919 = vmatpush.bf16.msra.mxu0 %v4708
      %4920 = vmatpush.bf16.msra.mxu0 %v4702
      %4921 = vmatpush.bf16.msra.mxu0 %v4696
      %4922 = vmatpush.bf16.msra.mxu0 %v4690
      %4923 = vmatpush.bf16.msra.mxu0 %v4684
      %4924 = vmatmul.bf16.gmra.mxu0 %v4247
      %v4925 = vpop.f32.mrf.mxu0
      %v4926 = vadd.f32 %v4913, %v4925
      %v4927 = vpop.f32.mrf.mxu0
      %4928 = vdwg.mxu0
      %4929 = vmatpush.bf16.msra.mxu0 %v4679
      %4930 = vmatpush.bf16.msra.mxu0 %v4673
      %4931 = vmatpush.bf16.msra.mxu0 %v4667
      %4932 = vmatpush.bf16.msra.mxu0 %v4661
      %4933 = vmatpush.bf16.msra.mxu0 %v4655
      %4934 = vmatpush.bf16.msra.mxu0 %v4649
      %4935 = vmatpush.bf16.msra.mxu0 %v4643
      %4936 = vmatpush.bf16.msra.mxu0 %v4637
      %4937 = vmatmul.bf16.gmra.mxu0 %v4246
      %v4938 = vpop.f32.mrf.mxu0
      %v4939 = vadd.f32 0.0, %v4938
      %v4940 = vpop.f32.mrf.mxu0
      %4941 = vdwg.mxu0
      %4942 = vmatpush.bf16.msra.mxu0 %v4727
      %4943 = vmatpush.bf16.msra.mxu0 %v4721
      %4944 = vmatpush.bf16.msra.mxu0 %v4715
      %4945 = vmatpush.bf16.msra.mxu0 %v4709
      %4946 = vmatpush.bf16.msra.mxu0 %v4703
      %4947 = vmatpush.bf16.msra.mxu0 %v4697
      %4948 = vmatpush.bf16.msra.mxu0 %v4691
      %4949 = vmatpush.bf16.msra.mxu0 %v4685
      %4950 = vmatmul.bf16.gmra.mxu0 %v4247
      %v4951 = vpop.f32.mrf.mxu0
      %v4952 = vadd.f32 %v4939, %v4951
      %v4953 = vpop.f32.mrf.mxu0
      %4954 = vdwg.mxu0
      %4955 = vmatpush.bf16.msra.mxu0 %v4680
      %4956 = vmatpush.bf16.msra.mxu0 %v4674
      %4957 = vmatpush.bf16.msra.mxu0 %v4668
      %4958 = vmatpush.bf16.msra.mxu0 %v4662
      %4959 = vmatpush.bf16.msra.mxu0 %v4656
      %4960 = vmatpush.bf16.msra.mxu0 %v4650
      %4961 = vmatpush.bf16.msra.mxu0 %v4644
      %4962 = vmatpush.bf16.msra.mxu0 %v4638
      %4963 = vmatmul.bf16.gmra.mxu0 %v4246
      %v4964 = vpop.f32.mrf.mxu0
      %v4965 = vadd.f32 0.0, %v4964
      %v4966 = vpop.f32.mrf.mxu0
      %4967 = vdwg.mxu0
      %4968 = vmatpush.bf16.msra.mxu0 %v4728
      %4969 = vmatpush.bf16.msra.mxu0 %v4722
      %4970 = vmatpush.bf16.msra.mxu0 %v4716
      %4971 = vmatpush.bf16.msra.mxu0 %v4710
      %4972 = vmatpush.bf16.msra.mxu0 %v4704
      %4973 = vmatpush.bf16.msra.mxu0 %v4698
      %4974 = vmatpush.bf16.msra.mxu0 %v4692
      %4975 = vmatpush.bf16.msra.mxu0 %v4686
      %4976 = vmatmul.bf16.gmra.mxu0 %v4247
      %v4977 = vpop.f32.mrf.mxu0
      %v4978 = vadd.f32 %v4965, %v4977
      %v4979 = vpop.f32.mrf.mxu0
      %4980 = vdwg.mxu0
      %v4981 = vadd.f32 %v4113, %v4848
      %v4982 = vadd.f32 %v4139, %v4874
      %v4983 = vadd.f32 %v4165, %v4900
      %v4984 = vadd.f32 %v4191, %v4926
      %s4985 = scalar_lea.vmem [#allocation13], 2
      %v4986 = vld [vmem:[%s4985] ss:$4 sm:$0xf]
      %v4988 = vperm.slane %v4986, 0
      %v4989 = vperm.slane %v4986, 1
      %v4990 = vperm.slane %v4986, 2
      %v4991 = vperm.slane %v4986, 3
      %v4996 = vadd.f32 %v4981, %v4988
      %v4997 = vadd.f32 %v4982, %v4989
      %v4998 = vadd.f32 %v4983, %v4990
      %v4999 = vadd.f32 %v4984, %v4991
      %v5000 = vxor.u32 %v4996, 2147483648
      %v5001 = vxor.u32 %v4997, 2147483648
      %v5002 = vxor.u32 %v4998, 2147483648
      %v5003 = vxor.u32 %v4999, 2147483648
      %v5004 = vmul.f32 %v5000, 1.442695
      %v5005 = vpow.pop %v5004
      %v5006 = vmul.f32 %v5001, 1.442695
      %v5007 = vpow.pop %v5006
      %v5008 = vmul.f32 %v5002, 1.442695
      %v5009 = vpow.pop %v5008
      %v5010 = vmul.f32 %v5003, 1.442695
      %v5011 = vpow.pop %v5010
      %v5012 = vadd.f32 %v5005, 1.0
      %v5013 = vadd.f32 %v5007, 1.0
      %v5014 = vadd.f32 %v5009, 1.0
      %v5015 = vadd.f32 %v5011, 1.0
      %v5016 = vrcp.pop %v5012
      %v5017 = vmul.f32 %v5012, %v5016
      %v5018 = vsub.f32 1.0, %v5017
      %v5019 = vmul.f32 %v5016, %v5018
      %v5020 = vadd.f32 %v5016, %v5019
      %vm5021 = vweird.f32 %v5012
      %vm5022 = vweird.f32 %v5016
      %vm5023 = vmor %vm5021, %vm5022
      %v5024 = vsel %vm5023, %v5016, %v5020
      %v5025 = vand.u32 2147483647, %v5012
      %vm5026 = vcmp.eq.f32.partialorder %v5025, 8.507059e+37
      %v5027 = vand.u32 %v5012, 2147483648
      %v5028 = vor.u32 1.1754944e-38, %v5027
      %v5029 = vsel %vm5026, %v5028, %v5024
      %v5030 = vmul.f32 1.0, %v5029
      %v5031 = vrcp.pop %v5013
      %v5032 = vmul.f32 %v5013, %v5031
      %v5033 = vsub.f32 1.0, %v5032
      %v5034 = vmul.f32 %v5031, %v5033
      %v5035 = vadd.f32 %v5031, %v5034
      %vm5036 = vweird.f32 %v5013
      %vm5037 = vweird.f32 %v5031
      %vm5038 = vmor %vm5036, %vm5037
      %v5039 = vsel %vm5038, %v5031, %v5035
      %v5040 = vand.u32 2147483647, %v5013
      %vm5041 = vcmp.eq.f32.partialorder %v5040, 8.507059e+37
      %v5042 = vand.u32 %v5013, 2147483648
      %v5043 = vor.u32 1.1754944e-38, %v5042
      %v5044 = vsel %vm5041, %v5043, %v5039
      %v5045 = vmul.f32 1.0, %v5044
      %v5046 = vrcp.pop %v5014
      %v5047 = vmul.f32 %v5014, %v5046
      %v5048 = vsub.f32 1.0, %v5047
      %v5049 = vmul.f32 %v5046, %v5048
      %v5050 = vadd.f32 %v5046, %v5049
      %vm5051 = vweird.f32 %v5014
      %vm5052 = vweird.f32 %v5046
      %vm5053 = vmor %vm5051, %vm5052
      %v5054 = vsel %vm5053, %v5046, %v5050
      %v5055 = vand.u32 2147483647, %v5014
      %vm5056 = vcmp.eq.f32.partialorder %v5055, 8.507059e+37
      %v5057 = vand.u32 %v5014, 2147483648
      %v5058 = vor.u32 1.1754944e-38, %v5057
      %v5059 = vsel %vm5056, %v5058, %v5054
      %v5060 = vmul.f32 1.0, %v5059
      %v5061 = vrcp.pop %v5015
      %v5062 = vmul.f32 %v5015, %v5061
      %v5063 = vsub.f32 1.0, %v5062
      %v5064 = vmul.f32 %v5061, %v5063
      %v5065 = vadd.f32 %v5061, %v5064
      %vm5066 = vweird.f32 %v5015
      %vm5067 = vweird.f32 %v5061
      %vm5068 = vmor %vm5066, %vm5067
      %v5069 = vsel %vm5068, %v5061, %v5065
      %v5070 = vand.u32 2147483647, %v5015
      %vm5071 = vcmp.eq.f32.partialorder %v5070, 8.507059e+37
      %v5072 = vand.u32 %v5015, 2147483648
      %v5073 = vor.u32 1.1754944e-38, %v5072
      %v5074 = vsel %vm5071, %v5073, %v5069
      %v5075 = vmul.f32 1.0, %v5074
      %s5076 = scalar_lea.vmem [#allocation15], 2
      %v5077 = vld [vmem:[%s5076] ss:$4 sm:$0x3]
      %v5079 = vperm.slane %v5077, 0
      %v5080 = vperm.slane %v5077, 1
      %v5083 = vadd.f32 %v4217, %v5079
      %v5084 = vadd.f32 %v4243, %v5080
      %s5085 = scalar_lea.vmem [#allocation16], 2
      %v5086 = vld [vmem:[%s5085] ss:$4 sm:$0x3]
      %v5088 = vperm.slane %v5086, 0
      %v5089 = vperm.slane %v5086, 1
      %v5092 = vadd.f32 %v4952, %v5088
      %v5093 = vadd.f32 %v4978, %v5089
      %v5094 = vmul.f32 %v5030, %v5092
      %v5095 = vmul.f32 %v5045, %v5093
      %v5096 = vadd.f32 %v5083, %v5094
      %v5097 = vadd.f32 %v5084, %v5095
      %v5098 = vtanh.pop %v5096
      %v5099 = vtanh.pop %v5097
      %v5100 = vsub.f32 1.0, %v5060
      %v5101 = vsub.f32 1.0, %v5075
      %v5102 = vmul.f32 %v5100, %v5098
      %v5103 = vmul.f32 %v5101, %v5099
      %v5104 = vmul.f32 %v5060, %v3509
      %v5105 = vmul.f32 %v5075, %v3510
      %v5106 = vadd.f32 %v5102, %v5104
      %v5107 = vadd.f32 %v5103, %v5105
      %s5108 = scalar_lea.vmem [#allocation21], 32
      %5109 = vst [vmem:[%s5108] sm:$0xff] %v5106
      %5110 = vst [vmem:[%s5108 + $0x8] sm:$0xff] %v5107
      %v5111 = vpack.c.bf16 %v5107, %v5106
      %5112 = vst [vmem:[#allocation3] sm:$0xff] %v5111
    $region69: #{tpu_custom_call.1} parent=1 // pred_fallthru
      _
    %v5113 = vld [vmem:[#allocation3] sm:$0xff]
    %v5114 = vld [vmem:[#allocation18] sm:$0xf]
    %v5115 = vld [vmem:[#allocation18 + $0x4] sm:$0xf]
    %v5116 = vld [vmem:[#allocation18 + $0x8] sm:$0xf]
    %v5117 = vld [vmem:[#allocation18 + $0xc] sm:$0xf]
    %v5118 = vld [vmem:[#allocation18 + $0x10] sm:$0xf]
    %v5119 = vld [vmem:[#allocation18 + $0x14] sm:$0xf]
    %v5120 = vld [vmem:[#allocation18 + $0x18] sm:$0xf]
    %v5121 = vld [vmem:[#allocation18 + $0x1c] sm:$0xf]
    %v5122 = vld [vmem:[#allocation18 + $0x20] sm:$0xf]
    %v5123 = vld [vmem:[#allocation18 + $0x24] sm:$0xf]
    %v5124 = vld [vmem:[#allocation18 + $0x28] sm:$0xf]
    %v5125 = vld [vmem:[#allocation18 + $0x2c] sm:$0xf]
    %v5126 = vld [vmem:[#allocation18 + $0x30] sm:$0xf]
    %v5127 = vld [vmem:[#allocation18 + $0x34] sm:$0xf]
    %v5128 = vld [vmem:[#allocation18 + $0x38] sm:$0xf]
    %v5129 = vld [vmem:[#allocation18 + $0x3c] sm:$0xf]
    %v5130 = vld [vmem:[#allocation18 + $0x40] sm:$0xf]
    %v5131 = vld [vmem:[#allocation18 + $0x44] sm:$0xf]
    %v5132 = vld [vmem:[#allocation18 + $0x48] sm:$0xf]
    %v5133 = vld [vmem:[#allocation18 + $0x4c] sm:$0xf]
    %v5134 = vld [vmem:[#allocation18 + $0x50] sm:$0xf]
    %v5135 = vld [vmem:[#allocation18 + $0x54] sm:$0xf]
    %v5136 = vld [vmem:[#allocation18 + $0x58] sm:$0xf]
    %v5137 = vld [vmem:[#allocation18 + $0x5c] sm:$0xf]
    %v5138 = vld [vmem:[#allocation18 + $0x60] sm:$0xf]
    %v5139 = vld [vmem:[#allocation18 + $0x64] sm:$0xf]
    %v5140 = vld [vmem:[#allocation18 + $0x68] sm:$0xf]
    %v5141 = vld [vmem:[#allocation18 + $0x6c] sm:$0xf]
    %v5142 = vld [vmem:[#allocation18 + $0x70] sm:$0xf]
    %v5143 = vld [vmem:[#allocation18 + $0x74] sm:$0xf]
    %v5144 = vld [vmem:[#allocation18 + $0x78] sm:$0xf]
    %v5145 = vld [vmem:[#allocation18 + $0x7c] sm:$0xf]
    %v5146 = vld [vmem:[#allocation19] sm:$0x1]
    %v5148 = vperm.slane %v5146, 0
    %v5151 = vunpack.c.l.b16 %v5113
    %v5152 = vunpack.c.h.b16 %v5113
    %v5153 = vpack.c.b16 %v5151, %v5151
    %v5154 = vpack.c.b16 %v5152, %v5152
    %v5189 = vunpack.c.l.b16 %v5114
    %v5190 = vunpack.c.l.b16 %v5115
    %v5191 = vunpack.c.l.b16 %v5116
    %v5192 = vunpack.c.l.b16 %v5117
    %v5193 = vunpack.c.l.b16 %v5118
    %v5194 = vunpack.c.l.b16 %v5119
    %v5195 = vunpack.c.l.b16 %v5120
    %v5196 = vunpack.c.l.b16 %v5121
    %v5197 = vunpack.c.l.b16 %v5122
    %v5198 = vunpack.c.l.b16 %v5123
    %v5199 = vunpack.c.l.b16 %v5124
    %v5200 = vunpack.c.l.b16 %v5125
    %v5201 = vunpack.c.l.b16 %v5126
    %v5202 = vunpack.c.l.b16 %v5127
    %v5203 = vunpack.c.l.b16 %v5128
    %v5204 = vunpack.c.l.b16 %v5129
    %v5205 = vunpack.c.l.b16 %v5130
    %v5206 = vunpack.c.l.b16 %v5131
    %v5207 = vunpack.c.l.b16 %v5132
    %v5208 = vunpack.c.l.b16 %v5133
    %v5209 = vunpack.c.l.b16 %v5134
    %v5210 = vunpack.c.l.b16 %v5135
    %v5211 = vunpack.c.l.b16 %v5136
    %v5212 = vunpack.c.l.b16 %v5137
    %v5213 = vunpack.c.l.b16 %v5138
    %v5214 = vunpack.c.l.b16 %v5139
    %v5215 = vunpack.c.l.b16 %v5140
    %v5216 = vunpack.c.l.b16 %v5141
    %v5217 = vunpack.c.l.b16 %v5142
    %v5218 = vunpack.c.l.b16 %v5143
    %v5219 = vunpack.c.l.b16 %v5144
    %v5220 = vunpack.c.l.b16 %v5145
    %v5221 = vpack.c.b16 %v5190, %v5189
    %v5222 = vpack.c.b16 %v5192, %v5191
    %v5223 = vpack.c.b16 %v5194, %v5193
    %v5224 = vpack.c.b16 %v5196, %v5195
    %v5225 = vpack.c.b16 %v5198, %v5197
    %v5226 = vpack.c.b16 %v5200, %v5199
    %v5227 = vpack.c.b16 %v5202, %v5201
    %v5228 = vpack.c.b16 %v5204, %v5203
    %v5229 = vpack.c.b16 %v5206, %v5205
    %v5230 = vpack.c.b16 %v5208, %v5207
    %v5231 = vpack.c.b16 %v5210, %v5209
    %v5232 = vpack.c.b16 %v5212, %v5211
    %v5233 = vpack.c.b16 %v5214, %v5213
    %v5234 = vpack.c.b16 %v5216, %v5215
    %v5235 = vpack.c.b16 %v5218, %v5217
    %v5236 = vpack.c.b16 %v5220, %v5219
    %5253 = vmatpush.bf16.msra.mxu0 %v5228
    %5254 = vmatpush.bf16.msra.mxu0 %v5227
    %5255 = vmatpush.bf16.msra.mxu0 %v5226
    %5256 = vmatpush.bf16.msra.mxu0 %v5225
    %5257 = vmatpush.bf16.msra.mxu0 %v5224
    %5258 = vmatpush.bf16.msra.mxu0 %v5223
    %5259 = vmatpush.bf16.msra.mxu0 %v5222
    %5260 = vmatpush.bf16.msra.mxu0 %v5221
    %5261 = vmatmul.bf16.gmra.mxu0 %v5153
    %v5262 = vpop.f32.mrf.mxu0
    %v5263 = vadd.f32 %v5148, %v5262
    %v5264 = vpop.f32.mrf.mxu0
    %5265 = vdwg.mxu0
    %5266 = vmatpush.bf16.msra.mxu0 %v5236
    %5267 = vmatpush.bf16.msra.mxu0 %v5235
    %5268 = vmatpush.bf16.msra.mxu0 %v5234
    %5269 = vmatpush.bf16.msra.mxu0 %v5233
    %5270 = vmatpush.bf16.msra.mxu0 %v5232
    %5271 = vmatpush.bf16.msra.mxu0 %v5231
    %5272 = vmatpush.bf16.msra.mxu0 %v5230
    %5273 = vmatpush.bf16.msra.mxu0 %v5229
    %5274 = vmatmul.bf16.gmra.mxu0 %v5154
    %v5275 = vpop.f32.mrf.mxu0
    %v5276 = vadd.f32 %v5263, %v5275
    %v5277 = vpop.f32.mrf.mxu0
    %5278 = vdwg.mxu0
    %v5279 = vpack.c.bf16 %v5276, %v5276
    %5280 = vst [vmem:[#allocation22] sm:$0xf] %v5279
    // Predicated region
    $region70: #{tpu_custom_call.1} parent=1 // pred_check
      _
    $region71: #{tpu_custom_call.1} parent=1 // pred_check_branch
      %5282 = sbr.rel (0) target = $region73
    $region72: #{tpu_custom_call.1} parent=1 // pred_region
      %5284 = vsyncadd [#allocation9], 0
      %s5285 = sshll.u32 [#allocation21], 4
      %s5286 = int_to_ptr.vmem [resolvable:$true] %s5285
      %s5287 = sshll.u32 %s10, 4
      %s5288 = int_to_ptr.hbm [resolvable:$true] %s5287
      %5293 = dma.vmem_to_hbm [thread:$0]  %s5286, 768, %s5288, [#allocation9], 256, 256, 16
    $region73: #{tpu_custom_call.1} parent=1 // pred_fallthru
      _
    // Predicated region
    $region74: #{tpu_custom_call.1} parent=1 // pred_check
      _
    $region75: #{tpu_custom_call.1} parent=1 // pred_check_branch
      %5295 = sbr.rel (0) target = $region77
    $region76: #{tpu_custom_call.1} parent=1 // pred_region
      %5297 = vsyncadd [#allocation23], 0
      %s5299 = sshll.u32 [#allocation22], 4
      %s5300 = int_to_ptr.vmem [resolvable:$true] %s5299
      %s5301 = sshll.u32 %s11, 4
      %s5302 = int_to_ptr.hbm [resolvable:$true] %s5301
      %5304 = dma.vmem_to_hbm [thread:$0]  %s5300, 64, %s5302, [#allocation23]
    $region77: #{tpu_custom_call.1} parent=1 // pred_fallthru
      _
    // Predicated region
    $region78: #{tpu_custom_call.1} parent=1 // pred_check
      _
    $region79: #{tpu_custom_call.1} parent=1 // pred_check_branch
      %5306 = sbr.rel (0) target = $region81
    $region80: #{tpu_custom_call.1} parent=1 // pred_region
      %5308 = dma.done [#allocation9], 768
    $region81: #{tpu_custom_call.1} parent=1 // pred_fallthru
      _
    // Predicated region
    $region82: #{tpu_custom_call.1} parent=1 // pred_check
      _
    $region83: #{tpu_custom_call.1} parent=1 // pred_check_branch
      %5310 = sbr.rel (0) target = $region85
    $region84: #{tpu_custom_call.1} parent=1 // pred_region
      %5312 = dma.done [#allocation23], 64
    $region85: #{tpu_custom_call.1} parent=1 // pred_fallthru
      _
    %5313 = vsyncpa [#allocation8], 1
    %5314 = vsyncpa [#allocation11], 1
    %5315 = vsyncpa [#allocation14], 1
    %5316 = vsyncpa [#allocation17], 1
    %5317 = vsyncpa [#allocation20], 1
    %5318 = vsyncpa [#allocation9], 1
    %5319 = vsyncpa [#allocation23], 1
  %5320 = vsyncmov [#allocation4]
  %s5321 = vpop.sfrf %5320
  %p5322 = scmp.eq.s32.totalorder %s5321, 0
  %p5323 = pneg %p5322
  %5325 = shalt.err (%p5323)
  %s5326 = scalar_lea.sflag [#allocation4], 1
  %5327 = vsyncmov %s5326
  %s5328 = vpop.sfrf %5327
  %p5329 = scmp.eq.s32.totalorder %s5328, 0
  %p5330 = pneg %p5329
  %5332 = shalt.err (%p5330)
  %s5333 = scalar_lea.sflag [#allocation4], 2
  %5334 = vsyncmov %s5333
  %s5335 = vpop.sfrf %5334
  %p5336 = scmp.eq.s32.totalorder %s5335, 0
  %p5337 = pneg %p5336
  %5339 = shalt.err (%p5337)
  %s5340 = scalar_lea.sflag [#allocation4], 3
  %5341 = vsyncmov %s5340
  %s5342 = vpop.sfrf %5341
  %p5343 = scmp.eq.s32.totalorder %s5342, 0
  %p5344 = pneg %p5343
  %5346 = shalt.err (%p5344)
  %s5347 = scalar_lea.sflag [#allocation4], 4
  %5348 = vsyncmov %s5347
  %s5349 = vpop.sfrf %5348
  %p5350 = scmp.eq.s32.totalorder %s5349, 0
  %p5351 = pneg %p5350
  %5353 = shalt.err (%p5351)
  %s5354 = scalar_lea.sflag [#allocation4], 5
  %5355 = vsyncmov %s5354
  %s5356 = vpop.sfrf %5355
  %p5357 = scmp.eq.s32.totalorder %s5356, 0
  %p5358 = pneg %p5357
  %5360 = shalt.err (%p5358)
  %s5361 = scalar_lea.sflag [#allocation4], 6
  %5362 = vsyncmov %s5361
  %s5363 = vpop.sfrf %5362
  %p5364 = scmp.eq.s32.totalorder %s5363, 0
  %p5365 = pneg %p5364
  %5367 = shalt.err (%p5365)
  %s5368 = scalar_lea.sflag [#allocation4], 7
  %5369 = vsyncmov %s5368
  %s5370 = vpop.sfrf %5369
  %p5371 = scmp.eq.s32.totalorder %s5370, 0
  %p5372 = pneg %p5371
  %5374 = shalt.err (%p5372)

</llo_original>
